<compile_context>
chip_gen: v5e
topology: v5e:2x2
jax: 0.10.0
libtpu: 0.0.40
codegen_flags: <defaults>
</compile_context>

<pallas_src>
import functools

import jax
import jax.numpy as jnp
from jax import lax
from jax.experimental import pallas as pl
from jax.experimental.pallas import tpu as pltpu


_ROW_SUB = 8      # sublane granularity: rows per register-resident chunk
_W_CHUNK = 128    # lane granularity: windows per register-resident chunk
_K_GROUP = 8      # shapelets processed together (k innermost); 2*_K_GROUP accum vregs


def _round_up(x, m):
    return ((x + m - 1) // m) * m


def _fused_shapelet_kernel(x_ref, *args, block_dims):
    """One row tile of the fused shapelet-distance computation.

    x_ref      : (C, n_tile, T) VMEM tile of the (transposed, padded) input.
    args[:-1]  : per-block shapelet weights, flattened (C*K*L,) float32, in SMEM.
    args[-1]   : out_ref, (n_tile, total_K) VMEM.
    block_dims : static tuple of (K, L) per shapelet block.
    """
    n_blocks = len(block_dims)
    shp_refs = args[:n_blocks]
    out_ref = args[n_blocks]

    C, n_tile, T = x_ref.shape
    n_row_chunks = n_tile // _ROW_SUB

    col0 = 0
    for (K, L), shp_ref in zip(block_dims, shp_refs):
        W = T - L + 1                                  # stride-1 windows, on the lane axis
        for g0 in range(0, K, _K_GROUP):
            ks = list(range(g0, min(g0 + _K_GROUP, K)))
            G = len(ks)

            # Hoisted SMEM scalar reads (chunk-invariant): s_vals[c][j][l],
            # read once per (block, k-group), reused by every row/window chunk.
            s_vals = [[[shp_ref[(c * K + k) * L + l] for l in range(L)]
                       for k in ks] for c in range(C)]

            def row_chunk_body(r, carry, s_vals=s_vals, L=L, W=W, G=G,
                               out_col=col0 + g0):
                r0 = pl.multiple_of(r * _ROW_SUB, _ROW_SUB)
                rmin = [None] * G          # running min over windows: (8, 1) per shapelet
                for w0 in range(0, W, _W_CHUNK):
                    wc = min(_W_CHUNK, W - w0)
                    # distance accumulators: one vreg-sized (8, wc) tile per shapelet
                    dist = [jnp.zeros((_ROW_SUB, wc), jnp.float32) for _ in range(G)]
                    for c in range(C):
                        sq = [jnp.zeros((_ROW_SUB, wc), jnp.float32) for _ in range(G)]
                        for l in range(L):
                            # one lane-slice load, reused for all G shapelets in the group
                            xs = x_ref[c, pl.ds(r0, _ROW_SUB), pl.ds(w0 + l, wc)]
                            for j in range(G):
                                d = xs - s_vals[c][j][l]
                                sq[j] = sq[j] + d * d
                        for j in range(G):
                            dist[j] = dist[j] + jnp.sqrt(sq[j])    # per-channel L2 (EUP)
                        # TODO(synk): if this layer is trained, sqrt needs an eps /
                        # custom VJP (unbounded grad at 0); forward pass is exact as-is.
                    for j in range(G):
                        cmin = jnp.min(dist[j], axis=-1, keepdims=True)   # (8, 1), XLU
                        rmin[j] = cmin if rmin[j] is None else jnp.minimum(rmin[j], cmin)
                # direct per-shapelet column stores (no K-wide concatenate / liveness)
                for j in range(G):
                    out_ref[pl.ds(r0, _ROW_SUB), pl.ds(out_col + j, 1)] = (
                        rmin[j].astype(out_ref.dtype))
                return carry

            lax.fori_loop(0, n_row_chunks, row_chunk_body, 0)
        col0 += K


def shapelets_dist_blocks_forward(x, shapelets_list, *, interpret=False):
    """Fused forward pass. x: (N, C, T); shapelets_list: list of (C, K_b, L_b)."""
    x = jnp.asarray(x, jnp.float32)
    N, C, T = x.shape

    block_dims = []
    flat_shapelets = []
    for shp in shapelets_list:
        shp = jnp.asarray(shp, jnp.float32)
        c2, K, L = shp.shape
        if c2 != C:
            raise ValueError("channel mismatch between x and shapelets")
        if L > T:
            raise ValueError(f"shapelet length {L} exceeds series length {T}")
        block_dims.append((K, L))
        # TODO(synk): for very large banks (C*K*L >> 1e5) the 1-D SMEM array pads to
        # next_pow2(4*C*K*L) bytes; move weights to VMEM + vectorize over k in that case.
        flat_shapelets.append(shp.reshape(-1))
    total_K = sum(K for K, _ in block_dims)

    # ---- Row tiling: minimize padding, fit the double-buffered x tile in an explicit
    #      VMEM budget, and give the grid >= 2 steps when possible (v7x: 2 TensorCores).
    bytes_per_row = C * T * 4
    vmem_x_budget = 16 * 1024 * 1024          # double-buffered input tile budget
    max_rows = max(_ROW_SUB,
                   (vmem_x_budget // (2 * bytes_per_row)) // _ROW_SUB * _ROW_SUB)
    max_tile = min(256, max_rows)
    steps = pl.cdiv(N, max_tile)
    if N >= 2 * _ROW_SUB:
        steps = max(steps, 2)
    n_tile = _round_up(pl.cdiv(N, steps), _ROW_SUB)
    steps = pl.cdiv(N, n_tile)
    n_pad = n_tile * steps

    # (C, N, T): rows on sublanes, time/windows on lanes -> lane-dense compute.
    xt = jnp.transpose(x, (1, 0, 2))
    if n_pad != N:
        xt = jnp.pad(xt, ((0, 0), (0, n_pad - N), (0, 0)))

    kernel = functools.partial(_fused_shapelet_kernel, block_dims=tuple(block_dims))

    in_specs = [pl.BlockSpec((C, n_tile, T), lambda i: (0, i, 0))]
    in_specs += [pl.BlockSpec(memory_space=pltpu.MemorySpace.SMEM)
                 for _ in block_dims]

    out = pl.pallas_call(
        kernel,
        out_shape=jax.ShapeDtypeStruct((n_pad, total_K), jnp.float32),
        grid=(steps,),
        in_specs=in_specs,
        out_specs=pl.BlockSpec((n_tile, total_K), lambda i: (i, 0)),
        compiler_params=pltpu.CompilerParams(
            dimension_semantics=("parallel",),
            vmem_limit_bytes=32 * 1024 * 1024),
        interpret=interpret,
    )(xt, *flat_shapelets)

    return out[:N]


class ShapeletsDistBlocksPallas:
    """JAX/Pallas equivalent of ShapeletsDistBlocks (euclidean, non-ACS path).

    Shapelet parameters are initialized deterministically with randn-like values of
    shape (in_channels, num_shapelets, shapelets_size) per block, matching the PyTorch
    module's parameter shapes and block ordering (dict insertion order).
    """
    # TODO(synk): 'cross-correlation', 'cosine' and the ACS euclidean variant are not
    # implemented — their block source code was not provided with the module.

    def __init__(self, shapelets_size_and_len, in_channels=1, dist_measure='euclidean',
                 key=None):
        if dist_measure != 'euclidean':
            raise ValueError("only 'euclidean' (non-ACS) is implemented")
        if key is None:
            key = jax.random.PRNGKey(0)
        self.shapelets_size_and_len = shapelets_size_and_len
        self.in_channels = in_channels
        self.shapelets = []
        for idx, (L, K) in enumerate(shapelets_size_and_len.items()):
            k = jax.random.fold_in(key, idx)
            self.shapelets.append(
                jax.random.normal(k, (in_channels, K, L), dtype=jnp.float32))

    def __call__(self, x):
        return shapelets_dist_blocks_forward(x, self.shapelets)


def _reference(x, shapelets_list):
    """Pure-JAX reference mirroring unfold -> torch.cdist -> sum(ch) -> min(window)."""
    outs = []
    for shp in shapelets_list:
        C, K, L = shp.shape
        N, _, T = x.shape
        W = T - L + 1
        win = jnp.stack([x[:, :, w:w + L] for w in range(W)], axis=2)  # (N, C, W, L)
        diff = win[:, :, :, None, :] - shp[None, :, None, :, :]        # (N, C, W, K, L)
        dist = jnp.sqrt(jnp.sum(diff * diff, axis=-1))                 # (N, C, W, K)
        dist = jnp.sum(dist, axis=1)                                   # (N, W, K)
        outs.append(jnp.min(dist, axis=1))                             # (N, K)
    return jnp.concatenate(outs, axis=1)


if __name__ == "__main__":
    key = jax.random.PRNGKey(0)
    kx, kp = jax.random.split(key)

    # small shapes consistent with the module's forward: x = (n_samples, in_channels, len_ts)
    N, C, T = 2, 4, 16
    shapelets_size_and_len = {3: 4, 5: 6}   # {shapelet_length: num_shapelets}

    x = jax.random.normal(kx, (N, C, T), dtype=jnp.float32)

    model = ShapeletsDistBlocksPallas(shapelets_size_and_len, in_channels=C, key=kp)
    out = jax.block_until_ready(model(x))

    total_shapelets = sum(shapelets_size_and_len.values())
    assert out.shape == (N, total_shapelets), out.shape

    ref = _reference(x, model.shapelets)
    if not bool(jnp.allclose(out, ref, atol=1e-4, rtol=1e-4)):
        raise AssertionError("Pallas kernel output does not match JAX reference")

    print("KERNEL_OK")
</pallas_src>

<mosaic_0001>
module attributes {stable_mosaic.version = 11 : i64} {
  func.func @_fused_shapelet_kernel(%arg0: i32, %arg1: memref<4x8x16xf32, #tpu.memory_space<vmem>>, %arg2: memref<48xf32, #tpu.memory_space<smem>>, %arg3: memref<120xf32, #tpu.memory_space<smem>>, %arg4: memref<8x10xf32, #tpu.memory_space<vmem>>) attributes {dimension_semantics = [#tpu.dimension_semantics<parallel>], iteration_bounds = array<i64: 1>, scalar_prefetch = 0 : i64, scratch_operands = 0 : i64, tpu.core_type = #tpu.core_type<tc>, window_params = [{transform_indices = @transform_0, window_bounds = array<i64: 4, 8, 16>}, {transform_indices = @transform_1, window_bounds = array<i64: 48>}, {transform_indices = @transform_2, window_bounds = array<i64: 120>}, {transform_indices = @transform_3, window_bounds = array<i64: 8, 10>}]} {
    %c0 = arith.constant 0 : index
    %0 = memref.load %arg2[%c0] : memref<48xf32, #tpu.memory_space<smem>>
    %c1 = arith.constant 1 : index
    %1 = memref.load %arg2[%c1] : memref<48xf32, #tpu.memory_space<smem>>
    %c2 = arith.constant 2 : index
    %2 = memref.load %arg2[%c2] : memref<48xf32, #tpu.memory_space<smem>>
    %c3 = arith.constant 3 : index
    %3 = memref.load %arg2[%c3] : memref<48xf32, #tpu.memory_space<smem>>
    %c4 = arith.constant 4 : index
    %4 = memref.load %arg2[%c4] : memref<48xf32, #tpu.memory_space<smem>>
    %c5 = arith.constant 5 : index
    %5 = memref.load %arg2[%c5] : memref<48xf32, #tpu.memory_space<smem>>
    %c6 = arith.constant 6 : index
    %6 = memref.load %arg2[%c6] : memref<48xf32, #tpu.memory_space<smem>>
    %c7 = arith.constant 7 : index
    %7 = memref.load %arg2[%c7] : memref<48xf32, #tpu.memory_space<smem>>
    %c8 = arith.constant 8 : index
    %8 = memref.load %arg2[%c8] : memref<48xf32, #tpu.memory_space<smem>>
    %c9 = arith.constant 9 : index
    %9 = memref.load %arg2[%c9] : memref<48xf32, #tpu.memory_space<smem>>
    %c10 = arith.constant 10 : index
    %10 = memref.load %arg2[%c10] : memref<48xf32, #tpu.memory_space<smem>>
    %c11 = arith.constant 11 : index
    %11 = memref.load %arg2[%c11] : memref<48xf32, #tpu.memory_space<smem>>
    %c12 = arith.constant 12 : index
    %12 = memref.load %arg2[%c12] : memref<48xf32, #tpu.memory_space<smem>>
    %c13 = arith.constant 13 : index
    %13 = memref.load %arg2[%c13] : memref<48xf32, #tpu.memory_space<smem>>
    %c14 = arith.constant 14 : index
    %14 = memref.load %arg2[%c14] : memref<48xf32, #tpu.memory_space<smem>>
    %c15 = arith.constant 15 : index
    %15 = memref.load %arg2[%c15] : memref<48xf32, #tpu.memory_space<smem>>
    %c16 = arith.constant 16 : index
    %16 = memref.load %arg2[%c16] : memref<48xf32, #tpu.memory_space<smem>>
    %c17 = arith.constant 17 : index
    %17 = memref.load %arg2[%c17] : memref<48xf32, #tpu.memory_space<smem>>
    %c18 = arith.constant 18 : index
    %18 = memref.load %arg2[%c18] : memref<48xf32, #tpu.memory_space<smem>>
    %c19 = arith.constant 19 : index
    %19 = memref.load %arg2[%c19] : memref<48xf32, #tpu.memory_space<smem>>
    %c20 = arith.constant 20 : index
    %20 = memref.load %arg2[%c20] : memref<48xf32, #tpu.memory_space<smem>>
    %c21 = arith.constant 21 : index
    %21 = memref.load %arg2[%c21] : memref<48xf32, #tpu.memory_space<smem>>
    %c22 = arith.constant 22 : index
    %22 = memref.load %arg2[%c22] : memref<48xf32, #tpu.memory_space<smem>>
    %c23 = arith.constant 23 : index
    %23 = memref.load %arg2[%c23] : memref<48xf32, #tpu.memory_space<smem>>
    %c24 = arith.constant 24 : index
    %24 = memref.load %arg2[%c24] : memref<48xf32, #tpu.memory_space<smem>>
    %c25 = arith.constant 25 : index
    %25 = memref.load %arg2[%c25] : memref<48xf32, #tpu.memory_space<smem>>
    %c26 = arith.constant 26 : index
    %26 = memref.load %arg2[%c26] : memref<48xf32, #tpu.memory_space<smem>>
    %c27 = arith.constant 27 : index
    %27 = memref.load %arg2[%c27] : memref<48xf32, #tpu.memory_space<smem>>
    %c28 = arith.constant 28 : index
    %28 = memref.load %arg2[%c28] : memref<48xf32, #tpu.memory_space<smem>>
    %c29 = arith.constant 29 : index
    %29 = memref.load %arg2[%c29] : memref<48xf32, #tpu.memory_space<smem>>
    %c30 = arith.constant 30 : index
    %30 = memref.load %arg2[%c30] : memref<48xf32, #tpu.memory_space<smem>>
    %c31 = arith.constant 31 : index
    %31 = memref.load %arg2[%c31] : memref<48xf32, #tpu.memory_space<smem>>
    %c32 = arith.constant 32 : index
    %32 = memref.load %arg2[%c32] : memref<48xf32, #tpu.memory_space<smem>>
    %c33 = arith.constant 33 : index
    %33 = memref.load %arg2[%c33] : memref<48xf32, #tpu.memory_space<smem>>
    %c34 = arith.constant 34 : index
    %34 = memref.load %arg2[%c34] : memref<48xf32, #tpu.memory_space<smem>>
    %c35 = arith.constant 35 : index
    %35 = memref.load %arg2[%c35] : memref<48xf32, #tpu.memory_space<smem>>
    %c36 = arith.constant 36 : index
    %36 = memref.load %arg2[%c36] : memref<48xf32, #tpu.memory_space<smem>>
    %c37 = arith.constant 37 : index
    %37 = memref.load %arg2[%c37] : memref<48xf32, #tpu.memory_space<smem>>
    %c38 = arith.constant 38 : index
    %38 = memref.load %arg2[%c38] : memref<48xf32, #tpu.memory_space<smem>>
    %c39 = arith.constant 39 : index
    %39 = memref.load %arg2[%c39] : memref<48xf32, #tpu.memory_space<smem>>
    %c40 = arith.constant 40 : index
    %40 = memref.load %arg2[%c40] : memref<48xf32, #tpu.memory_space<smem>>
    %c41 = arith.constant 41 : index
    %41 = memref.load %arg2[%c41] : memref<48xf32, #tpu.memory_space<smem>>
    %c42 = arith.constant 42 : index
    %42 = memref.load %arg2[%c42] : memref<48xf32, #tpu.memory_space<smem>>
    %c43 = arith.constant 43 : index
    %43 = memref.load %arg2[%c43] : memref<48xf32, #tpu.memory_space<smem>>
    %c44 = arith.constant 44 : index
    %44 = memref.load %arg2[%c44] : memref<48xf32, #tpu.memory_space<smem>>
    %c45 = arith.constant 45 : index
    %45 = memref.load %arg2[%c45] : memref<48xf32, #tpu.memory_space<smem>>
    %c46 = arith.constant 46 : index
    %46 = memref.load %arg2[%c46] : memref<48xf32, #tpu.memory_space<smem>>
    %c47 = arith.constant 47 : index
    %47 = memref.load %arg2[%c47] : memref<48xf32, #tpu.memory_space<smem>>
    %c0_i32 = arith.constant 0 : i32
    %c8_i32 = arith.constant 8 : i32
    %48 = arith.muli %c0_i32, %c8_i32 : i32
    %49 = tpu.assume_multiple %48, 8 : i32
    %cst = arith.constant 0.000000e+00 : f32
    %50 = vector.broadcast %cst : f32 to vector<8x14xf32>
    %cst_0 = arith.constant 0.000000e+00 : f32
    %51 = vector.broadcast %cst_0 : f32 to vector<8x14xf32>
    %cst_1 = arith.constant 0.000000e+00 : f32
    %52 = vector.broadcast %cst_1 : f32 to vector<8x14xf32>
    %cst_2 = arith.constant 0.000000e+00 : f32
    %53 = vector.broadcast %cst_2 : f32 to vector<8x14xf32>
    %cst_3 = arith.constant 0.000000e+00 : f32
    %54 = vector.broadcast %cst_3 : f32 to vector<8x14xf32>
    %cst_4 = arith.constant 0.000000e+00 : f32
    %55 = vector.broadcast %cst_4 : f32 to vector<8x14xf32>
    %cst_5 = arith.constant 0.000000e+00 : f32
    %56 = vector.broadcast %cst_5 : f32 to vector<8x14xf32>
    %cst_6 = arith.constant 0.000000e+00 : f32
    %57 = vector.broadcast %cst_6 : f32 to vector<8x14xf32>
    %c0_7 = arith.constant 0 : index
    %58 = arith.index_cast %49 : i32 to index
    %c0_8 = arith.constant 0 : index
    %59 = vector.load %arg1[%c0_7, %58, %c0_8] : memref<4x8x16xf32, #tpu.memory_space<vmem>>, vector<1x8x14xf32>
    %60 = vector.shape_cast %59 : vector<1x8x14xf32> to vector<8x14xf32>
    %61 = vector.broadcast %0 : f32 to vector<8x14xf32>
    %62 = arith.subf %60, %61 : vector<8x14xf32>
    %63 = arith.mulf %62, %62 : vector<8x14xf32>
    %64 = arith.addf %54, %63 : vector<8x14xf32>
    %65 = vector.broadcast %3 : f32 to vector<8x14xf32>
    %66 = arith.subf %60, %65 : vector<8x14xf32>
    %67 = arith.mulf %66, %66 : vector<8x14xf32>
    %68 = arith.addf %55, %67 : vector<8x14xf32>
    %69 = vector.broadcast %6 : f32 to vector<8x14xf32>
    %70 = arith.subf %60, %69 : vector<8x14xf32>
    %71 = arith.mulf %70, %70 : vector<8x14xf32>
    %72 = arith.addf %56, %71 : vector<8x14xf32>
    %73 = vector.broadcast %9 : f32 to vector<8x14xf32>
    %74 = arith.subf %60, %73 : vector<8x14xf32>
    %75 = arith.mulf %74, %74 : vector<8x14xf32>
    %76 = arith.addf %57, %75 : vector<8x14xf32>
    %c0_9 = arith.constant 0 : index
    %77 = arith.index_cast %49 : i32 to index
    %c1_10 = arith.constant 1 : index
    %78 = vector.load %arg1[%c0_9, %77, %c1_10] : memref<4x8x16xf32, #tpu.memory_space<vmem>>, vector<1x8x14xf32>
    %79 = vector.shape_cast %78 : vector<1x8x14xf32> to vector<8x14xf32>
    %80 = vector.broadcast %1 : f32 to vector<8x14xf32>
    %81 = arith.subf %79, %80 : vector<8x14xf32>
    %82 = arith.mulf %81, %81 : vector<8x14xf32>
    %83 = arith.addf %64, %82 : vector<8x14xf32>
    %84 = vector.broadcast %4 : f32 to vector<8x14xf32>
    %85 = arith.subf %79, %84 : vector<8x14xf32>
    %86 = arith.mulf %85, %85 : vector<8x14xf32>
    %87 = arith.addf %68, %86 : vector<8x14xf32>
    %88 = vector.broadcast %7 : f32 to vector<8x14xf32>
    %89 = arith.subf %79, %88 : vector<8x14xf32>
    %90 = arith.mulf %89, %89 : vector<8x14xf32>
    %91 = arith.addf %72, %90 : vector<8x14xf32>
    %92 = vector.broadcast %10 : f32 to vector<8x14xf32>
    %93 = arith.subf %79, %92 : vector<8x14xf32>
    %94 = arith.mulf %93, %93 : vector<8x14xf32>
    %95 = arith.addf %76, %94 : vector<8x14xf32>
    %c0_11 = arith.constant 0 : index
    %96 = arith.index_cast %49 : i32 to index
    %c2_12 = arith.constant 2 : index
    %97 = vector.load %arg1[%c0_11, %96, %c2_12] : memref<4x8x16xf32, #tpu.memory_space<vmem>>, vector<1x8x14xf32>
    %98 = vector.shape_cast %97 : vector<1x8x14xf32> to vector<8x14xf32>
    %99 = vector.broadcast %2 : f32 to vector<8x14xf32>
    %100 = arith.subf %98, %99 : vector<8x14xf32>
    %101 = arith.mulf %100, %100 : vector<8x14xf32>
    %102 = arith.addf %83, %101 : vector<8x14xf32>
    %103 = vector.broadcast %5 : f32 to vector<8x14xf32>
    %104 = arith.subf %98, %103 : vector<8x14xf32>
    %105 = arith.mulf %104, %104 : vector<8x14xf32>
    %106 = arith.addf %87, %105 : vector<8x14xf32>
    %107 = vector.broadcast %8 : f32 to vector<8x14xf32>
    %108 = arith.subf %98, %107 : vector<8x14xf32>
    %109 = arith.mulf %108, %108 : vector<8x14xf32>
    %110 = arith.addf %91, %109 : vector<8x14xf32>
    %111 = vector.broadcast %11 : f32 to vector<8x14xf32>
    %112 = arith.subf %98, %111 : vector<8x14xf32>
    %113 = arith.mulf %112, %112 : vector<8x14xf32>
    %114 = arith.addf %95, %113 : vector<8x14xf32>
    %115 = math.sqrt %102 : vector<8x14xf32>
    %116 = arith.addf %50, %115 : vector<8x14xf32>
    %117 = math.sqrt %106 : vector<8x14xf32>
    %118 = arith.addf %51, %117 : vector<8x14xf32>
    %119 = math.sqrt %110 : vector<8x14xf32>
    %120 = arith.addf %52, %119 : vector<8x14xf32>
    %121 = math.sqrt %114 : vector<8x14xf32>
    %122 = arith.addf %53, %121 : vector<8x14xf32>
    %cst_13 = arith.constant 0.000000e+00 : f32
    %123 = vector.broadcast %cst_13 : f32 to vector<8x14xf32>
    %cst_14 = arith.constant 0.000000e+00 : f32
    %124 = vector.broadcast %cst_14 : f32 to vector<8x14xf32>
    %cst_15 = arith.constant 0.000000e+00 : f32
    %125 = vector.broadcast %cst_15 : f32 to vector<8x14xf32>
    %cst_16 = arith.constant 0.000000e+00 : f32
    %126 = vector.broadcast %cst_16 : f32 to vector<8x14xf32>
    %c1_17 = arith.constant 1 : index
    %127 = arith.index_cast %49 : i32 to index
    %c0_18 = arith.constant 0 : index
    %128 = vector.load %arg1[%c1_17, %127, %c0_18] : memref<4x8x16xf32, #tpu.memory_space<vmem>>, vector<1x8x14xf32>
    %129 = vector.shape_cast %128 : vector<1x8x14xf32> to vector<8x14xf32>
    %130 = vector.broadcast %12 : f32 to vector<8x14xf32>
    %131 = arith.subf %129, %130 : vector<8x14xf32>
    %132 = arith.mulf %131, %131 : vector<8x14xf32>
    %133 = arith.addf %123, %132 : vector<8x14xf32>
    %134 = vector.broadcast %15 : f32 to vector<8x14xf32>
    %135 = arith.subf %129, %134 : vector<8x14xf32>
    %136 = arith.mulf %135, %135 : vector<8x14xf32>
    %137 = arith.addf %124, %136 : vector<8x14xf32>
    %138 = vector.broadcast %18 : f32 to vector<8x14xf32>
    %139 = arith.subf %129, %138 : vector<8x14xf32>
    %140 = arith.mulf %139, %139 : vector<8x14xf32>
    %141 = arith.addf %125, %140 : vector<8x14xf32>
    %142 = vector.broadcast %21 : f32 to vector<8x14xf32>
    %143 = arith.subf %129, %142 : vector<8x14xf32>
    %144 = arith.mulf %143, %143 : vector<8x14xf32>
    %145 = arith.addf %126, %144 : vector<8x14xf32>
    %c1_19 = arith.constant 1 : index
    %146 = arith.index_cast %49 : i32 to index
    %c1_20 = arith.constant 1 : index
    %147 = vector.load %arg1[%c1_19, %146, %c1_20] : memref<4x8x16xf32, #tpu.memory_space<vmem>>, vector<1x8x14xf32>
    %148 = vector.shape_cast %147 : vector<1x8x14xf32> to vector<8x14xf32>
    %149 = vector.broadcast %13 : f32 to vector<8x14xf32>
    %150 = arith.subf %148, %149 : vector<8x14xf32>
    %151 = arith.mulf %150, %150 : vector<8x14xf32>
    %152 = arith.addf %133, %151 : vector<8x14xf32>
    %153 = vector.broadcast %16 : f32 to vector<8x14xf32>
    %154 = arith.subf %148, %153 : vector<8x14xf32>
    %155 = arith.mulf %154, %154 : vector<8x14xf32>
    %156 = arith.addf %137, %155 : vector<8x14xf32>
    %157 = vector.broadcast %19 : f32 to vector<8x14xf32>
    %158 = arith.subf %148, %157 : vector<8x14xf32>
    %159 = arith.mulf %158, %158 : vector<8x14xf32>
    %160 = arith.addf %141, %159 : vector<8x14xf32>
    %161 = vector.broadcast %22 : f32 to vector<8x14xf32>
    %162 = arith.subf %148, %161 : vector<8x14xf32>
    %163 = arith.mulf %162, %162 : vector<8x14xf32>
    %164 = arith.addf %145, %163 : vector<8x14xf32>
    %c1_21 = arith.constant 1 : index
    %165 = arith.index_cast %49 : i32 to index
    %c2_22 = arith.constant 2 : index
    %166 = vector.load %arg1[%c1_21, %165, %c2_22] : memref<4x8x16xf32, #tpu.memory_space<vmem>>, vector<1x8x14xf32>
    %167 = vector.shape_cast %166 : vector<1x8x14xf32> to vector<8x14xf32>
    %168 = vector.broadcast %14 : f32 to vector<8x14xf32>
    %169 = arith.subf %167, %168 : vector<8x14xf32>
    %170 = arith.mulf %169, %169 : vector<8x14xf32>
    %171 = arith.addf %152, %170 : vector<8x14xf32>
    %172 = vector.broadcast %17 : f32 to vector<8x14xf32>
    %173 = arith.subf %167, %172 : vector<8x14xf32>
    %174 = arith.mulf %173, %173 : vector<8x14xf32>
    %175 = arith.addf %156, %174 : vector<8x14xf32>
    %176 = vector.broadcast %20 : f32 to vector<8x14xf32>
    %177 = arith.subf %167, %176 : vector<8x14xf32>
    %178 = arith.mulf %177, %177 : vector<8x14xf32>
    %179 = arith.addf %160, %178 : vector<8x14xf32>
    %180 = vector.broadcast %23 : f32 to vector<8x14xf32>
    %181 = arith.subf %167, %180 : vector<8x14xf32>
    %182 = arith.mulf %181, %181 : vector<8x14xf32>
    %183 = arith.addf %164, %182 : vector<8x14xf32>
    %184 = math.sqrt %171 : vector<8x14xf32>
    %185 = arith.addf %116, %184 : vector<8x14xf32>
    %186 = math.sqrt %175 : vector<8x14xf32>
    %187 = arith.addf %118, %186 : vector<8x14xf32>
    %188 = math.sqrt %179 : vector<8x14xf32>
    %189 = arith.addf %120, %188 : vector<8x14xf32>
    %190 = math.sqrt %183 : vector<8x14xf32>
    %191 = arith.addf %122, %190 : vector<8x14xf32>
    %cst_23 = arith.constant 0.000000e+00 : f32
    %192 = vector.broadcast %cst_23 : f32 to vector<8x14xf32>
    %cst_24 = arith.constant 0.000000e+00 : f32
    %193 = vector.broadcast %cst_24 : f32 to vector<8x14xf32>
    %cst_25 = arith.constant 0.000000e+00 : f32
    %194 = vector.broadcast %cst_25 : f32 to vector<8x14xf32>
    %cst_26 = arith.constant 0.000000e+00 : f32
    %195 = vector.broadcast %cst_26 : f32 to vector<8x14xf32>
    %c2_27 = arith.constant 2 : index
    %196 = arith.index_cast %49 : i32 to index
    %c0_28 = arith.constant 0 : index
    %197 = vector.load %arg1[%c2_27, %196, %c0_28] : memref<4x8x16xf32, #tpu.memory_space<vmem>>, vector<1x8x14xf32>
    %198 = vector.shape_cast %197 : vector<1x8x14xf32> to vector<8x14xf32>
    %199 = vector.broadcast %24 : f32 to vector<8x14xf32>
    %200 = arith.subf %198, %199 : vector<8x14xf32>
    %201 = arith.mulf %200, %200 : vector<8x14xf32>
    %202 = arith.addf %192, %201 : vector<8x14xf32>
    %203 = vector.broadcast %27 : f32 to vector<8x14xf32>
    %204 = arith.subf %198, %203 : vector<8x14xf32>
    %205 = arith.mulf %204, %204 : vector<8x14xf32>
    %206 = arith.addf %193, %205 : vector<8x14xf32>
    %207 = vector.broadcast %30 : f32 to vector<8x14xf32>
    %208 = arith.subf %198, %207 : vector<8x14xf32>
    %209 = arith.mulf %208, %208 : vector<8x14xf32>
    %210 = arith.addf %194, %209 : vector<8x14xf32>
    %211 = vector.broadcast %33 : f32 to vector<8x14xf32>
    %212 = arith.subf %198, %211 : vector<8x14xf32>
    %213 = arith.mulf %212, %212 : vector<8x14xf32>
    %214 = arith.addf %195, %213 : vector<8x14xf32>
    %c2_29 = arith.constant 2 : index
    %215 = arith.index_cast %49 : i32 to index
    %c1_30 = arith.constant 1 : index
    %216 = vector.load %arg1[%c2_29, %215, %c1_30] : memref<4x8x16xf32, #tpu.memory_space<vmem>>, vector<1x8x14xf32>
    %217 = vector.shape_cast %216 : vector<1x8x14xf32> to vector<8x14xf32>
    %218 = vector.broadcast %25 : f32 to vector<8x14xf32>
    %219 = arith.subf %217, %218 : vector<8x14xf32>
    %220 = arith.mulf %219, %219 : vector<8x14xf32>
    %221 = arith.addf %202, %220 : vector<8x14xf32>
    %222 = vector.broadcast %28 : f32 to vector<8x14xf32>
    %223 = arith.subf %217, %222 : vector<8x14xf32>
    %224 = arith.mulf %223, %223 : vector<8x14xf32>
    %225 = arith.addf %206, %224 : vector<8x14xf32>
    %226 = vector.broadcast %31 : f32 to vector<8x14xf32>
    %227 = arith.subf %217, %226 : vector<8x14xf32>
    %228 = arith.mulf %227, %227 : vector<8x14xf32>
    %229 = arith.addf %210, %228 : vector<8x14xf32>
    %230 = vector.broadcast %34 : f32 to vector<8x14xf32>
    %231 = arith.subf %217, %230 : vector<8x14xf32>
    %232 = arith.mulf %231, %231 : vector<8x14xf32>
    %233 = arith.addf %214, %232 : vector<8x14xf32>
    %c2_31 = arith.constant 2 : index
    %234 = arith.index_cast %49 : i32 to index
    %c2_32 = arith.constant 2 : index
    %235 = vector.load %arg1[%c2_31, %234, %c2_32] : memref<4x8x16xf32, #tpu.memory_space<vmem>>, vector<1x8x14xf32>
    %236 = vector.shape_cast %235 : vector<1x8x14xf32> to vector<8x14xf32>
    %237 = vector.broadcast %26 : f32 to vector<8x14xf32>
    %238 = arith.subf %236, %237 : vector<8x14xf32>
    %239 = arith.mulf %238, %238 : vector<8x14xf32>
    %240 = arith.addf %221, %239 : vector<8x14xf32>
    %241 = vector.broadcast %29 : f32 to vector<8x14xf32>
    %242 = arith.subf %236, %241 : vector<8x14xf32>
    %243 = arith.mulf %242, %242 : vector<8x14xf32>
    %244 = arith.addf %225, %243 : vector<8x14xf32>
    %245 = vector.broadcast %32 : f32 to vector<8x14xf32>
    %246 = arith.subf %236, %245 : vector<8x14xf32>
    %247 = arith.mulf %246, %246 : vector<8x14xf32>
    %248 = arith.addf %229, %247 : vector<8x14xf32>
    %249 = vector.broadcast %35 : f32 to vector<8x14xf32>
    %250 = arith.subf %236, %249 : vector<8x14xf32>
    %251 = arith.mulf %250, %250 : vector<8x14xf32>
    %252 = arith.addf %233, %251 : vector<8x14xf32>
    %253 = math.sqrt %240 : vector<8x14xf32>
    %254 = arith.addf %185, %253 : vector<8x14xf32>
    %255 = math.sqrt %244 : vector<8x14xf32>
    %256 = arith.addf %187, %255 : vector<8x14xf32>
    %257 = math.sqrt %248 : vector<8x14xf32>
    %258 = arith.addf %189, %257 : vector<8x14xf32>
    %259 = math.sqrt %252 : vector<8x14xf32>
    %260 = arith.addf %191, %259 : vector<8x14xf32>
    %cst_33 = arith.constant 0.000000e+00 : f32
    %261 = vector.broadcast %cst_33 : f32 to vector<8x14xf32>
    %cst_34 = arith.constant 0.000000e+00 : f32
    %262 = vector.broadcast %cst_34 : f32 to vector<8x14xf32>
    %cst_35 = arith.constant 0.000000e+00 : f32
    %263 = vector.broadcast %cst_35 : f32 to vector<8x14xf32>
    %cst_36 = arith.constant 0.000000e+00 : f32
    %264 = vector.broadcast %cst_36 : f32 to vector<8x14xf32>
    %c3_37 = arith.constant 3 : index
    %265 = arith.index_cast %49 : i32 to index
    %c0_38 = arith.constant 0 : index
    %266 = vector.load %arg1[%c3_37, %265, %c0_38] : memref<4x8x16xf32, #tpu.memory_space<vmem>>, vector<1x8x14xf32>
    %267 = vector.shape_cast %266 : vector<1x8x14xf32> to vector<8x14xf32>
    %268 = vector.broadcast %36 : f32 to vector<8x14xf32>
    %269 = arith.subf %267, %268 : vector<8x14xf32>
    %270 = arith.mulf %269, %269 : vector<8x14xf32>
    %271 = arith.addf %261, %270 : vector<8x14xf32>
    %272 = vector.broadcast %39 : f32 to vector<8x14xf32>
    %273 = arith.subf %267, %272 : vector<8x14xf32>
    %274 = arith.mulf %273, %273 : vector<8x14xf32>
    %275 = arith.addf %262, %274 : vector<8x14xf32>
    %276 = vector.broadcast %42 : f32 to vector<8x14xf32>
    %277 = arith.subf %267, %276 : vector<8x14xf32>
    %278 = arith.mulf %277, %277 : vector<8x14xf32>
    %279 = arith.addf %263, %278 : vector<8x14xf32>
    %280 = vector.broadcast %45 : f32 to vector<8x14xf32>
    %281 = arith.subf %267, %280 : vector<8x14xf32>
    %282 = arith.mulf %281, %281 : vector<8x14xf32>
    %283 = arith.addf %264, %282 : vector<8x14xf32>
    %c3_39 = arith.constant 3 : index
    %284 = arith.index_cast %49 : i32 to index
    %c1_40 = arith.constant 1 : index
    %285 = vector.load %arg1[%c3_39, %284, %c1_40] : memref<4x8x16xf32, #tpu.memory_space<vmem>>, vector<1x8x14xf32>
    %286 = vector.shape_cast %285 : vector<1x8x14xf32> to vector<8x14xf32>
    %287 = vector.broadcast %37 : f32 to vector<8x14xf32>
    %288 = arith.subf %286, %287 : vector<8x14xf32>
    %289 = arith.mulf %288, %288 : vector<8x14xf32>
    %290 = arith.addf %271, %289 : vector<8x14xf32>
    %291 = vector.broadcast %40 : f32 to vector<8x14xf32>
    %292 = arith.subf %286, %291 : vector<8x14xf32>
    %293 = arith.mulf %292, %292 : vector<8x14xf32>
    %294 = arith.addf %275, %293 : vector<8x14xf32>
    %295 = vector.broadcast %43 : f32 to vector<8x14xf32>
    %296 = arith.subf %286, %295 : vector<8x14xf32>
    %297 = arith.mulf %296, %296 : vector<8x14xf32>
    %298 = arith.addf %279, %297 : vector<8x14xf32>
    %299 = vector.broadcast %46 : f32 to vector<8x14xf32>
    %300 = arith.subf %286, %299 : vector<8x14xf32>
    %301 = arith.mulf %300, %300 : vector<8x14xf32>
    %302 = arith.addf %283, %301 : vector<8x14xf32>
    %c3_41 = arith.constant 3 : index
    %303 = arith.index_cast %49 : i32 to index
    %c2_42 = arith.constant 2 : index
    %304 = vector.load %arg1[%c3_41, %303, %c2_42] : memref<4x8x16xf32, #tpu.memory_space<vmem>>, vector<1x8x14xf32>
    %305 = vector.shape_cast %304 : vector<1x8x14xf32> to vector<8x14xf32>
    %306 = vector.broadcast %38 : f32 to vector<8x14xf32>
    %307 = arith.subf %305, %306 : vector<8x14xf32>
    %308 = arith.mulf %307, %307 : vector<8x14xf32>
    %309 = arith.addf %290, %308 : vector<8x14xf32>
    %310 = vector.broadcast %41 : f32 to vector<8x14xf32>
    %311 = arith.subf %305, %310 : vector<8x14xf32>
    %312 = arith.mulf %311, %311 : vector<8x14xf32>
    %313 = arith.addf %294, %312 : vector<8x14xf32>
    %314 = vector.broadcast %44 : f32 to vector<8x14xf32>
    %315 = arith.subf %305, %314 : vector<8x14xf32>
    %316 = arith.mulf %315, %315 : vector<8x14xf32>
    %317 = arith.addf %298, %316 : vector<8x14xf32>
    %318 = vector.broadcast %47 : f32 to vector<8x14xf32>
    %319 = arith.subf %305, %318 : vector<8x14xf32>
    %320 = arith.mulf %319, %319 : vector<8x14xf32>
    %321 = arith.addf %302, %320 : vector<8x14xf32>
    %322 = math.sqrt %309 : vector<8x14xf32>
    %323 = arith.addf %254, %322 : vector<8x14xf32>
    %324 = math.sqrt %313 : vector<8x14xf32>
    %325 = arith.addf %256, %324 : vector<8x14xf32>
    %326 = math.sqrt %317 : vector<8x14xf32>
    %327 = arith.addf %258, %326 : vector<8x14xf32>
    %328 = math.sqrt %321 : vector<8x14xf32>
    %329 = arith.addf %260, %328 : vector<8x14xf32>
    %cst_43 = arith.constant dense<0x7F800000> : vector<8xf32>
    %330 = vector.multi_reduction <minimumf>, %323, %cst_43 [1] : vector<8x14xf32> to vector<8xf32>
    %331 = vector.shape_cast %330 : vector<8xf32> to vector<8x1xf32>
    %cst_44 = arith.constant dense<0x7F800000> : vector<8xf32>
    %332 = vector.multi_reduction <minimumf>, %325, %cst_44 [1] : vector<8x14xf32> to vector<8xf32>
    %333 = vector.shape_cast %332 : vector<8xf32> to vector<8x1xf32>
    %cst_45 = arith.constant dense<0x7F800000> : vector<8xf32>
    %334 = vector.multi_reduction <minimumf>, %327, %cst_45 [1] : vector<8x14xf32> to vector<8xf32>
    %335 = vector.shape_cast %334 : vector<8xf32> to vector<8x1xf32>
    %cst_46 = arith.constant dense<0x7F800000> : vector<8xf32>
    %336 = vector.multi_reduction <minimumf>, %329, %cst_46 [1] : vector<8x14xf32> to vector<8xf32>
    %337 = vector.shape_cast %336 : vector<8xf32> to vector<8x1xf32>
    %338 = arith.index_cast %49 : i32 to index
    %c0_47 = arith.constant 0 : index
    %339 = vector.load %arg4[%338, %c0_47] : memref<8x10xf32, #tpu.memory_space<vmem>>, vector<8x1xf32>
    tpu.vector_store %arg4[%338, %c0_47], %331 {strides = array<i32>} : memref<8x10xf32, #tpu.memory_space<vmem>>, vector<8x1xf32>,
    %340 = arith.index_cast %49 : i32 to index
    %c1_48 = arith.constant 1 : index
    %341 = vector.load %arg4[%340, %c1_48] : memref<8x10xf32, #tpu.memory_space<vmem>>, vector<8x1xf32>
    tpu.vector_store %arg4[%340, %c1_48], %333 {strides = array<i32>} : memref<8x10xf32, #tpu.memory_space<vmem>>, vector<8x1xf32>,
    %342 = arith.index_cast %49 : i32 to index
    %c2_49 = arith.constant 2 : index
    %343 = vector.load %arg4[%342, %c2_49] : memref<8x10xf32, #tpu.memory_space<vmem>>, vector<8x1xf32>
    tpu.vector_store %arg4[%342, %c2_49], %335 {strides = array<i32>} : memref<8x10xf32, #tpu.memory_space<vmem>>, vector<8x1xf32>,
    %344 = arith.index_cast %49 : i32 to index
    %c3_50 = arith.constant 3 : index
    %345 = vector.load %arg4[%344, %c3_50] : memref<8x10xf32, #tpu.memory_space<vmem>>, vector<8x1xf32>
    tpu.vector_store %arg4[%344, %c3_50], %337 {strides = array<i32>} : memref<8x10xf32, #tpu.memory_space<vmem>>, vector<8x1xf32>,
    %c1_i32 = arith.constant 1 : i32
    %c0_51 = arith.constant 0 : index
    %346 = memref.load %arg3[%c0_51] : memref<120xf32, #tpu.memory_space<smem>>
    %c1_52 = arith.constant 1 : index
    %347 = memref.load %arg3[%c1_52] : memref<120xf32, #tpu.memory_space<smem>>
    %c2_53 = arith.constant 2 : index
    %348 = memref.load %arg3[%c2_53] : memref<120xf32, #tpu.memory_space<smem>>
    %c3_54 = arith.constant 3 : index
    %349 = memref.load %arg3[%c3_54] : memref<120xf32, #tpu.memory_space<smem>>
    %c4_55 = arith.constant 4 : index
    %350 = memref.load %arg3[%c4_55] : memref<120xf32, #tpu.memory_space<smem>>
    %c5_56 = arith.constant 5 : index
    %351 = memref.load %arg3[%c5_56] : memref<120xf32, #tpu.memory_space<smem>>
    %c6_57 = arith.constant 6 : index
    %352 = memref.load %arg3[%c6_57] : memref<120xf32, #tpu.memory_space<smem>>
    %c7_58 = arith.constant 7 : index
    %353 = memref.load %arg3[%c7_58] : memref<120xf32, #tpu.memory_space<smem>>
    %c8_59 = arith.constant 8 : index
    %354 = memref.load %arg3[%c8_59] : memref<120xf32, #tpu.memory_space<smem>>
    %c9_60 = arith.constant 9 : index
    %355 = memref.load %arg3[%c9_60] : memref<120xf32, #tpu.memory_space<smem>>
    %c10_61 = arith.constant 10 : index
    %356 = memref.load %arg3[%c10_61] : memref<120xf32, #tpu.memory_space<smem>>
    %c11_62 = arith.constant 11 : index
    %357 = memref.load %arg3[%c11_62] : memref<120xf32, #tpu.memory_space<smem>>
    %c12_63 = arith.constant 12 : index
    %358 = memref.load %arg3[%c12_63] : memref<120xf32, #tpu.memory_space<smem>>
    %c13_64 = arith.constant 13 : index
    %359 = memref.load %arg3[%c13_64] : memref<120xf32, #tpu.memory_space<smem>>
    %c14_65 = arith.constant 14 : index
    %360 = memref.load %arg3[%c14_65] : memref<120xf32, #tpu.memory_space<smem>>
    %c15_66 = arith.constant 15 : index
    %361 = memref.load %arg3[%c15_66] : memref<120xf32, #tpu.memory_space<smem>>
    %c16_67 = arith.constant 16 : index
    %362 = memref.load %arg3[%c16_67] : memref<120xf32, #tpu.memory_space<smem>>
    %c17_68 = arith.constant 17 : index
    %363 = memref.load %arg3[%c17_68] : memref<120xf32, #tpu.memory_space<smem>>
    %c18_69 = arith.constant 18 : index
    %364 = memref.load %arg3[%c18_69] : memref<120xf32, #tpu.memory_space<smem>>
    %c19_70 = arith.constant 19 : index
    %365 = memref.load %arg3[%c19_70] : memref<120xf32, #tpu.memory_space<smem>>
    %c20_71 = arith.constant 20 : index
    %366 = memref.load %arg3[%c20_71] : memref<120xf32, #tpu.memory_space<smem>>
    %c21_72 = arith.constant 21 : index
    %367 = memref.load %arg3[%c21_72] : memref<120xf32, #tpu.memory_space<smem>>
    %c22_73 = arith.constant 22 : index
    %368 = memref.load %arg3[%c22_73] : memref<120xf32, #tpu.memory_space<smem>>
    %c23_74 = arith.constant 23 : index
    %369 = memref.load %arg3[%c23_74] : memref<120xf32, #tpu.memory_space<smem>>
    %c24_75 = arith.constant 24 : index
    %370 = memref.load %arg3[%c24_75] : memref<120xf32, #tpu.memory_space<smem>>
    %c25_76 = arith.constant 25 : index
    %371 = memref.load %arg3[%c25_76] : memref<120xf32, #tpu.memory_space<smem>>
    %c26_77 = arith.constant 26 : index
    %372 = memref.load %arg3[%c26_77] : memref<120xf32, #tpu.memory_space<smem>>
    %c27_78 = arith.constant 27 : index
    %373 = memref.load %arg3[%c27_78] : memref<120xf32, #tpu.memory_space<smem>>
    %c28_79 = arith.constant 28 : index
    %374 = memref.load %arg3[%c28_79] : memref<120xf32, #tpu.memory_space<smem>>
    %c29_80 = arith.constant 29 : index
    %375 = memref.load %arg3[%c29_80] : memref<120xf32, #tpu.memory_space<smem>>
    %c30_81 = arith.constant 30 : index
    %376 = memref.load %arg3[%c30_81] : memref<120xf32, #tpu.memory_space<smem>>
    %c31_82 = arith.constant 31 : index
    %377 = memref.load %arg3[%c31_82] : memref<120xf32, #tpu.memory_space<smem>>
    %c32_83 = arith.constant 32 : index
    %378 = memref.load %arg3[%c32_83] : memref<120xf32, #tpu.memory_space<smem>>
    %c33_84 = arith.constant 33 : index
    %379 = memref.load %arg3[%c33_84] : memref<120xf32, #tpu.memory_space<smem>>
    %c34_85 = arith.constant 34 : index
    %380 = memref.load %arg3[%c34_85] : memref<120xf32, #tpu.memory_space<smem>>
    %c35_86 = arith.constant 35 : index
    %381 = memref.load %arg3[%c35_86] : memref<120xf32, #tpu.memory_space<smem>>
    %c36_87 = arith.constant 36 : index
    %382 = memref.load %arg3[%c36_87] : memref<120xf32, #tpu.memory_space<smem>>
    %c37_88 = arith.constant 37 : index
    %383 = memref.load %arg3[%c37_88] : memref<120xf32, #tpu.memory_space<smem>>
    %c38_89 = arith.constant 38 : index
    %384 = memref.load %arg3[%c38_89] : memref<120xf32, #tpu.memory_space<smem>>
    %c39_90 = arith.constant 39 : index
    %385 = memref.load %arg3[%c39_90] : memref<120xf32, #tpu.memory_space<smem>>
    %c40_91 = arith.constant 40 : index
    %386 = memref.load %arg3[%c40_91] : memref<120xf32, #tpu.memory_space<smem>>
    %c41_92 = arith.constant 41 : index
    %387 = memref.load %arg3[%c41_92] : memref<120xf32, #tpu.memory_space<smem>>
    %c42_93 = arith.constant 42 : index
    %388 = memref.load %arg3[%c42_93] : memref<120xf32, #tpu.memory_space<smem>>
    %c43_94 = arith.constant 43 : index
    %389 = memref.load %arg3[%c43_94] : memref<120xf32, #tpu.memory_space<smem>>
    %c44_95 = arith.constant 44 : index
    %390 = memref.load %arg3[%c44_95] : memref<120xf32, #tpu.memory_space<smem>>
    %c45_96 = arith.constant 45 : index
    %391 = memref.load %arg3[%c45_96] : memref<120xf32, #tpu.memory_space<smem>>
    %c46_97 = arith.constant 46 : index
    %392 = memref.load %arg3[%c46_97] : memref<120xf32, #tpu.memory_space<smem>>
    %c47_98 = arith.constant 47 : index
    %393 = memref.load %arg3[%c47_98] : memref<120xf32, #tpu.memory_space<smem>>
    %c48 = arith.constant 48 : index
    %394 = memref.load %arg3[%c48] : memref<120xf32, #tpu.memory_space<smem>>
    %c49 = arith.constant 49 : index
    %395 = memref.load %arg3[%c49] : memref<120xf32, #tpu.memory_space<smem>>
    %c50 = arith.constant 50 : index
    %396 = memref.load %arg3[%c50] : memref<120xf32, #tpu.memory_space<smem>>
    %c51 = arith.constant 51 : index
    %397 = memref.load %arg3[%c51] : memref<120xf32, #tpu.memory_space<smem>>
    %c52 = arith.constant 52 : index
    %398 = memref.load %arg3[%c52] : memref<120xf32, #tpu.memory_space<smem>>
    %c53 = arith.constant 53 : index
    %399 = memref.load %arg3[%c53] : memref<120xf32, #tpu.memory_space<smem>>
    %c54 = arith.constant 54 : index
    %400 = memref.load %arg3[%c54] : memref<120xf32, #tpu.memory_space<smem>>
    %c55 = arith.constant 55 : index
    %401 = memref.load %arg3[%c55] : memref<120xf32, #tpu.memory_space<smem>>
    %c56 = arith.constant 56 : index
    %402 = memref.load %arg3[%c56] : memref<120xf32, #tpu.memory_space<smem>>
    %c57 = arith.constant 57 : index
    %403 = memref.load %arg3[%c57] : memref<120xf32, #tpu.memory_space<smem>>
    %c58 = arith.constant 58 : index
    %404 = memref.load %arg3[%c58] : memref<120xf32, #tpu.memory_space<smem>>
    %c59 = arith.constant 59 : index
    %405 = memref.load %arg3[%c59] : memref<120xf32, #tpu.memory_space<smem>>
    %c60 = arith.constant 60 : index
    %406 = memref.load %arg3[%c60] : memref<120xf32, #tpu.memory_space<smem>>
    %c61 = arith.constant 61 : index
    %407 = memref.load %arg3[%c61] : memref<120xf32, #tpu.memory_space<smem>>
    %c62 = arith.constant 62 : index
    %408 = memref.load %arg3[%c62] : memref<120xf32, #tpu.memory_space<smem>>
    %c63 = arith.constant 63 : index
    %409 = memref.load %arg3[%c63] : memref<120xf32, #tpu.memory_space<smem>>
    %c64 = arith.constant 64 : index
    %410 = memref.load %arg3[%c64] : memref<120xf32, #tpu.memory_space<smem>>
    %c65 = arith.constant 65 : index
    %411 = memref.load %arg3[%c65] : memref<120xf32, #tpu.memory_space<smem>>
    %c66 = arith.constant 66 : index
    %412 = memref.load %arg3[%c66] : memref<120xf32, #tpu.memory_space<smem>>
    %c67 = arith.constant 67 : index
    %413 = memref.load %arg3[%c67] : memref<120xf32, #tpu.memory_space<smem>>
    %c68 = arith.constant 68 : index
    %414 = memref.load %arg3[%c68] : memref<120xf32, #tpu.memory_space<smem>>
    %c69 = arith.constant 69 : index
    %415 = memref.load %arg3[%c69] : memref<120xf32, #tpu.memory_space<smem>>
    %c70 = arith.constant 70 : index
    %416 = memref.load %arg3[%c70] : memref<120xf32, #tpu.memory_space<smem>>
    %c71 = arith.constant 71 : index
    %417 = memref.load %arg3[%c71] : memref<120xf32, #tpu.memory_space<smem>>
    %c72 = arith.constant 72 : index
    %418 = memref.load %arg3[%c72] : memref<120xf32, #tpu.memory_space<smem>>
    %c73 = arith.constant 73 : index
    %419 = memref.load %arg3[%c73] : memref<120xf32, #tpu.memory_space<smem>>
    %c74 = arith.constant 74 : index
    %420 = memref.load %arg3[%c74] : memref<120xf32, #tpu.memory_space<smem>>
    %c75 = arith.constant 75 : index
    %421 = memref.load %arg3[%c75] : memref<120xf32, #tpu.memory_space<smem>>
    %c76 = arith.constant 76 : index
    %422 = memref.load %arg3[%c76] : memref<120xf32, #tpu.memory_space<smem>>
    %c77 = arith.constant 77 : index
    %423 = memref.load %arg3[%c77] : memref<120xf32, #tpu.memory_space<smem>>
    %c78 = arith.constant 78 : index
    %424 = memref.load %arg3[%c78] : memref<120xf32, #tpu.memory_space<smem>>
    %c79 = arith.constant 79 : index
    %425 = memref.load %arg3[%c79] : memref<120xf32, #tpu.memory_space<smem>>
    %c80 = arith.constant 80 : index
    %426 = memref.load %arg3[%c80] : memref<120xf32, #tpu.memory_space<smem>>
    %c81 = arith.constant 81 : index
    %427 = memref.load %arg3[%c81] : memref<120xf32, #tpu.memory_space<smem>>
    %c82 = arith.constant 82 : index
    %428 = memref.load %arg3[%c82] : memref<120xf32, #tpu.memory_space<smem>>
    %c83 = arith.constant 83 : index
    %429 = memref.load %arg3[%c83] : memref<120xf32, #tpu.memory_space<smem>>
    %c84 = arith.constant 84 : index
    %430 = memref.load %arg3[%c84] : memref<120xf32, #tpu.memory_space<smem>>
    %c85 = arith.constant 85 : index
    %431 = memref.load %arg3[%c85] : memref<120xf32, #tpu.memory_space<smem>>
    %c86 = arith.constant 86 : index
    %432 = memref.load %arg3[%c86] : memref<120xf32, #tpu.memory_space<smem>>
    %c87 = arith.constant 87 : index
    %433 = memref.load %arg3[%c87] : memref<120xf32, #tpu.memory_space<smem>>
    %c88 = arith.constant 88 : index
    %434 = memref.load %arg3[%c88] : memref<120xf32, #tpu.memory_space<smem>>
    %c89 = arith.constant 89 : index
    %435 = memref.load %arg3[%c89] : memref<120xf32, #tpu.memory_space<smem>>
    %c90 = arith.constant 90 : index
    %436 = memref.load %arg3[%c90] : memref<120xf32, #tpu.memory_space<smem>>
    %c91 = arith.constant 91 : index
    %437 = memref.load %arg3[%c91] : memref<120xf32, #tpu.memory_space<smem>>
    %c92 = arith.constant 92 : index
    %438 = memref.load %arg3[%c92] : memref<120xf32, #tpu.memory_space<smem>>
    %c93 = arith.constant 93 : index
    %439 = memref.load %arg3[%c93] : memref<120xf32, #tpu.memory_space<smem>>
    %c94 = arith.constant 94 : index
    %440 = memref.load %arg3[%c94] : memref<120xf32, #tpu.memory_space<smem>>
    %c95 = arith.constant 95 : index
    %441 = memref.load %arg3[%c95] : memref<120xf32, #tpu.memory_space<smem>>
    %c96 = arith.constant 96 : index
    %442 = memref.load %arg3[%c96] : memref<120xf32, #tpu.memory_space<smem>>
    %c97 = arith.constant 97 : index
    %443 = memref.load %arg3[%c97] : memref<120xf32, #tpu.memory_space<smem>>
    %c98 = arith.constant 98 : index
    %444 = memref.load %arg3[%c98] : memref<120xf32, #tpu.memory_space<smem>>
    %c99 = arith.constant 99 : index
    %445 = memref.load %arg3[%c99] : memref<120xf32, #tpu.memory_space<smem>>
    %c100 = arith.constant 100 : index
    %446 = memref.load %arg3[%c100] : memref<120xf32, #tpu.memory_space<smem>>
    %c101 = arith.constant 101 : index
    %447 = memref.load %arg3[%c101] : memref<120xf32, #tpu.memory_space<smem>>
    %c102 = arith.constant 102 : index
    %448 = memref.load %arg3[%c102] : memref<120xf32, #tpu.memory_space<smem>>
    %c103 = arith.constant 103 : index
    %449 = memref.load %arg3[%c103] : memref<120xf32, #tpu.memory_space<smem>>
    %c104 = arith.constant 104 : index
    %450 = memref.load %arg3[%c104] : memref<120xf32, #tpu.memory_space<smem>>
    %c105 = arith.constant 105 : index
    %451 = memref.load %arg3[%c105] : memref<120xf32, #tpu.memory_space<smem>>
    %c106 = arith.constant 106 : index
    %452 = memref.load %arg3[%c106] : memref<120xf32, #tpu.memory_space<smem>>
    %c107 = arith.constant 107 : index
    %453 = memref.load %arg3[%c107] : memref<120xf32, #tpu.memory_space<smem>>
    %c108 = arith.constant 108 : index
    %454 = memref.load %arg3[%c108] : memref<120xf32, #tpu.memory_space<smem>>
    %c109 = arith.constant 109 : index
    %455 = memref.load %arg3[%c109] : memref<120xf32, #tpu.memory_space<smem>>
    %c110 = arith.constant 110 : index
    %456 = memref.load %arg3[%c110] : memref<120xf32, #tpu.memory_space<smem>>
    %c111 = arith.constant 111 : index
    %457 = memref.load %arg3[%c111] : memref<120xf32, #tpu.memory_space<smem>>
    %c112 = arith.constant 112 : index
    %458 = memref.load %arg3[%c112] : memref<120xf32, #tpu.memory_space<smem>>
    %c113 = arith.constant 113 : index
    %459 = memref.load %arg3[%c113] : memref<120xf32, #tpu.memory_space<smem>>
    %c114 = arith.constant 114 : index
    %460 = memref.load %arg3[%c114] : memref<120xf32, #tpu.memory_space<smem>>
    %c115 = arith.constant 115 : index
    %461 = memref.load %arg3[%c115] : memref<120xf32, #tpu.memory_space<smem>>
    %c116 = arith.constant 116 : index
    %462 = memref.load %arg3[%c116] : memref<120xf32, #tpu.memory_space<smem>>
    %c117 = arith.constant 117 : index
    %463 = memref.load %arg3[%c117] : memref<120xf32, #tpu.memory_space<smem>>
    %c118 = arith.constant 118 : index
    %464 = memref.load %arg3[%c118] : memref<120xf32, #tpu.memory_space<smem>>
    %c119 = arith.constant 119 : index
    %465 = memref.load %arg3[%c119] : memref<120xf32, #tpu.memory_space<smem>>
    %c0_i32_99 = arith.constant 0 : i32
    %c8_i32_100 = arith.constant 8 : i32
    %466 = arith.muli %c0_i32_99, %c8_i32_100 : i32
    %467 = tpu.assume_multiple %466, 8 : i32
    %cst_101 = arith.constant 0.000000e+00 : f32
    %468 = vector.broadcast %cst_101 : f32 to vector<8x12xf32>
    %cst_102 = arith.constant 0.000000e+00 : f32
    %469 = vector.broadcast %cst_102 : f32 to vector<8x12xf32>
    %cst_103 = arith.constant 0.000000e+00 : f32
    %470 = vector.broadcast %cst_103 : f32 to vector<8x12xf32>
    %cst_104 = arith.constant 0.000000e+00 : f32
    %471 = vector.broadcast %cst_104 : f32 to vector<8x12xf32>
    %cst_105 = arith.constant 0.000000e+00 : f32
    %472 = vector.broadcast %cst_105 : f32 to vector<8x12xf32>
    %cst_106 = arith.constant 0.000000e+00 : f32
    %473 = vector.broadcast %cst_106 : f32 to vector<8x12xf32>
    %cst_107 = arith.constant 0.000000e+00 : f32
    %474 = vector.broadcast %cst_107 : f32 to vector<8x12xf32>
    %cst_108 = arith.constant 0.000000e+00 : f32
    %475 = vector.broadcast %cst_108 : f32 to vector<8x12xf32>
    %cst_109 = arith.constant 0.000000e+00 : f32
    %476 = vector.broadcast %cst_109 : f32 to vector<8x12xf32>
    %cst_110 = arith.constant 0.000000e+00 : f32
    %477 = vector.broadcast %cst_110 : f32 to vector<8x12xf32>
    %cst_111 = arith.constant 0.000000e+00 : f32
    %478 = vector.broadcast %cst_111 : f32 to vector<8x12xf32>
    %cst_112 = arith.constant 0.000000e+00 : f32
    %479 = vector.broadcast %cst_112 : f32 to vector<8x12xf32>
    %c0_113 = arith.constant 0 : index
    %480 = arith.index_cast %467 : i32 to index
    %c0_114 = arith.constant 0 : index
    %481 = vector.load %arg1[%c0_113, %480, %c0_114] : memref<4x8x16xf32, #tpu.memory_space<vmem>>, vector<1x8x12xf32>
    %482 = vector.shape_cast %481 : vector<1x8x12xf32> to vector<8x12xf32>
    %483 = vector.broadcast %346 : f32 to vector<8x12xf32>
    %484 = arith.subf %482, %483 : vector<8x12xf32>
    %485 = arith.mulf %484, %484 : vector<8x12xf32>
    %486 = arith.addf %474, %485 : vector<8x12xf32>
    %487 = vector.broadcast %351 : f32 to vector<8x12xf32>
    %488 = arith.subf %482, %487 : vector<8x12xf32>
    %489 = arith.mulf %488, %488 : vector<8x12xf32>
    %490 = arith.addf %475, %489 : vector<8x12xf32>
    %491 = vector.broadcast %356 : f32 to vector<8x12xf32>
    %492 = arith.subf %482, %491 : vector<8x12xf32>
    %493 = arith.mulf %492, %492 : vector<8x12xf32>
    %494 = arith.addf %476, %493 : vector<8x12xf32>
    %495 = vector.broadcast %361 : f32 to vector<8x12xf32>
    %496 = arith.subf %482, %495 : vector<8x12xf32>
    %497 = arith.mulf %496, %496 : vector<8x12xf32>
    %498 = arith.addf %477, %497 : vector<8x12xf32>
    %499 = vector.broadcast %366 : f32 to vector<8x12xf32>
    %500 = arith.subf %482, %499 : vector<8x12xf32>
    %501 = arith.mulf %500, %500 : vector<8x12xf32>
    %502 = arith.addf %478, %501 : vector<8x12xf32>
    %503 = vector.broadcast %371 : f32 to vector<8x12xf32>
    %504 = arith.subf %482, %503 : vector<8x12xf32>
    %505 = arith.mulf %504, %504 : vector<8x12xf32>
    %506 = arith.addf %479, %505 : vector<8x12xf32>
    %c0_115 = arith.constant 0 : index
    %507 = arith.index_cast %467 : i32 to index
    %c1_116 = arith.constant 1 : index
    %508 = vector.load %arg1[%c0_115, %507, %c1_116] : memref<4x8x16xf32, #tpu.memory_space<vmem>>, vector<1x8x12xf32>
    %509 = vector.shape_cast %508 : vector<1x8x12xf32> to vector<8x12xf32>
    %510 = vector.broadcast %347 : f32 to vector<8x12xf32>
    %511 = arith.subf %509, %510 : vector<8x12xf32>
    %512 = arith.mulf %511, %511 : vector<8x12xf32>
    %513 = arith.addf %486, %512 : vector<8x12xf32>
    %514 = vector.broadcast %352 : f32 to vector<8x12xf32>
    %515 = arith.subf %509, %514 : vector<8x12xf32>
    %516 = arith.mulf %515, %515 : vector<8x12xf32>
    %517 = arith.addf %490, %516 : vector<8x12xf32>
    %518 = vector.broadcast %357 : f32 to vector<8x12xf32>
    %519 = arith.subf %509, %518 : vector<8x12xf32>
    %520 = arith.mulf %519, %519 : vector<8x12xf32>
    %521 = arith.addf %494, %520 : vector<8x12xf32>
    %522 = vector.broadcast %362 : f32 to vector<8x12xf32>
    %523 = arith.subf %509, %522 : vector<8x12xf32>
    %524 = arith.mulf %523, %523 : vector<8x12xf32>
    %525 = arith.addf %498, %524 : vector<8x12xf32>
    %526 = vector.broadcast %367 : f32 to vector<8x12xf32>
    %527 = arith.subf %509, %526 : vector<8x12xf32>
    %528 = arith.mulf %527, %527 : vector<8x12xf32>
    %529 = arith.addf %502, %528 : vector<8x12xf32>
    %530 = vector.broadcast %372 : f32 to vector<8x12xf32>
    %531 = arith.subf %509, %530 : vector<8x12xf32>
    %532 = arith.mulf %531, %531 : vector<8x12xf32>
    %533 = arith.addf %506, %532 : vector<8x12xf32>
    %c0_117 = arith.constant 0 : index
    %534 = arith.index_cast %467 : i32 to index
    %c2_118 = arith.constant 2 : index
    %535 = vector.load %arg1[%c0_117, %534, %c2_118] : memref<4x8x16xf32, #tpu.memory_space<vmem>>, vector<1x8x12xf32>
    %536 = vector.shape_cast %535 : vector<1x8x12xf32> to vector<8x12xf32>
    %537 = vector.broadcast %348 : f32 to vector<8x12xf32>
    %538 = arith.subf %536, %537 : vector<8x12xf32>
    %539 = arith.mulf %538, %538 : vector<8x12xf32>
    %540 = arith.addf %513, %539 : vector<8x12xf32>
    %541 = vector.broadcast %353 : f32 to vector<8x12xf32>
    %542 = arith.subf %536, %541 : vector<8x12xf32>
    %543 = arith.mulf %542, %542 : vector<8x12xf32>
    %544 = arith.addf %517, %543 : vector<8x12xf32>
    %545 = vector.broadcast %358 : f32 to vector<8x12xf32>
    %546 = arith.subf %536, %545 : vector<8x12xf32>
    %547 = arith.mulf %546, %546 : vector<8x12xf32>
    %548 = arith.addf %521, %547 : vector<8x12xf32>
    %549 = vector.broadcast %363 : f32 to vector<8x12xf32>
    %550 = arith.subf %536, %549 : vector<8x12xf32>
    %551 = arith.mulf %550, %550 : vector<8x12xf32>
    %552 = arith.addf %525, %551 : vector<8x12xf32>
    %553 = vector.broadcast %368 : f32 to vector<8x12xf32>
    %554 = arith.subf %536, %553 : vector<8x12xf32>
    %555 = arith.mulf %554, %554 : vector<8x12xf32>
    %556 = arith.addf %529, %555 : vector<8x12xf32>
    %557 = vector.broadcast %373 : f32 to vector<8x12xf32>
    %558 = arith.subf %536, %557 : vector<8x12xf32>
    %559 = arith.mulf %558, %558 : vector<8x12xf32>
    %560 = arith.addf %533, %559 : vector<8x12xf32>
    %c0_119 = arith.constant 0 : index
    %561 = arith.index_cast %467 : i32 to index
    %c3_120 = arith.constant 3 : index
    %562 = vector.load %arg1[%c0_119, %561, %c3_120] : memref<4x8x16xf32, #tpu.memory_space<vmem>>, vector<1x8x12xf32>
    %563 = vector.shape_cast %562 : vector<1x8x12xf32> to vector<8x12xf32>
    %564 = vector.broadcast %349 : f32 to vector<8x12xf32>
    %565 = arith.subf %563, %564 : vector<8x12xf32>
    %566 = arith.mulf %565, %565 : vector<8x12xf32>
    %567 = arith.addf %540, %566 : vector<8x12xf32>
    %568 = vector.broadcast %354 : f32 to vector<8x12xf32>
    %569 = arith.subf %563, %568 : vector<8x12xf32>
    %570 = arith.mulf %569, %569 : vector<8x12xf32>
    %571 = arith.addf %544, %570 : vector<8x12xf32>
    %572 = vector.broadcast %359 : f32 to vector<8x12xf32>
    %573 = arith.subf %563, %572 : vector<8x12xf32>
    %574 = arith.mulf %573, %573 : vector<8x12xf32>
    %575 = arith.addf %548, %574 : vector<8x12xf32>
    %576 = vector.broadcast %364 : f32 to vector<8x12xf32>
    %577 = arith.subf %563, %576 : vector<8x12xf32>
    %578 = arith.mulf %577, %577 : vector<8x12xf32>
    %579 = arith.addf %552, %578 : vector<8x12xf32>
    %580 = vector.broadcast %369 : f32 to vector<8x12xf32>
    %581 = arith.subf %563, %580 : vector<8x12xf32>
    %582 = arith.mulf %581, %581 : vector<8x12xf32>
    %583 = arith.addf %556, %582 : vector<8x12xf32>
    %584 = vector.broadcast %374 : f32 to vector<8x12xf32>
    %585 = arith.subf %563, %584 : vector<8x12xf32>
    %586 = arith.mulf %585, %585 : vector<8x12xf32>
    %587 = arith.addf %560, %586 : vector<8x12xf32>
    %c0_121 = arith.constant 0 : index
    %588 = arith.index_cast %467 : i32 to index
    %c4_122 = arith.constant 4 : index
    %589 = vector.load %arg1[%c0_121, %588, %c4_122] : memref<4x8x16xf32, #tpu.memory_space<vmem>>, vector<1x8x12xf32>
    %590 = vector.shape_cast %589 : vector<1x8x12xf32> to vector<8x12xf32>
    %591 = vector.broadcast %350 : f32 to vector<8x12xf32>
    %592 = arith.subf %590, %591 : vector<8x12xf32>
    %593 = arith.mulf %592, %592 : vector<8x12xf32>
    %594 = arith.addf %567, %593 : vector<8x12xf32>
    %595 = vector.broadcast %355 : f32 to vector<8x12xf32>
    %596 = arith.subf %590, %595 : vector<8x12xf32>
    %597 = arith.mulf %596, %596 : vector<8x12xf32>
    %598 = arith.addf %571, %597 : vector<8x12xf32>
    %599 = vector.broadcast %360 : f32 to vector<8x12xf32>
    %600 = arith.subf %590, %599 : vector<8x12xf32>
    %601 = arith.mulf %600, %600 : vector<8x12xf32>
    %602 = arith.addf %575, %601 : vector<8x12xf32>
    %603 = vector.broadcast %365 : f32 to vector<8x12xf32>
    %604 = arith.subf %590, %603 : vector<8x12xf32>
    %605 = arith.mulf %604, %604 : vector<8x12xf32>
    %606 = arith.addf %579, %605 : vector<8x12xf32>
    %607 = vector.broadcast %370 : f32 to vector<8x12xf32>
    %608 = arith.subf %590, %607 : vector<8x12xf32>
    %609 = arith.mulf %608, %608 : vector<8x12xf32>
    %610 = arith.addf %583, %609 : vector<8x12xf32>
    %611 = vector.broadcast %375 : f32 to vector<8x12xf32>
    %612 = arith.subf %590, %611 : vector<8x12xf32>
    %613 = arith.mulf %612, %612 : vector<8x12xf32>
    %614 = arith.addf %587, %613 : vector<8x12xf32>
    %615 = math.sqrt %594 : vector<8x12xf32>
    %616 = arith.addf %468, %615 : vector<8x12xf32>
    %617 = math.sqrt %598 : vector<8x12xf32>
    %618 = arith.addf %469, %617 : vector<8x12xf32>
    %619 = math.sqrt %602 : vector<8x12xf32>
    %620 = arith.addf %470, %619 : vector<8x12xf32>
    %621 = math.sqrt %606 : vector<8x12xf32>
    %622 = arith.addf %471, %621 : vector<8x12xf32>
    %623 = math.sqrt %610 : vector<8x12xf32>
    %624 = arith.addf %472, %623 : vector<8x12xf32>
    %625 = math.sqrt %614 : vector<8x12xf32>
    %626 = arith.addf %473, %625 : vector<8x12xf32>
    %cst_123 = arith.constant 0.000000e+00 : f32
    %627 = vector.broadcast %cst_123 : f32 to vector<8x12xf32>
    %cst_124 = arith.constant 0.000000e+00 : f32
    %628 = vector.broadcast %cst_124 : f32 to vector<8x12xf32>
    %cst_125 = arith.constant 0.000000e+00 : f32
    %629 = vector.broadcast %cst_125 : f32 to vector<8x12xf32>
    %cst_126 = arith.constant 0.000000e+00 : f32
    %630 = vector.broadcast %cst_126 : f32 to vector<8x12xf32>
    %cst_127 = arith.constant 0.000000e+00 : f32
    %631 = vector.broadcast %cst_127 : f32 to vector<8x12xf32>
    %cst_128 = arith.constant 0.000000e+00 : f32
    %632 = vector.broadcast %cst_128 : f32 to vector<8x12xf32>
    %c1_129 = arith.constant 1 : index
    %633 = arith.index_cast %467 : i32 to index
    %c0_130 = arith.constant 0 : index
    %634 = vector.load %arg1[%c1_129, %633, %c0_130] : memref<4x8x16xf32, #tpu.memory_space<vmem>>, vector<1x8x12xf32>
    %635 = vector.shape_cast %634 : vector<1x8x12xf32> to vector<8x12xf32>
    %636 = vector.broadcast %376 : f32 to vector<8x12xf32>
    %637 = arith.subf %635, %636 : vector<8x12xf32>
    %638 = arith.mulf %637, %637 : vector<8x12xf32>
    %639 = arith.addf %627, %638 : vector<8x12xf32>
    %640 = vector.broadcast %381 : f32 to vector<8x12xf32>
    %641 = arith.subf %635, %640 : vector<8x12xf32>
    %642 = arith.mulf %641, %641 : vector<8x12xf32>
    %643 = arith.addf %628, %642 : vector<8x12xf32>
    %644 = vector.broadcast %386 : f32 to vector<8x12xf32>
    %645 = arith.subf %635, %644 : vector<8x12xf32>
    %646 = arith.mulf %645, %645 : vector<8x12xf32>
    %647 = arith.addf %629, %646 : vector<8x12xf32>
    %648 = vector.broadcast %391 : f32 to vector<8x12xf32>
    %649 = arith.subf %635, %648 : vector<8x12xf32>
    %650 = arith.mulf %649, %649 : vector<8x12xf32>
    %651 = arith.addf %630, %650 : vector<8x12xf32>
    %652 = vector.broadcast %396 : f32 to vector<8x12xf32>
    %653 = arith.subf %635, %652 : vector<8x12xf32>
    %654 = arith.mulf %653, %653 : vector<8x12xf32>
    %655 = arith.addf %631, %654 : vector<8x12xf32>
    %656 = vector.broadcast %401 : f32 to vector<8x12xf32>
    %657 = arith.subf %635, %656 : vector<8x12xf32>
    %658 = arith.mulf %657, %657 : vector<8x12xf32>
    %659 = arith.addf %632, %658 : vector<8x12xf32>
    %c1_131 = arith.constant 1 : index
    %660 = arith.index_cast %467 : i32 to index
    %c1_132 = arith.constant 1 : index
    %661 = vector.load %arg1[%c1_131, %660, %c1_132] : memref<4x8x16xf32, #tpu.memory_space<vmem>>, vector<1x8x12xf32>
    %662 = vector.shape_cast %661 : vector<1x8x12xf32> to vector<8x12xf32>
    %663 = vector.broadcast %377 : f32 to vector<8x12xf32>
    %664 = arith.subf %662, %663 : vector<8x12xf32>
    %665 = arith.mulf %664, %664 : vector<8x12xf32>
    %666 = arith.addf %639, %665 : vector<8x12xf32>
    %667 = vector.broadcast %382 : f32 to vector<8x12xf32>
    %668 = arith.subf %662, %667 : vector<8x12xf32>
    %669 = arith.mulf %668, %668 : vector<8x12xf32>
    %670 = arith.addf %643, %669 : vector<8x12xf32>
    %671 = vector.broadcast %387 : f32 to vector<8x12xf32>
    %672 = arith.subf %662, %671 : vector<8x12xf32>
    %673 = arith.mulf %672, %672 : vector<8x12xf32>
    %674 = arith.addf %647, %673 : vector<8x12xf32>
    %675 = vector.broadcast %392 : f32 to vector<8x12xf32>
    %676 = arith.subf %662, %675 : vector<8x12xf32>
    %677 = arith.mulf %676, %676 : vector<8x12xf32>
    %678 = arith.addf %651, %677 : vector<8x12xf32>
    %679 = vector.broadcast %397 : f32 to vector<8x12xf32>
    %680 = arith.subf %662, %679 : vector<8x12xf32>
    %681 = arith.mulf %680, %680 : vector<8x12xf32>
    %682 = arith.addf %655, %681 : vector<8x12xf32>
    %683 = vector.broadcast %402 : f32 to vector<8x12xf32>
    %684 = arith.subf %662, %683 : vector<8x12xf32>
    %685 = arith.mulf %684, %684 : vector<8x12xf32>
    %686 = arith.addf %659, %685 : vector<8x12xf32>
    %c1_133 = arith.constant 1 : index
    %687 = arith.index_cast %467 : i32 to index
    %c2_134 = arith.constant 2 : index
    %688 = vector.load %arg1[%c1_133, %687, %c2_134] : memref<4x8x16xf32, #tpu.memory_space<vmem>>, vector<1x8x12xf32>
    %689 = vector.shape_cast %688 : vector<1x8x12xf32> to vector<8x12xf32>
    %690 = vector.broadcast %378 : f32 to vector<8x12xf32>
    %691 = arith.subf %689, %690 : vector<8x12xf32>
    %692 = arith.mulf %691, %691 : vector<8x12xf32>
    %693 = arith.addf %666, %692 : vector<8x12xf32>
    %694 = vector.broadcast %383 : f32 to vector<8x12xf32>
    %695 = arith.subf %689, %694 : vector<8x12xf32>
    %696 = arith.mulf %695, %695 : vector<8x12xf32>
    %697 = arith.addf %670, %696 : vector<8x12xf32>
    %698 = vector.broadcast %388 : f32 to vector<8x12xf32>
    %699 = arith.subf %689, %698 : vector<8x12xf32>
    %700 = arith.mulf %699, %699 : vector<8x12xf32>
    %701 = arith.addf %674, %700 : vector<8x12xf32>
    %702 = vector.broadcast %393 : f32 to vector<8x12xf32>
    %703 = arith.subf %689, %702 : vector<8x12xf32>
    %704 = arith.mulf %703, %703 : vector<8x12xf32>
    %705 = arith.addf %678, %704 : vector<8x12xf32>
    %706 = vector.broadcast %398 : f32 to vector<8x12xf32>
    %707 = arith.subf %689, %706 : vector<8x12xf32>
    %708 = arith.mulf %707, %707 : vector<8x12xf32>
    %709 = arith.addf %682, %708 : vector<8x12xf32>
    %710 = vector.broadcast %403 : f32 to vector<8x12xf32>
    %711 = arith.subf %689, %710 : vector<8x12xf32>
    %712 = arith.mulf %711, %711 : vector<8x12xf32>
    %713 = arith.addf %686, %712 : vector<8x12xf32>
    %c1_135 = arith.constant 1 : index
    %714 = arith.index_cast %467 : i32 to index
    %c3_136 = arith.constant 3 : index
    %715 = vector.load %arg1[%c1_135, %714, %c3_136] : memref<4x8x16xf32, #tpu.memory_space<vmem>>, vector<1x8x12xf32>
    %716 = vector.shape_cast %715 : vector<1x8x12xf32> to vector<8x12xf32>
    %717 = vector.broadcast %379 : f32 to vector<8x12xf32>
    %718 = arith.subf %716, %717 : vector<8x12xf32>
    %719 = arith.mulf %718, %718 : vector<8x12xf32>
    %720 = arith.addf %693, %719 : vector<8x12xf32>
    %721 = vector.broadcast %384 : f32 to vector<8x12xf32>
    %722 = arith.subf %716, %721 : vector<8x12xf32>
    %723 = arith.mulf %722, %722 : vector<8x12xf32>
    %724 = arith.addf %697, %723 : vector<8x12xf32>
    %725 = vector.broadcast %389 : f32 to vector<8x12xf32>
    %726 = arith.subf %716, %725 : vector<8x12xf32>
    %727 = arith.mulf %726, %726 : vector<8x12xf32>
    %728 = arith.addf %701, %727 : vector<8x12xf32>
    %729 = vector.broadcast %394 : f32 to vector<8x12xf32>
    %730 = arith.subf %716, %729 : vector<8x12xf32>
    %731 = arith.mulf %730, %730 : vector<8x12xf32>
    %732 = arith.addf %705, %731 : vector<8x12xf32>
    %733 = vector.broadcast %399 : f32 to vector<8x12xf32>
    %734 = arith.subf %716, %733 : vector<8x12xf32>
    %735 = arith.mulf %734, %734 : vector<8x12xf32>
    %736 = arith.addf %709, %735 : vector<8x12xf32>
    %737 = vector.broadcast %404 : f32 to vector<8x12xf32>
    %738 = arith.subf %716, %737 : vector<8x12xf32>
    %739 = arith.mulf %738, %738 : vector<8x12xf32>
    %740 = arith.addf %713, %739 : vector<8x12xf32>
    %c1_137 = arith.constant 1 : index
    %741 = arith.index_cast %467 : i32 to index
    %c4_138 = arith.constant 4 : index
    %742 = vector.load %arg1[%c1_137, %741, %c4_138] : memref<4x8x16xf32, #tpu.memory_space<vmem>>, vector<1x8x12xf32>
    %743 = vector.shape_cast %742 : vector<1x8x12xf32> to vector<8x12xf32>
    %744 = vector.broadcast %380 : f32 to vector<8x12xf32>
    %745 = arith.subf %743, %744 : vector<8x12xf32>
    %746 = arith.mulf %745, %745 : vector<8x12xf32>
    %747 = arith.addf %720, %746 : vector<8x12xf32>
    %748 = vector.broadcast %385 : f32 to vector<8x12xf32>
    %749 = arith.subf %743, %748 : vector<8x12xf32>
    %750 = arith.mulf %749, %749 : vector<8x12xf32>
    %751 = arith.addf %724, %750 : vector<8x12xf32>
    %752 = vector.broadcast %390 : f32 to vector<8x12xf32>
    %753 = arith.subf %743, %752 : vector<8x12xf32>
    %754 = arith.mulf %753, %753 : vector<8x12xf32>
    %755 = arith.addf %728, %754 : vector<8x12xf32>
    %756 = vector.broadcast %395 : f32 to vector<8x12xf32>
    %757 = arith.subf %743, %756 : vector<8x12xf32>
    %758 = arith.mulf %757, %757 : vector<8x12xf32>
    %759 = arith.addf %732, %758 : vector<8x12xf32>
    %760 = vector.broadcast %400 : f32 to vector<8x12xf32>
    %761 = arith.subf %743, %760 : vector<8x12xf32>
    %762 = arith.mulf %761, %761 : vector<8x12xf32>
    %763 = arith.addf %736, %762 : vector<8x12xf32>
    %764 = vector.broadcast %405 : f32 to vector<8x12xf32>
    %765 = arith.subf %743, %764 : vector<8x12xf32>
    %766 = arith.mulf %765, %765 : vector<8x12xf32>
    %767 = arith.addf %740, %766 : vector<8x12xf32>
    %768 = math.sqrt %747 : vector<8x12xf32>
    %769 = arith.addf %616, %768 : vector<8x12xf32>
    %770 = math.sqrt %751 : vector<8x12xf32>
    %771 = arith.addf %618, %770 : vector<8x12xf32>
    %772 = math.sqrt %755 : vector<8x12xf32>
    %773 = arith.addf %620, %772 : vector<8x12xf32>
    %774 = math.sqrt %759 : vector<8x12xf32>
    %775 = arith.addf %622, %774 : vector<8x12xf32>
    %776 = math.sqrt %763 : vector<8x12xf32>
    %777 = arith.addf %624, %776 : vector<8x12xf32>
    %778 = math.sqrt %767 : vector<8x12xf32>
    %779 = arith.addf %626, %778 : vector<8x12xf32>
    %cst_139 = arith.constant 0.000000e+00 : f32
    %780 = vector.broadcast %cst_139 : f32 to vector<8x12xf32>
    %cst_140 = arith.constant 0.000000e+00 : f32
    %781 = vector.broadcast %cst_140 : f32 to vector<8x12xf32>
    %cst_141 = arith.constant 0.000000e+00 : f32
    %782 = vector.broadcast %cst_141 : f32 to vector<8x12xf32>
    %cst_142 = arith.constant 0.000000e+00 : f32
    %783 = vector.broadcast %cst_142 : f32 to vector<8x12xf32>
    %cst_143 = arith.constant 0.000000e+00 : f32
    %784 = vector.broadcast %cst_143 : f32 to vector<8x12xf32>
    %cst_144 = arith.constant 0.000000e+00 : f32
    %785 = vector.broadcast %cst_144 : f32 to vector<8x12xf32>
    %c2_145 = arith.constant 2 : index
    %786 = arith.index_cast %467 : i32 to index
    %c0_146 = arith.constant 0 : index
    %787 = vector.load %arg1[%c2_145, %786, %c0_146] : memref<4x8x16xf32, #tpu.memory_space<vmem>>, vector<1x8x12xf32>
    %788 = vector.shape_cast %787 : vector<1x8x12xf32> to vector<8x12xf32>
    %789 = vector.broadcast %406 : f32 to vector<8x12xf32>
    %790 = arith.subf %788, %789 : vector<8x12xf32>
    %791 = arith.mulf %790, %790 : vector<8x12xf32>
    %792 = arith.addf %780, %791 : vector<8x12xf32>
    %793 = vector.broadcast %411 : f32 to vector<8x12xf32>
    %794 = arith.subf %788, %793 : vector<8x12xf32>
    %795 = arith.mulf %794, %794 : vector<8x12xf32>
    %796 = arith.addf %781, %795 : vector<8x12xf32>
    %797 = vector.broadcast %416 : f32 to vector<8x12xf32>
    %798 = arith.subf %788, %797 : vector<8x12xf32>
    %799 = arith.mulf %798, %798 : vector<8x12xf32>
    %800 = arith.addf %782, %799 : vector<8x12xf32>
    %801 = vector.broadcast %421 : f32 to vector<8x12xf32>
    %802 = arith.subf %788, %801 : vector<8x12xf32>
    %803 = arith.mulf %802, %802 : vector<8x12xf32>
    %804 = arith.addf %783, %803 : vector<8x12xf32>
    %805 = vector.broadcast %426 : f32 to vector<8x12xf32>
    %806 = arith.subf %788, %805 : vector<8x12xf32>
    %807 = arith.mulf %806, %806 : vector<8x12xf32>
    %808 = arith.addf %784, %807 : vector<8x12xf32>
    %809 = vector.broadcast %431 : f32 to vector<8x12xf32>
    %810 = arith.subf %788, %809 : vector<8x12xf32>
    %811 = arith.mulf %810, %810 : vector<8x12xf32>
    %812 = arith.addf %785, %811 : vector<8x12xf32>
    %c2_147 = arith.constant 2 : index
    %813 = arith.index_cast %467 : i32 to index
    %c1_148 = arith.constant 1 : index
    %814 = vector.load %arg1[%c2_147, %813, %c1_148] : memref<4x8x16xf32, #tpu.memory_space<vmem>>, vector<1x8x12xf32>
    %815 = vector.shape_cast %814 : vector<1x8x12xf32> to vector<8x12xf32>
    %816 = vector.broadcast %407 : f32 to vector<8x12xf32>
    %817 = arith.subf %815, %816 : vector<8x12xf32>
    %818 = arith.mulf %817, %817 : vector<8x12xf32>
    %819 = arith.addf %792, %818 : vector<8x12xf32>
    %820 = vector.broadcast %412 : f32 to vector<8x12xf32>
    %821 = arith.subf %815, %820 : vector<8x12xf32>
    %822 = arith.mulf %821, %821 : vector<8x12xf32>
    %823 = arith.addf %796, %822 : vector<8x12xf32>
    %824 = vector.broadcast %417 : f32 to vector<8x12xf32>
    %825 = arith.subf %815, %824 : vector<8x12xf32>
    %826 = arith.mulf %825, %825 : vector<8x12xf32>
    %827 = arith.addf %800, %826 : vector<8x12xf32>
    %828 = vector.broadcast %422 : f32 to vector<8x12xf32>
    %829 = arith.subf %815, %828 : vector<8x12xf32>
    %830 = arith.mulf %829, %829 : vector<8x12xf32>
    %831 = arith.addf %804, %830 : vector<8x12xf32>
    %832 = vector.broadcast %427 : f32 to vector<8x12xf32>
    %833 = arith.subf %815, %832 : vector<8x12xf32>
    %834 = arith.mulf %833, %833 : vector<8x12xf32>
    %835 = arith.addf %808, %834 : vector<8x12xf32>
    %836 = vector.broadcast %432 : f32 to vector<8x12xf32>
    %837 = arith.subf %815, %836 : vector<8x12xf32>
    %838 = arith.mulf %837, %837 : vector<8x12xf32>
    %839 = arith.addf %812, %838 : vector<8x12xf32>
    %c2_149 = arith.constant 2 : index
    %840 = arith.index_cast %467 : i32 to index
    %c2_150 = arith.constant 2 : index
    %841 = vector.load %arg1[%c2_149, %840, %c2_150] : memref<4x8x16xf32, #tpu.memory_space<vmem>>, vector<1x8x12xf32>
    %842 = vector.shape_cast %841 : vector<1x8x12xf32> to vector<8x12xf32>
    %843 = vector.broadcast %408 : f32 to vector<8x12xf32>
    %844 = arith.subf %842, %843 : vector<8x12xf32>
    %845 = arith.mulf %844, %844 : vector<8x12xf32>
    %846 = arith.addf %819, %845 : vector<8x12xf32>
    %847 = vector.broadcast %413 : f32 to vector<8x12xf32>
    %848 = arith.subf %842, %847 : vector<8x12xf32>
    %849 = arith.mulf %848, %848 : vector<8x12xf32>
    %850 = arith.addf %823, %849 : vector<8x12xf32>
    %851 = vector.broadcast %418 : f32 to vector<8x12xf32>
    %852 = arith.subf %842, %851 : vector<8x12xf32>
    %853 = arith.mulf %852, %852 : vector<8x12xf32>
    %854 = arith.addf %827, %853 : vector<8x12xf32>
    %855 = vector.broadcast %423 : f32 to vector<8x12xf32>
    %856 = arith.subf %842, %855 : vector<8x12xf32>
    %857 = arith.mulf %856, %856 : vector<8x12xf32>
    %858 = arith.addf %831, %857 : vector<8x12xf32>
    %859 = vector.broadcast %428 : f32 to vector<8x12xf32>
    %860 = arith.subf %842, %859 : vector<8x12xf32>
    %861 = arith.mulf %860, %860 : vector<8x12xf32>
    %862 = arith.addf %835, %861 : vector<8x12xf32>
    %863 = vector.broadcast %433 : f32 to vector<8x12xf32>
    %864 = arith.subf %842, %863 : vector<8x12xf32>
    %865 = arith.mulf %864, %864 : vector<8x12xf32>
    %866 = arith.addf %839, %865 : vector<8x12xf32>
    %c2_151 = arith.constant 2 : index
    %867 = arith.index_cast %467 : i32 to index
    %c3_152 = arith.constant 3 : index
    %868 = vector.load %arg1[%c2_151, %867, %c3_152] : memref<4x8x16xf32, #tpu.memory_space<vmem>>, vector<1x8x12xf32>
    %869 = vector.shape_cast %868 : vector<1x8x12xf32> to vector<8x12xf32>
    %870 = vector.broadcast %409 : f32 to vector<8x12xf32>
    %871 = arith.subf %869, %870 : vector<8x12xf32>
    %872 = arith.mulf %871, %871 : vector<8x12xf32>
    %873 = arith.addf %846, %872 : vector<8x12xf32>
    %874 = vector.broadcast %414 : f32 to vector<8x12xf32>
    %875 = arith.subf %869, %874 : vector<8x12xf32>
    %876 = arith.mulf %875, %875 : vector<8x12xf32>
    %877 = arith.addf %850, %876 : vector<8x12xf32>
    %878 = vector.broadcast %419 : f32 to vector<8x12xf32>
    %879 = arith.subf %869, %878 : vector<8x12xf32>
    %880 = arith.mulf %879, %879 : vector<8x12xf32>
    %881 = arith.addf %854, %880 : vector<8x12xf32>
    %882 = vector.broadcast %424 : f32 to vector<8x12xf32>
    %883 = arith.subf %869, %882 : vector<8x12xf32>
    %884 = arith.mulf %883, %883 : vector<8x12xf32>
    %885 = arith.addf %858, %884 : vector<8x12xf32>
    %886 = vector.broadcast %429 : f32 to vector<8x12xf32>
    %887 = arith.subf %869, %886 : vector<8x12xf32>
    %888 = arith.mulf %887, %887 : vector<8x12xf32>
    %889 = arith.addf %862, %888 : vector<8x12xf32>
    %890 = vector.broadcast %434 : f32 to vector<8x12xf32>
    %891 = arith.subf %869, %890 : vector<8x12xf32>
    %892 = arith.mulf %891, %891 : vector<8x12xf32>
    %893 = arith.addf %866, %892 : vector<8x12xf32>
    %c2_153 = arith.constant 2 : index
    %894 = arith.index_cast %467 : i32 to index
    %c4_154 = arith.constant 4 : index
    %895 = vector.load %arg1[%c2_153, %894, %c4_154] : memref<4x8x16xf32, #tpu.memory_space<vmem>>, vector<1x8x12xf32>
    %896 = vector.shape_cast %895 : vector<1x8x12xf32> to vector<8x12xf32>
    %897 = vector.broadcast %410 : f32 to vector<8x12xf32>
    %898 = arith.subf %896, %897 : vector<8x12xf32>
    %899 = arith.mulf %898, %898 : vector<8x12xf32>
    %900 = arith.addf %873, %899 : vector<8x12xf32>
    %901 = vector.broadcast %415 : f32 to vector<8x12xf32>
    %902 = arith.subf %896, %901 : vector<8x12xf32>
    %903 = arith.mulf %902, %902 : vector<8x12xf32>
    %904 = arith.addf %877, %903 : vector<8x12xf32>
    %905 = vector.broadcast %420 : f32 to vector<8x12xf32>
    %906 = arith.subf %896, %905 : vector<8x12xf32>
    %907 = arith.mulf %906, %906 : vector<8x12xf32>
    %908 = arith.addf %881, %907 : vector<8x12xf32>
    %909 = vector.broadcast %425 : f32 to vector<8x12xf32>
    %910 = arith.subf %896, %909 : vector<8x12xf32>
    %911 = arith.mulf %910, %910 : vector<8x12xf32>
    %912 = arith.addf %885, %911 : vector<8x12xf32>
    %913 = vector.broadcast %430 : f32 to vector<8x12xf32>
    %914 = arith.subf %896, %913 : vector<8x12xf32>
    %915 = arith.mulf %914, %914 : vector<8x12xf32>
    %916 = arith.addf %889, %915 : vector<8x12xf32>
    %917 = vector.broadcast %435 : f32 to vector<8x12xf32>
    %918 = arith.subf %896, %917 : vector<8x12xf32>
    %919 = arith.mulf %918, %918 : vector<8x12xf32>
    %920 = arith.addf %893, %919 : vector<8x12xf32>
    %921 = math.sqrt %900 : vector<8x12xf32>
    %922 = arith.addf %769, %921 : vector<8x12xf32>
    %923 = math.sqrt %904 : vector<8x12xf32>
    %924 = arith.addf %771, %923 : vector<8x12xf32>
    %925 = math.sqrt %908 : vector<8x12xf32>
    %926 = arith.addf %773, %925 : vector<8x12xf32>
    %927 = math.sqrt %912 : vector<8x12xf32>
    %928 = arith.addf %775, %927 : vector<8x12xf32>
    %929 = math.sqrt %916 : vector<8x12xf32>
    %930 = arith.addf %777, %929 : vector<8x12xf32>
    %931 = math.sqrt %920 : vector<8x12xf32>
    %932 = arith.addf %779, %931 : vector<8x12xf32>
    %cst_155 = arith.constant 0.000000e+00 : f32
    %933 = vector.broadcast %cst_155 : f32 to vector<8x12xf32>
    %cst_156 = arith.constant 0.000000e+00 : f32
    %934 = vector.broadcast %cst_156 : f32 to vector<8x12xf32>
    %cst_157 = arith.constant 0.000000e+00 : f32
    %935 = vector.broadcast %cst_157 : f32 to vector<8x12xf32>
    %cst_158 = arith.constant 0.000000e+00 : f32
    %936 = vector.broadcast %cst_158 : f32 to vector<8x12xf32>
    %cst_159 = arith.constant 0.000000e+00 : f32
    %937 = vector.broadcast %cst_159 : f32 to vector<8x12xf32>
    %cst_160 = arith.constant 0.000000e+00 : f32
    %938 = vector.broadcast %cst_160 : f32 to vector<8x12xf32>
    %c3_161 = arith.constant 3 : index
    %939 = arith.index_cast %467 : i32 to index
    %c0_162 = arith.constant 0 : index
    %940 = vector.load %arg1[%c3_161, %939, %c0_162] : memref<4x8x16xf32, #tpu.memory_space<vmem>>, vector<1x8x12xf32>
    %941 = vector.shape_cast %940 : vector<1x8x12xf32> to vector<8x12xf32>
    %942 = vector.broadcast %436 : f32 to vector<8x12xf32>
    %943 = arith.subf %941, %942 : vector<8x12xf32>
    %944 = arith.mulf %943, %943 : vector<8x12xf32>
    %945 = arith.addf %933, %944 : vector<8x12xf32>
    %946 = vector.broadcast %441 : f32 to vector<8x12xf32>
    %947 = arith.subf %941, %946 : vector<8x12xf32>
    %948 = arith.mulf %947, %947 : vector<8x12xf32>
    %949 = arith.addf %934, %948 : vector<8x12xf32>
    %950 = vector.broadcast %446 : f32 to vector<8x12xf32>
    %951 = arith.subf %941, %950 : vector<8x12xf32>
    %952 = arith.mulf %951, %951 : vector<8x12xf32>
    %953 = arith.addf %935, %952 : vector<8x12xf32>
    %954 = vector.broadcast %451 : f32 to vector<8x12xf32>
    %955 = arith.subf %941, %954 : vector<8x12xf32>
    %956 = arith.mulf %955, %955 : vector<8x12xf32>
    %957 = arith.addf %936, %956 : vector<8x12xf32>
    %958 = vector.broadcast %456 : f32 to vector<8x12xf32>
    %959 = arith.subf %941, %958 : vector<8x12xf32>
    %960 = arith.mulf %959, %959 : vector<8x12xf32>
    %961 = arith.addf %937, %960 : vector<8x12xf32>
    %962 = vector.broadcast %461 : f32 to vector<8x12xf32>
    %963 = arith.subf %941, %962 : vector<8x12xf32>
    %964 = arith.mulf %963, %963 : vector<8x12xf32>
    %965 = arith.addf %938, %964 : vector<8x12xf32>
    %c3_163 = arith.constant 3 : index
    %966 = arith.index_cast %467 : i32 to index
    %c1_164 = arith.constant 1 : index
    %967 = vector.load %arg1[%c3_163, %966, %c1_164] : memref<4x8x16xf32, #tpu.memory_space<vmem>>, vector<1x8x12xf32>
    %968 = vector.shape_cast %967 : vector<1x8x12xf32> to vector<8x12xf32>
    %969 = vector.broadcast %437 : f32 to vector<8x12xf32>
    %970 = arith.subf %968, %969 : vector<8x12xf32>
    %971 = arith.mulf %970, %970 : vector<8x12xf32>
    %972 = arith.addf %945, %971 : vector<8x12xf32>
    %973 = vector.broadcast %442 : f32 to vector<8x12xf32>
    %974 = arith.subf %968, %973 : vector<8x12xf32>
    %975 = arith.mulf %974, %974 : vector<8x12xf32>
    %976 = arith.addf %949, %975 : vector<8x12xf32>
    %977 = vector.broadcast %447 : f32 to vector<8x12xf32>
    %978 = arith.subf %968, %977 : vector<8x12xf32>
    %979 = arith.mulf %978, %978 : vector<8x12xf32>
    %980 = arith.addf %953, %979 : vector<8x12xf32>
    %981 = vector.broadcast %452 : f32 to vector<8x12xf32>
    %982 = arith.subf %968, %981 : vector<8x12xf32>
    %983 = arith.mulf %982, %982 : vector<8x12xf32>
    %984 = arith.addf %957, %983 : vector<8x12xf32>
    %985 = vector.broadcast %457 : f32 to vector<8x12xf32>
    %986 = arith.subf %968, %985 : vector<8x12xf32>
    %987 = arith.mulf %986, %986 : vector<8x12xf32>
    %988 = arith.addf %961, %987 : vector<8x12xf32>
    %989 = vector.broadcast %462 : f32 to vector<8x12xf32>
    %990 = arith.subf %968, %989 : vector<8x12xf32>
    %991 = arith.mulf %990, %990 : vector<8x12xf32>
    %992 = arith.addf %965, %991 : vector<8x12xf32>
    %c3_165 = arith.constant 3 : index
    %993 = arith.index_cast %467 : i32 to index
    %c2_166 = arith.constant 2 : index
    %994 = vector.load %arg1[%c3_165, %993, %c2_166] : memref<4x8x16xf32, #tpu.memory_space<vmem>>, vector<1x8x12xf32>
    %995 = vector.shape_cast %994 : vector<1x8x12xf32> to vector<8x12xf32>
    %996 = vector.broadcast %438 : f32 to vector<8x12xf32>
    %997 = arith.subf %995, %996 : vector<8x12xf32>
    %998 = arith.mulf %997, %997 : vector<8x12xf32>
    %999 = arith.addf %972, %998 : vector<8x12xf32>
    %1000 = vector.broadcast %443 : f32 to vector<8x12xf32>
    %1001 = arith.subf %995, %1000 : vector<8x12xf32>
    %1002 = arith.mulf %1001, %1001 : vector<8x12xf32>
    %1003 = arith.addf %976, %1002 : vector<8x12xf32>
    %1004 = vector.broadcast %448 : f32 to vector<8x12xf32>
    %1005 = arith.subf %995, %1004 : vector<8x12xf32>
    %1006 = arith.mulf %1005, %1005 : vector<8x12xf32>
    %1007 = arith.addf %980, %1006 : vector<8x12xf32>
    %1008 = vector.broadcast %453 : f32 to vector<8x12xf32>
    %1009 = arith.subf %995, %1008 : vector<8x12xf32>
    %1010 = arith.mulf %1009, %1009 : vector<8x12xf32>
    %1011 = arith.addf %984, %1010 : vector<8x12xf32>
    %1012 = vector.broadcast %458 : f32 to vector<8x12xf32>
    %1013 = arith.subf %995, %1012 : vector<8x12xf32>
    %1014 = arith.mulf %1013, %1013 : vector<8x12xf32>
    %1015 = arith.addf %988, %1014 : vector<8x12xf32>
    %1016 = vector.broadcast %463 : f32 to vector<8x12xf32>
    %1017 = arith.subf %995, %1016 : vector<8x12xf32>
    %1018 = arith.mulf %1017, %1017 : vector<8x12xf32>
    %1019 = arith.addf %992, %1018 : vector<8x12xf32>
    %c3_167 = arith.constant 3 : index
    %1020 = arith.index_cast %467 : i32 to index
    %c3_168 = arith.constant 3 : index
    %1021 = vector.load %arg1[%c3_167, %1020, %c3_168] : memref<4x8x16xf32, #tpu.memory_space<vmem>>, vector<1x8x12xf32>
    %1022 = vector.shape_cast %1021 : vector<1x8x12xf32> to vector<8x12xf32>
    %1023 = vector.broadcast %439 : f32 to vector<8x12xf32>
    %1024 = arith.subf %1022, %1023 : vector<8x12xf32>
    %1025 = arith.mulf %1024, %1024 : vector<8x12xf32>
    %1026 = arith.addf %999, %1025 : vector<8x12xf32>
    %1027 = vector.broadcast %444 : f32 to vector<8x12xf32>
    %1028 = arith.subf %1022, %1027 : vector<8x12xf32>
    %1029 = arith.mulf %1028, %1028 : vector<8x12xf32>
    %1030 = arith.addf %1003, %1029 : vector<8x12xf32>
    %1031 = vector.broadcast %449 : f32 to vector<8x12xf32>
    %1032 = arith.subf %1022, %1031 : vector<8x12xf32>
    %1033 = arith.mulf %1032, %1032 : vector<8x12xf32>
    %1034 = arith.addf %1007, %1033 : vector<8x12xf32>
    %1035 = vector.broadcast %454 : f32 to vector<8x12xf32>
    %1036 = arith.subf %1022, %1035 : vector<8x12xf32>
    %1037 = arith.mulf %1036, %1036 : vector<8x12xf32>
    %1038 = arith.addf %1011, %1037 : vector<8x12xf32>
    %1039 = vector.broadcast %459 : f32 to vector<8x12xf32>
    %1040 = arith.subf %1022, %1039 : vector<8x12xf32>
    %1041 = arith.mulf %1040, %1040 : vector<8x12xf32>
    %1042 = arith.addf %1015, %1041 : vector<8x12xf32>
    %1043 = vector.broadcast %464 : f32 to vector<8x12xf32>
    %1044 = arith.subf %1022, %1043 : vector<8x12xf32>
    %1045 = arith.mulf %1044, %1044 : vector<8x12xf32>
    %1046 = arith.addf %1019, %1045 : vector<8x12xf32>
    %c3_169 = arith.constant 3 : index
    %1047 = arith.index_cast %467 : i32 to index
    %c4_170 = arith.constant 4 : index
    %1048 = vector.load %arg1[%c3_169, %1047, %c4_170] : memref<4x8x16xf32, #tpu.memory_space<vmem>>, vector<1x8x12xf32>
    %1049 = vector.shape_cast %1048 : vector<1x8x12xf32> to vector<8x12xf32>
    %1050 = vector.broadcast %440 : f32 to vector<8x12xf32>
    %1051 = arith.subf %1049, %1050 : vector<8x12xf32>
    %1052 = arith.mulf %1051, %1051 : vector<8x12xf32>
    %1053 = arith.addf %1026, %1052 : vector<8x12xf32>
    %1054 = vector.broadcast %445 : f32 to vector<8x12xf32>
    %1055 = arith.subf %1049, %1054 : vector<8x12xf32>
    %1056 = arith.mulf %1055, %1055 : vector<8x12xf32>
    %1057 = arith.addf %1030, %1056 : vector<8x12xf32>
    %1058 = vector.broadcast %450 : f32 to vector<8x12xf32>
    %1059 = arith.subf %1049, %1058 : vector<8x12xf32>
    %1060 = arith.mulf %1059, %1059 : vector<8x12xf32>
    %1061 = arith.addf %1034, %1060 : vector<8x12xf32>
    %1062 = vector.broadcast %455 : f32 to vector<8x12xf32>
    %1063 = arith.subf %1049, %1062 : vector<8x12xf32>
    %1064 = arith.mulf %1063, %1063 : vector<8x12xf32>
    %1065 = arith.addf %1038, %1064 : vector<8x12xf32>
    %1066 = vector.broadcast %460 : f32 to vector<8x12xf32>
    %1067 = arith.subf %1049, %1066 : vector<8x12xf32>
    %1068 = arith.mulf %1067, %1067 : vector<8x12xf32>
    %1069 = arith.addf %1042, %1068 : vector<8x12xf32>
    %1070 = vector.broadcast %465 : f32 to vector<8x12xf32>
    %1071 = arith.subf %1049, %1070 : vector<8x12xf32>
    %1072 = arith.mulf %1071, %1071 : vector<8x12xf32>
    %1073 = arith.addf %1046, %1072 : vector<8x12xf32>
    %1074 = math.sqrt %1053 : vector<8x12xf32>
    %1075 = arith.addf %922, %1074 : vector<8x12xf32>
    %1076 = math.sqrt %1057 : vector<8x12xf32>
    %1077 = arith.addf %924, %1076 : vector<8x12xf32>
    %1078 = math.sqrt %1061 : vector<8x12xf32>
    %1079 = arith.addf %926, %1078 : vector<8x12xf32>
    %1080 = math.sqrt %1065 : vector<8x12xf32>
    %1081 = arith.addf %928, %1080 : vector<8x12xf32>
    %1082 = math.sqrt %1069 : vector<8x12xf32>
    %1083 = arith.addf %930, %1082 : vector<8x12xf32>
    %1084 = math.sqrt %1073 : vector<8x12xf32>
    %1085 = arith.addf %932, %1084 : vector<8x12xf32>
    %cst_171 = arith.constant dense<0x7F800000> : vector<8xf32>
    %1086 = vector.multi_reduction <minimumf>, %1075, %cst_171 [1] : vector<8x12xf32> to vector<8xf32>
    %1087 = vector.shape_cast %1086 : vector<8xf32> to vector<8x1xf32>
    %cst_172 = arith.constant dense<0x7F800000> : vector<8xf32>
    %1088 = vector.multi_reduction <minimumf>, %1077, %cst_172 [1] : vector<8x12xf32> to vector<8xf32>
    %1089 = vector.shape_cast %1088 : vector<8xf32> to vector<8x1xf32>
    %cst_173 = arith.constant dense<0x7F800000> : vector<8xf32>
    %1090 = vector.multi_reduction <minimumf>, %1079, %cst_173 [1] : vector<8x12xf32> to vector<8xf32>
    %1091 = vector.shape_cast %1090 : vector<8xf32> to vector<8x1xf32>
    %cst_174 = arith.constant dense<0x7F800000> : vector<8xf32>
    %1092 = vector.multi_reduction <minimumf>, %1081, %cst_174 [1] : vector<8x12xf32> to vector<8xf32>
    %1093 = vector.shape_cast %1092 : vector<8xf32> to vector<8x1xf32>
    %cst_175 = arith.constant dense<0x7F800000> : vector<8xf32>
    %1094 = vector.multi_reduction <minimumf>, %1083, %cst_175 [1] : vector<8x12xf32> to vector<8xf32>
    %1095 = vector.shape_cast %1094 : vector<8xf32> to vector<8x1xf32>
    %cst_176 = arith.constant dense<0x7F800000> : vector<8xf32>
    %1096 = vector.multi_reduction <minimumf>, %1085, %cst_176 [1] : vector<8x12xf32> to vector<8xf32>
    %1097 = vector.shape_cast %1096 : vector<8xf32> to vector<8x1xf32>
    %1098 = arith.index_cast %467 : i32 to index
    %c4_177 = arith.constant 4 : index
    %1099 = vector.load %arg4[%1098, %c4_177] : memref<8x10xf32, #tpu.memory_space<vmem>>, vector<8x1xf32>
    tpu.vector_store %arg4[%1098, %c4_177], %1087 {strides = array<i32>} : memref<8x10xf32, #tpu.memory_space<vmem>>, vector<8x1xf32>,
    %1100 = arith.index_cast %467 : i32 to index
    %c5_178 = arith.constant 5 : index
    %1101 = vector.load %arg4[%1100, %c5_178] : memref<8x10xf32, #tpu.memory_space<vmem>>, vector<8x1xf32>
    tpu.vector_store %arg4[%1100, %c5_178], %1089 {strides = array<i32>} : memref<8x10xf32, #tpu.memory_space<vmem>>, vector<8x1xf32>,
    %1102 = arith.index_cast %467 : i32 to index
    %c6_179 = arith.constant 6 : index
    %1103 = vector.load %arg4[%1102, %c6_179] : memref<8x10xf32, #tpu.memory_space<vmem>>, vector<8x1xf32>
    tpu.vector_store %arg4[%1102, %c6_179], %1091 {strides = array<i32>} : memref<8x10xf32, #tpu.memory_space<vmem>>, vector<8x1xf32>,
    %1104 = arith.index_cast %467 : i32 to index
    %c7_180 = arith.constant 7 : index
    %1105 = vector.load %arg4[%1104, %c7_180] : memref<8x10xf32, #tpu.memory_space<vmem>>, vector<8x1xf32>
    tpu.vector_store %arg4[%1104, %c7_180], %1093 {strides = array<i32>} : memref<8x10xf32, #tpu.memory_space<vmem>>, vector<8x1xf32>,
    %1106 = arith.index_cast %467 : i32 to index
    %c8_181 = arith.constant 8 : index
    %1107 = vector.load %arg4[%1106, %c8_181] : memref<8x10xf32, #tpu.memory_space<vmem>>, vector<8x1xf32>
    tpu.vector_store %arg4[%1106, %c8_181], %1095 {strides = array<i32>} : memref<8x10xf32, #tpu.memory_space<vmem>>, vector<8x1xf32>,
    %1108 = arith.index_cast %467 : i32 to index
    %c9_182 = arith.constant 9 : index
    %1109 = vector.load %arg4[%1108, %c9_182] : memref<8x10xf32, #tpu.memory_space<vmem>>, vector<8x1xf32>
    tpu.vector_store %arg4[%1108, %c9_182], %1097 {strides = array<i32>} : memref<8x10xf32, #tpu.memory_space<vmem>>, vector<8x1xf32>,
    %c1_i32_183 = arith.constant 1 : i32
    return
  }
  func.func @transform_0(%arg0: i32) -> (i32, i32, i32) {
    %c0_i32 = arith.constant 0 : i32
    %c0_i32_0 = arith.constant 0 : i32
    %c0_i32_1 = arith.constant 0 : i32
    return %c0_i32, %arg0, %c0_i32_0 : i32, i32, i32
  }
  func.func @transform_1(%arg0: i32) -> i32 {
    %c0_i32 = arith.constant 0 : i32
    %c0_i32_0 = arith.constant 0 : i32
    return %c0_i32 : i32
  }
  func.func @transform_2(%arg0: i32) -> i32 {
    %c0_i32 = arith.constant 0 : i32
    %c0_i32_0 = arith.constant 0 : i32
    return %c0_i32 : i32
  }
  func.func @transform_3(%arg0: i32) -> (i32, i32) {
    %c0_i32 = arith.constant 0 : i32
    %c0_i32_0 = arith.constant 0 : i32
    return %arg0, %c0_i32 : i32, i32
  }
}

</mosaic_0001>

<llo_original>
// kernel: tpu_custom_call.1
$region0: #{tpu_custom_call.1}
  #allocation0 [shape = 'u32[]', space=smem, size = 0x4, offset = 0x4, fixed_abs, tag = 'smem constant byte address 0x4 - core index']
  #allocation1 [shape = 'u32[72,128]{1,0:T(1,128)}', space=vmem, size = 0x9000, scoped, tag = 'internal scratch']
  %s0 = inlined_call_operand.hbm [shape: f32[4,8,16], index: 0, kind: input, shape index: {}]
  %s1 = inlined_call_operand.hbm [shape: f32[48], index: 1, kind: input, shape index: {}]
  %s2 = inlined_call_operand.vmem [shape: f32[120], index: 2, kind: input, shape index: {}]
  %s3 = inlined_call_operand.hbm [shape: f32[8,10], index: 3, kind: output, shape index: {}]
  %s4 = sld [smem:[#allocation0]]
  $region34: #{tpu_custom_call.1} parent=0
    _
  %s6 = ssub.s32 1, %s4
  %s7 = scalar_select 0, %s6, %s4
  $region1: #{tpu_custom_call.1} parent=0
    #allocation2 [shape = 'u8[16384]{0}', space=vmem, size = 0x4000, scoped, tag = 'input window, operand 0, single buffered']
    #allocation3 [shape = 's32[1]{0}', space=sflag, size = 0x4, scoped, tag = 'scoped memory for tpu_custom_call.1']
    #allocation4 [shape = 's32[1]{0}', space=sflag, size = 0x4, scoped, tag = 'scoped memory for tpu_custom_call.1']
    #allocation5 [shape = 's32[1]{0}', space=sflag, size = 0x4, scoped, tag = 'scoped memory for tpu_custom_call.1']
    #allocation6 [shape = 's32[1]{0}', space=sflag, size = 0x4, scoped, tag = 'scoped memory for tpu_custom_call.1']
    #allocation7 [shape = 'u8[512]{0}', space=smem, size = 0x200, scoped, tag = 'input window, operand 1, single buffered']
    #allocation8 [shape = 'u8[512]{0}', space=smem, size = 0x200, scoped, tag = 'input window, operand 2, single buffered']
    #allocation9 [shape = 'u8[4096]{0}', space=vmem, size = 0x1000, scoped, tag = 'output window, operand 0, single buffered']
    %8 = vsyncpa [#allocation3], 0
    %9 = vsyncpa [#allocation5], 0
    %10 = vsyncpa [#allocation6], 0
    %11 = vsyncpa [#allocation4], 0
    // Predicated region
    $region2: #{tpu_custom_call.1} parent=1 // pred_check
      _
    $region3: #{tpu_custom_call.1} parent=1 // pred_check_branch
      %13 = sbr.rel (0) target = $region5
    $region4: #{tpu_custom_call.1} parent=1 // pred_region
      %15 = vsyncadd [#allocation3], 0
      %s16 = sshll.u32 %s0, 4
      %s17 = int_to_ptr.hbm [resolvable:$true] %s16
      %s18 = sshll.u32 [#allocation2], 4
      %s19 = int_to_ptr.vmem [resolvable:$true] %s18
      %24 = dma.hbm_to_vmem [thread:$0]  %s17, 512, %s19, [#allocation3], 128, 128, 8
    $region5: #{tpu_custom_call.1} parent=1 // pred_fallthru
      _
    // Predicated region
    $region6: #{tpu_custom_call.1} parent=1 // pred_check
      _
    $region7: #{tpu_custom_call.1} parent=1 // pred_check_branch
      %26 = sbr.rel (0) target = $region9
    $region8: #{tpu_custom_call.1} parent=1 // pred_region
      %28 = vsyncadd [#allocation5], 0
      %s30 = sshll.u32 %s1, 4
      %s31 = int_to_ptr.hbm [resolvable:$true] %s30
      %33 = dma.hbm_to_smem %s31, 16, [#allocation7], [#allocation5]
    $region9: #{tpu_custom_call.1} parent=1 // pred_fallthru
      _
    // Predicated region
    $region10: #{tpu_custom_call.1} parent=1 // pred_check
      _
    $region11: #{tpu_custom_call.1} parent=1 // pred_check_branch
      %35 = sbr.rel (0) target = $region13
    $region12: #{tpu_custom_call.1} parent=1 // pred_region
      %37 = vsyncadd [#allocation6], 0
      %s39 = sshll.u32 %s2, 4
      %s40 = int_to_ptr.vmem [resolvable:$true] %s39
      %42 = dma.vmem_to_smem %s40, 16, [#allocation8], [#allocation6]
    $region13: #{tpu_custom_call.1} parent=1 // pred_fallthru
      _
    // Predicated region
    $region14: #{tpu_custom_call.1} parent=1 // pred_check
      _
    $region15: #{tpu_custom_call.1} parent=1 // pred_check_branch
      %44 = sbr.rel (0) target = $region17
    $region16: #{tpu_custom_call.1} parent=1 // pred_region
      %46 = dma.done [#allocation3], 512
    $region17: #{tpu_custom_call.1} parent=1 // pred_fallthru
      _
    // Predicated region
    $region18: #{tpu_custom_call.1} parent=1 // pred_check
      _
    $region19: #{tpu_custom_call.1} parent=1 // pred_check_branch
      %48 = sbr.rel (0) target = $region21
    $region20: #{tpu_custom_call.1} parent=1 // pred_region
      %50 = dma.done [#allocation5], 16
    $region21: #{tpu_custom_call.1} parent=1 // pred_fallthru
      _
    // Predicated region
    $region22: #{tpu_custom_call.1} parent=1 // pred_check
      _
    $region23: #{tpu_custom_call.1} parent=1 // pred_check_branch
      %52 = sbr.rel (0) target = $region25
    $region24: #{tpu_custom_call.1} parent=1 // pred_region
      %54 = dma.done [#allocation6], 16
    $region25: #{tpu_custom_call.1} parent=1 // pred_fallthru
      _
    %55 = sfence
    %s56 = sld [smem:[#allocation7]]
    %s57 = sld [smem:[#allocation7 + $0x1]]
    %s58 = sld [smem:[#allocation7 + $0x2]]
    %s59 = sld [smem:[#allocation7 + $0x3]]
    %s60 = sld [smem:[#allocation7 + $0x4]]
    %s61 = sld [smem:[#allocation7 + $0x5]]
    %s62 = sld [smem:[#allocation7 + $0x6]]
    %s63 = sld [smem:[#allocation7 + $0x7]]
    %s64 = sld [smem:[#allocation7 + $0x8]]
    %s65 = sld [smem:[#allocation7 + $0x9]]
    %s66 = sld [smem:[#allocation7 + $0xa]]
    %s67 = sld [smem:[#allocation7 + $0xb]]
    %s68 = sld [smem:[#allocation7 + $0xc]]
    %s69 = sld [smem:[#allocation7 + $0xd]]
    %s70 = sld [smem:[#allocation7 + $0xe]]
    %s71 = sld [smem:[#allocation7 + $0xf]]
    %s72 = sld [smem:[#allocation7 + $0x10]]
    %s73 = sld [smem:[#allocation7 + $0x11]]
    %s74 = sld [smem:[#allocation7 + $0x12]]
    %s75 = sld [smem:[#allocation7 + $0x13]]
    %s76 = sld [smem:[#allocation7 + $0x14]]
    %s77 = sld [smem:[#allocation7 + $0x15]]
    %s78 = sld [smem:[#allocation7 + $0x16]]
    %s79 = sld [smem:[#allocation7 + $0x17]]
    %s80 = sld [smem:[#allocation7 + $0x18]]
    %s81 = sld [smem:[#allocation7 + $0x19]]
    %s82 = sld [smem:[#allocation7 + $0x1a]]
    %s83 = sld [smem:[#allocation7 + $0x1b]]
    %s84 = sld [smem:[#allocation7 + $0x1c]]
    %s85 = sld [smem:[#allocation7 + $0x1d]]
    %s86 = sld [smem:[#allocation7 + $0x1e]]
    %s87 = sld [smem:[#allocation7 + $0x1f]]
    %s88 = sld [smem:[#allocation7 + $0x20]]
    %s89 = sld [smem:[#allocation7 + $0x21]]
    %s90 = sld [smem:[#allocation7 + $0x22]]
    %s91 = sld [smem:[#allocation7 + $0x23]]
    %s92 = sld [smem:[#allocation7 + $0x24]]
    %s93 = sld [smem:[#allocation7 + $0x25]]
    %s94 = sld [smem:[#allocation7 + $0x26]]
    %s95 = sld [smem:[#allocation7 + $0x27]]
    %s96 = sld [smem:[#allocation7 + $0x28]]
    %s97 = sld [smem:[#allocation7 + $0x29]]
    %s98 = sld [smem:[#allocation7 + $0x2a]]
    %s99 = sld [smem:[#allocation7 + $0x2b]]
    %s100 = sld [smem:[#allocation7 + $0x2c]]
    %s101 = sld [smem:[#allocation7 + $0x2d]]
    %s102 = sld [smem:[#allocation7 + $0x2e]]
    %s103 = sld [smem:[#allocation7 + $0x2f]]
    %v104 = vld [vmem:[#allocation2] sm:$0xff]
    %v105 = vstv %s56
    %v106 = vsub.f32 %v104, %v105
    %v107 = vmul.f32 %v106, %v106
    %v108 = vadd.f32 %v107, 0.0
    %v109 = vstv %s59
    %v110 = vsub.f32 %v104, %v109
    %v111 = vmul.f32 %v110, %v110
    %v112 = vadd.f32 %v111, 0.0
    %v113 = vstv %s62
    %v114 = vsub.f32 %v104, %v113
    %v115 = vmul.f32 %v114, %v114
    %v116 = vadd.f32 %v115, 0.0
    %v117 = vstv %s65
    %v118 = vsub.f32 %v104, %v117
    %v119 = vmul.f32 %v118, %v118
    %v120 = vadd.f32 %v119, 0.0
    %v121 = vstv %s57
    %v122 = vsub.f32 %v104, %v121
    %v123 = vmul.f32 %v122, %v122
    %125 = vrot.lane.b32.xlu0 %v123, 127
    %v126 = vpop.permute.xlu0 %125
    %v128 = vadd.f32 %v108, %v126
    %v129 = vstv %s60
    %v130 = vsub.f32 %v104, %v129
    %v131 = vmul.f32 %v130, %v130
    %133 = vrot.lane.b32.xlu0 %v131, 127
    %v134 = vpop.permute.xlu0 %133
    %v136 = vadd.f32 %v112, %v134
    %v137 = vstv %s63
    %v138 = vsub.f32 %v104, %v137
    %v139 = vmul.f32 %v138, %v138
    %141 = vrot.lane.b32.xlu0 %v139, 127
    %v142 = vpop.permute.xlu0 %141
    %v144 = vadd.f32 %v116, %v142
    %v145 = vstv %s66
    %v146 = vsub.f32 %v104, %v145
    %v147 = vmul.f32 %v146, %v146
    %149 = vrot.lane.b32.xlu0 %v147, 127
    %v150 = vpop.permute.xlu0 %149
    %v152 = vadd.f32 %v120, %v150
    %v153 = vstv %s58
    %v154 = vsub.f32 %v104, %v153
    %v155 = vmul.f32 %v154, %v154
    %157 = vrot.lane.b32.xlu0 %v155, 126
    %v158 = vpop.permute.xlu0 %157
    %v160 = vadd.f32 %v128, %v158
    %v161 = vstv %s61
    %v162 = vsub.f32 %v104, %v161
    %v163 = vmul.f32 %v162, %v162
    %165 = vrot.lane.b32.xlu0 %v163, 126
    %v166 = vpop.permute.xlu0 %165
    %v168 = vadd.f32 %v136, %v166
    %v169 = vstv %s64
    %v170 = vsub.f32 %v104, %v169
    %v171 = vmul.f32 %v170, %v170
    %173 = vrot.lane.b32.xlu0 %v171, 126
    %v174 = vpop.permute.xlu0 %173
    %v176 = vadd.f32 %v144, %v174
    %v177 = vstv %s67
    %v178 = vsub.f32 %v104, %v177
    %v179 = vmul.f32 %v178, %v178
    %181 = vrot.lane.b32.xlu0 %v179, 126
    %v182 = vpop.permute.xlu0 %181
    %v184 = vadd.f32 %v152, %v182
    %v185 = vrsqrt.pop %v160
    %v186 = vmul.f32 %v185, %v160
    %v187 = vmul.f32 %v186, %v185
    %v188 = vmul.f32 0.5, %v187
    %v189 = vsub.f32 1.5, %v188
    %v190 = vmul.f32 %v185, %v189
    %v191 = vmul.f32 %v160, %v190
    %vm192 = vcmp.eq.f32.partialorder %v160, inf
    %v193 = vsel %vm192, %v160, %v191
    %vm194 = vcmp.eq.f32.partialorder %v160, 0.0
    %v195 = vand.u32 %v160, 2147483648
    %v196 = vsel %vm194, %v195, %v193
    %v197 = vadd.f32 %v196, 0.0
    %v198 = vrsqrt.pop %v168
    %v199 = vmul.f32 %v198, %v168
    %v200 = vmul.f32 %v199, %v198
    %v201 = vmul.f32 0.5, %v200
    %v202 = vsub.f32 1.5, %v201
    %v203 = vmul.f32 %v198, %v202
    %v204 = vmul.f32 %v168, %v203
    %vm205 = vcmp.eq.f32.partialorder %v168, inf
    %v206 = vsel %vm205, %v168, %v204
    %vm207 = vcmp.eq.f32.partialorder %v168, 0.0
    %v208 = vand.u32 %v168, 2147483648
    %v209 = vsel %vm207, %v208, %v206
    %v210 = vadd.f32 %v209, 0.0
    %v211 = vrsqrt.pop %v176
    %v212 = vmul.f32 %v211, %v176
    %v213 = vmul.f32 %v212, %v211
    %v214 = vmul.f32 0.5, %v213
    %v215 = vsub.f32 1.5, %v214
    %v216 = vmul.f32 %v211, %v215
    %v217 = vmul.f32 %v176, %v216
    %vm218 = vcmp.eq.f32.partialorder %v176, inf
    %v219 = vsel %vm218, %v176, %v217
    %vm220 = vcmp.eq.f32.partialorder %v176, 0.0
    %v221 = vand.u32 %v176, 2147483648
    %v222 = vsel %vm220, %v221, %v219
    %v223 = vadd.f32 %v222, 0.0
    %v224 = vrsqrt.pop %v184
    %v225 = vmul.f32 %v224, %v184
    %v226 = vmul.f32 %v225, %v224
    %v227 = vmul.f32 0.5, %v226
    %v228 = vsub.f32 1.5, %v227
    %v229 = vmul.f32 %v224, %v228
    %v230 = vmul.f32 %v184, %v229
    %vm231 = vcmp.eq.f32.partialorder %v184, inf
    %v232 = vsel %vm231, %v184, %v230
    %vm233 = vcmp.eq.f32.partialorder %v184, 0.0
    %v234 = vand.u32 %v184, 2147483648
    %v235 = vsel %vm233, %v234, %v232
    %v236 = vadd.f32 %v235, 0.0
    %s237 = sadd.s32 0, 8
    %s238 = scalar_lea.vmem [#allocation2], %s237
    %v239 = vld [vmem:[%s238] sm:$0xff]
    %v240 = vstv %s68
    %v241 = vsub.f32 %v239, %v240
    %v242 = vmul.f32 %v241, %v241
    %v243 = vadd.f32 %v242, 0.0
    %v244 = vstv %s71
    %v245 = vsub.f32 %v239, %v244
    %v246 = vmul.f32 %v245, %v245
    %v247 = vadd.f32 %v246, 0.0
    %v248 = vstv %s74
    %v249 = vsub.f32 %v239, %v248
    %v250 = vmul.f32 %v249, %v249
    %v251 = vadd.f32 %v250, 0.0
    %v252 = vstv %s77
    %v253 = vsub.f32 %v239, %v252
    %v254 = vmul.f32 %v253, %v253
    %v255 = vadd.f32 %v254, 0.0
    %v256 = vstv %s69
    %v257 = vsub.f32 %v239, %v256
    %v258 = vmul.f32 %v257, %v257
    %260 = vrot.lane.b32.xlu0 %v258, 127
    %v261 = vpop.permute.xlu0 %260
    %v263 = vadd.f32 %v243, %v261
    %v264 = vstv %s72
    %v265 = vsub.f32 %v239, %v264
    %v266 = vmul.f32 %v265, %v265
    %268 = vrot.lane.b32.xlu0 %v266, 127
    %v269 = vpop.permute.xlu0 %268
    %v271 = vadd.f32 %v247, %v269
    %v272 = vstv %s75
    %v273 = vsub.f32 %v239, %v272
    %v274 = vmul.f32 %v273, %v273
    %276 = vrot.lane.b32.xlu0 %v274, 127
    %v277 = vpop.permute.xlu0 %276
    %v279 = vadd.f32 %v251, %v277
    %v280 = vstv %s78
    %v281 = vsub.f32 %v239, %v280
    %v282 = vmul.f32 %v281, %v281
    %284 = vrot.lane.b32.xlu0 %v282, 127
    %v285 = vpop.permute.xlu0 %284
    %v287 = vadd.f32 %v255, %v285
    %v288 = vstv %s70
    %v289 = vsub.f32 %v239, %v288
    %v290 = vmul.f32 %v289, %v289
    %292 = vrot.lane.b32.xlu0 %v290, 126
    %v293 = vpop.permute.xlu0 %292
    %v295 = vadd.f32 %v263, %v293
    %v296 = vstv %s73
    %v297 = vsub.f32 %v239, %v296
    %v298 = vmul.f32 %v297, %v297
    %300 = vrot.lane.b32.xlu0 %v298, 126
    %v301 = vpop.permute.xlu0 %300
    %v303 = vadd.f32 %v271, %v301
    %v304 = vstv %s76
    %v305 = vsub.f32 %v239, %v304
    %v306 = vmul.f32 %v305, %v305
    %308 = vrot.lane.b32.xlu0 %v306, 126
    %v309 = vpop.permute.xlu0 %308
    %v311 = vadd.f32 %v279, %v309
    %v312 = vstv %s79
    %v313 = vsub.f32 %v239, %v312
    %v314 = vmul.f32 %v313, %v313
    %316 = vrot.lane.b32.xlu0 %v314, 126
    %v317 = vpop.permute.xlu0 %316
    %v319 = vadd.f32 %v287, %v317
    %v320 = vrsqrt.pop %v295
    %v321 = vmul.f32 %v320, %v295
    %v322 = vmul.f32 %v321, %v320
    %v323 = vmul.f32 0.5, %v322
    %v324 = vsub.f32 1.5, %v323
    %v325 = vmul.f32 %v320, %v324
    %v326 = vmul.f32 %v295, %v325
    %vm327 = vcmp.eq.f32.partialorder %v295, inf
    %v328 = vsel %vm327, %v295, %v326
    %vm329 = vcmp.eq.f32.partialorder %v295, 0.0
    %v330 = vand.u32 %v295, 2147483648
    %v331 = vsel %vm329, %v330, %v328
    %v332 = vadd.f32 %v197, %v331
    %v333 = vrsqrt.pop %v303
    %v334 = vmul.f32 %v333, %v303
    %v335 = vmul.f32 %v334, %v333
    %v336 = vmul.f32 0.5, %v335
    %v337 = vsub.f32 1.5, %v336
    %v338 = vmul.f32 %v333, %v337
    %v339 = vmul.f32 %v303, %v338
    %vm340 = vcmp.eq.f32.partialorder %v303, inf
    %v341 = vsel %vm340, %v303, %v339
    %vm342 = vcmp.eq.f32.partialorder %v303, 0.0
    %v343 = vand.u32 %v303, 2147483648
    %v344 = vsel %vm342, %v343, %v341
    %v345 = vadd.f32 %v210, %v344
    %v346 = vrsqrt.pop %v311
    %v347 = vmul.f32 %v346, %v311
    %v348 = vmul.f32 %v347, %v346
    %v349 = vmul.f32 0.5, %v348
    %v350 = vsub.f32 1.5, %v349
    %v351 = vmul.f32 %v346, %v350
    %v352 = vmul.f32 %v311, %v351
    %vm353 = vcmp.eq.f32.partialorder %v311, inf
    %v354 = vsel %vm353, %v311, %v352
    %vm355 = vcmp.eq.f32.partialorder %v311, 0.0
    %v356 = vand.u32 %v311, 2147483648
    %v357 = vsel %vm355, %v356, %v354
    %v358 = vadd.f32 %v223, %v357
    %v359 = vrsqrt.pop %v319
    %v360 = vmul.f32 %v359, %v319
    %v361 = vmul.f32 %v360, %v359
    %v362 = vmul.f32 0.5, %v361
    %v363 = vsub.f32 1.5, %v362
    %v364 = vmul.f32 %v359, %v363
    %v365 = vmul.f32 %v319, %v364
    %vm366 = vcmp.eq.f32.partialorder %v319, inf
    %v367 = vsel %vm366, %v319, %v365
    %vm368 = vcmp.eq.f32.partialorder %v319, 0.0
    %v369 = vand.u32 %v319, 2147483648
    %v370 = vsel %vm368, %v369, %v367
    %v371 = vadd.f32 %v236, %v370
    %s372 = sadd.s32 0, 16
    %s373 = scalar_lea.vmem [#allocation2], %s372
    %v374 = vld [vmem:[%s373] sm:$0xff]
    %v375 = vstv %s80
    %v376 = vsub.f32 %v374, %v375
    %v377 = vmul.f32 %v376, %v376
    %v378 = vadd.f32 %v377, 0.0
    %v379 = vstv %s83
    %v380 = vsub.f32 %v374, %v379
    %v381 = vmul.f32 %v380, %v380
    %v382 = vadd.f32 %v381, 0.0
    %v383 = vstv %s86
    %v384 = vsub.f32 %v374, %v383
    %v385 = vmul.f32 %v384, %v384
    %v386 = vadd.f32 %v385, 0.0
    %v387 = vstv %s89
    %v388 = vsub.f32 %v374, %v387
    %v389 = vmul.f32 %v388, %v388
    %v390 = vadd.f32 %v389, 0.0
    %v391 = vstv %s81
    %v392 = vsub.f32 %v374, %v391
    %v393 = vmul.f32 %v392, %v392
    %395 = vrot.lane.b32.xlu0 %v393, 127
    %v396 = vpop.permute.xlu0 %395
    %v398 = vadd.f32 %v378, %v396
    %v399 = vstv %s84
    %v400 = vsub.f32 %v374, %v399
    %v401 = vmul.f32 %v400, %v400
    %403 = vrot.lane.b32.xlu0 %v401, 127
    %v404 = vpop.permute.xlu0 %403
    %v406 = vadd.f32 %v382, %v404
    %v407 = vstv %s87
    %v408 = vsub.f32 %v374, %v407
    %v409 = vmul.f32 %v408, %v408
    %411 = vrot.lane.b32.xlu0 %v409, 127
    %v412 = vpop.permute.xlu0 %411
    %v414 = vadd.f32 %v386, %v412
    %v415 = vstv %s90
    %v416 = vsub.f32 %v374, %v415
    %v417 = vmul.f32 %v416, %v416
    %419 = vrot.lane.b32.xlu0 %v417, 127
    %v420 = vpop.permute.xlu0 %419
    %v422 = vadd.f32 %v390, %v420
    %v423 = vstv %s82
    %v424 = vsub.f32 %v374, %v423
    %v425 = vmul.f32 %v424, %v424
    %427 = vrot.lane.b32.xlu0 %v425, 126
    %v428 = vpop.permute.xlu0 %427
    %v430 = vadd.f32 %v398, %v428
    %v431 = vstv %s85
    %v432 = vsub.f32 %v374, %v431
    %v433 = vmul.f32 %v432, %v432
    %435 = vrot.lane.b32.xlu0 %v433, 126
    %v436 = vpop.permute.xlu0 %435
    %v438 = vadd.f32 %v406, %v436
    %v439 = vstv %s88
    %v440 = vsub.f32 %v374, %v439
    %v441 = vmul.f32 %v440, %v440
    %443 = vrot.lane.b32.xlu0 %v441, 126
    %v444 = vpop.permute.xlu0 %443
    %v446 = vadd.f32 %v414, %v444
    %v447 = vstv %s91
    %v448 = vsub.f32 %v374, %v447
    %v449 = vmul.f32 %v448, %v448
    %451 = vrot.lane.b32.xlu0 %v449, 126
    %v452 = vpop.permute.xlu0 %451
    %v454 = vadd.f32 %v422, %v452
    %v455 = vrsqrt.pop %v430
    %v456 = vmul.f32 %v455, %v430
    %v457 = vmul.f32 %v456, %v455
    %v458 = vmul.f32 0.5, %v457
    %v459 = vsub.f32 1.5, %v458
    %v460 = vmul.f32 %v455, %v459
    %v461 = vmul.f32 %v430, %v460
    %vm462 = vcmp.eq.f32.partialorder %v430, inf
    %v463 = vsel %vm462, %v430, %v461
    %vm464 = vcmp.eq.f32.partialorder %v430, 0.0
    %v465 = vand.u32 %v430, 2147483648
    %v466 = vsel %vm464, %v465, %v463
    %v467 = vadd.f32 %v332, %v466
    %v468 = vrsqrt.pop %v438
    %v469 = vmul.f32 %v468, %v438
    %v470 = vmul.f32 %v469, %v468
    %v471 = vmul.f32 0.5, %v470
    %v472 = vsub.f32 1.5, %v471
    %v473 = vmul.f32 %v468, %v472
    %v474 = vmul.f32 %v438, %v473
    %vm475 = vcmp.eq.f32.partialorder %v438, inf
    %v476 = vsel %vm475, %v438, %v474
    %vm477 = vcmp.eq.f32.partialorder %v438, 0.0
    %v478 = vand.u32 %v438, 2147483648
    %v479 = vsel %vm477, %v478, %v476
    %v480 = vadd.f32 %v345, %v479
    %v481 = vrsqrt.pop %v446
    %v482 = vmul.f32 %v481, %v446
    %v483 = vmul.f32 %v482, %v481
    %v484 = vmul.f32 0.5, %v483
    %v485 = vsub.f32 1.5, %v484
    %v486 = vmul.f32 %v481, %v485
    %v487 = vmul.f32 %v446, %v486
    %vm488 = vcmp.eq.f32.partialorder %v446, inf
    %v489 = vsel %vm488, %v446, %v487
    %vm490 = vcmp.eq.f32.partialorder %v446, 0.0
    %v491 = vand.u32 %v446, 2147483648
    %v492 = vsel %vm490, %v491, %v489
    %v493 = vadd.f32 %v358, %v492
    %v494 = vrsqrt.pop %v454
    %v495 = vmul.f32 %v494, %v454
    %v496 = vmul.f32 %v495, %v494
    %v497 = vmul.f32 0.5, %v496
    %v498 = vsub.f32 1.5, %v497
    %v499 = vmul.f32 %v494, %v498
    %v500 = vmul.f32 %v454, %v499
    %vm501 = vcmp.eq.f32.partialorder %v454, inf
    %v502 = vsel %vm501, %v454, %v500
    %vm503 = vcmp.eq.f32.partialorder %v454, 0.0
    %v504 = vand.u32 %v454, 2147483648
    %v505 = vsel %vm503, %v504, %v502
    %v506 = vadd.f32 %v371, %v505
    %s507 = sadd.s32 0, 24
    %s508 = scalar_lea.vmem [#allocation2], %s507
    %v509 = vld [vmem:[%s508] sm:$0xff]
    %v510 = vstv %s92
    %v511 = vsub.f32 %v509, %v510
    %v512 = vmul.f32 %v511, %v511
    %v513 = vadd.f32 %v512, 0.0
    %v514 = vstv %s95
    %v515 = vsub.f32 %v509, %v514
    %v516 = vmul.f32 %v515, %v515
    %v517 = vadd.f32 %v516, 0.0
    %v518 = vstv %s98
    %v519 = vsub.f32 %v509, %v518
    %v520 = vmul.f32 %v519, %v519
    %v521 = vadd.f32 %v520, 0.0
    %v522 = vstv %s101
    %v523 = vsub.f32 %v509, %v522
    %v524 = vmul.f32 %v523, %v523
    %v525 = vadd.f32 %v524, 0.0
    %v526 = vstv %s93
    %v527 = vsub.f32 %v509, %v526
    %v528 = vmul.f32 %v527, %v527
    %530 = vrot.lane.b32.xlu0 %v528, 127
    %v531 = vpop.permute.xlu0 %530
    %v533 = vadd.f32 %v513, %v531
    %v534 = vstv %s96
    %v535 = vsub.f32 %v509, %v534
    %v536 = vmul.f32 %v535, %v535
    %538 = vrot.lane.b32.xlu0 %v536, 127
    %v539 = vpop.permute.xlu0 %538
    %v541 = vadd.f32 %v517, %v539
    %v542 = vstv %s99
    %v543 = vsub.f32 %v509, %v542
    %v544 = vmul.f32 %v543, %v543
    %546 = vrot.lane.b32.xlu0 %v544, 127
    %v547 = vpop.permute.xlu0 %546
    %v549 = vadd.f32 %v521, %v547
    %v550 = vstv %s102
    %v551 = vsub.f32 %v509, %v550
    %v552 = vmul.f32 %v551, %v551
    %554 = vrot.lane.b32.xlu0 %v552, 127
    %v555 = vpop.permute.xlu0 %554
    %v557 = vadd.f32 %v525, %v555
    %v558 = vstv %s94
    %v559 = vsub.f32 %v509, %v558
    %v560 = vmul.f32 %v559, %v559
    %562 = vrot.lane.b32.xlu0 %v560, 126
    %v563 = vpop.permute.xlu0 %562
    %v565 = vadd.f32 %v533, %v563
    %v566 = vstv %s97
    %v567 = vsub.f32 %v509, %v566
    %v568 = vmul.f32 %v567, %v567
    %570 = vrot.lane.b32.xlu0 %v568, 126
    %v571 = vpop.permute.xlu0 %570
    %v573 = vadd.f32 %v541, %v571
    %v574 = vstv %s100
    %v575 = vsub.f32 %v509, %v574
    %v576 = vmul.f32 %v575, %v575
    %578 = vrot.lane.b32.xlu0 %v576, 126
    %v579 = vpop.permute.xlu0 %578
    %v581 = vadd.f32 %v549, %v579
    %v582 = vstv %s103
    %v583 = vsub.f32 %v509, %v582
    %v584 = vmul.f32 %v583, %v583
    %586 = vrot.lane.b32.xlu0 %v584, 126
    %v587 = vpop.permute.xlu0 %586
    %v589 = vadd.f32 %v557, %v587
    %v590 = vrsqrt.pop %v565
    %v591 = vmul.f32 %v590, %v565
    %v592 = vmul.f32 %v591, %v590
    %v593 = vmul.f32 0.5, %v592
    %v594 = vsub.f32 1.5, %v593
    %v595 = vmul.f32 %v590, %v594
    %v596 = vmul.f32 %v565, %v595
    %vm597 = vcmp.eq.f32.partialorder %v565, inf
    %v598 = vsel %vm597, %v565, %v596
    %vm599 = vcmp.eq.f32.partialorder %v565, 0.0
    %v600 = vand.u32 %v565, 2147483648
    %v601 = vsel %vm599, %v600, %v598
    %v602 = vadd.f32 %v467, %v601
    %v603 = vrsqrt.pop %v573
    %v604 = vmul.f32 %v603, %v573
    %v605 = vmul.f32 %v604, %v603
    %v606 = vmul.f32 0.5, %v605
    %v607 = vsub.f32 1.5, %v606
    %v608 = vmul.f32 %v603, %v607
    %v609 = vmul.f32 %v573, %v608
    %vm610 = vcmp.eq.f32.partialorder %v573, inf
    %v611 = vsel %vm610, %v573, %v609
    %vm612 = vcmp.eq.f32.partialorder %v573, 0.0
    %v613 = vand.u32 %v573, 2147483648
    %v614 = vsel %vm612, %v613, %v611
    %v615 = vadd.f32 %v480, %v614
    %v616 = vrsqrt.pop %v581
    %v617 = vmul.f32 %v616, %v581
    %v618 = vmul.f32 %v617, %v616
    %v619 = vmul.f32 0.5, %v618
    %v620 = vsub.f32 1.5, %v619
    %v621 = vmul.f32 %v616, %v620
    %v622 = vmul.f32 %v581, %v621
    %vm623 = vcmp.eq.f32.partialorder %v581, inf
    %v624 = vsel %vm623, %v581, %v622
    %vm625 = vcmp.eq.f32.partialorder %v581, 0.0
    %v626 = vand.u32 %v581, 2147483648
    %v627 = vsel %vm625, %v626, %v624
    %v628 = vadd.f32 %v493, %v627
    %v629 = vrsqrt.pop %v589
    %v630 = vmul.f32 %v629, %v589
    %v631 = vmul.f32 %v630, %v629
    %v632 = vmul.f32 0.5, %v631
    %v633 = vsub.f32 1.5, %v632
    %v634 = vmul.f32 %v629, %v633
    %v635 = vmul.f32 %v589, %v634
    %vm636 = vcmp.eq.f32.partialorder %v589, inf
    %v637 = vsel %vm636, %v589, %v635
    %vm638 = vcmp.eq.f32.partialorder %v589, 0.0
    %v639 = vand.u32 %v589, 2147483648
    %v640 = vsel %vm638, %v639, %v637
    %v641 = vadd.f32 %v506, %v640
    %vm642 = vcmask 113664
    %v643 = vsel %vm642, %v602, inf
    %644 = vmin.xlane.f32.xlu0 %v643
    %v645 = vpop.xlane.xlu0 %644
    %v646 = vsel %vm642, %v615, inf
    %647 = vmin.xlane.f32.xlu0 %v646
    %v648 = vpop.xlane.xlu0 %647
    %v649 = vsel %vm642, %v628, inf
    %650 = vmin.xlane.f32.xlu0 %v649
    %v651 = vpop.xlane.xlu0 %650
    %v652 = vsel %vm642, %v641, inf
    %653 = vmin.xlane.f32.xlu0 %v652
    %v654 = vpop.xlane.xlu0 %653
    %vm655 = vcmask 7168
    %656 = vst.msk [vmem:[#allocation9] sm:$0xff] %vm655, %v645
    %vm657 = vcmask 15368
    %658 = vst.msk [vmem:[#allocation9] sm:$0xff] %vm657, %v648
    %vm659 = vcmask 23568
    %660 = vst.msk [vmem:[#allocation9] sm:$0xff] %vm659, %v651
    %vm661 = vcmask 31768
    %662 = vst.msk [vmem:[#allocation9] sm:$0xff] %vm661, %v654
    %s663 = sld [smem:[#allocation8]]
    %s664 = sld [smem:[#allocation8 + $0x1]]
    %s665 = sld [smem:[#allocation8 + $0x2]]
    %s666 = sld [smem:[#allocation8 + $0x3]]
    %s667 = sld [smem:[#allocation8 + $0x4]]
    %s668 = sld [smem:[#allocation8 + $0x5]]
    %s669 = sld [smem:[#allocation8 + $0x6]]
    %s670 = sld [smem:[#allocation8 + $0x7]]
    %s671 = sld [smem:[#allocation8 + $0x8]]
    %s672 = sld [smem:[#allocation8 + $0x9]]
    %s673 = sld [smem:[#allocation8 + $0xa]]
    %s674 = sld [smem:[#allocation8 + $0xb]]
    %s675 = sld [smem:[#allocation8 + $0xc]]
    %s676 = sld [smem:[#allocation8 + $0xd]]
    %s677 = sld [smem:[#allocation8 + $0xe]]
    %s678 = sld [smem:[#allocation8 + $0xf]]
    %s679 = sld [smem:[#allocation8 + $0x10]]
    %s680 = sld [smem:[#allocation8 + $0x11]]
    %s681 = sld [smem:[#allocation8 + $0x12]]
    %s682 = sld [smem:[#allocation8 + $0x13]]
    %s683 = sld [smem:[#allocation8 + $0x14]]
    %s684 = sld [smem:[#allocation8 + $0x15]]
    %s685 = sld [smem:[#allocation8 + $0x16]]
    %s686 = sld [smem:[#allocation8 + $0x17]]
    %s687 = sld [smem:[#allocation8 + $0x18]]
    %s688 = sld [smem:[#allocation8 + $0x19]]
    %s689 = sld [smem:[#allocation8 + $0x1a]]
    %s690 = sld [smem:[#allocation8 + $0x1b]]
    %s691 = sld [smem:[#allocation8 + $0x1c]]
    %s692 = sld [smem:[#allocation8 + $0x1d]]
    %s693 = sld [smem:[#allocation8 + $0x1e]]
    %s694 = sld [smem:[#allocation8 + $0x1f]]
    %s695 = sld [smem:[#allocation8 + $0x20]]
    %s696 = sld [smem:[#allocation8 + $0x21]]
    %s697 = sld [smem:[#allocation8 + $0x22]]
    %s698 = sld [smem:[#allocation8 + $0x23]]
    %s699 = sld [smem:[#allocation8 + $0x24]]
    %s700 = sld [smem:[#allocation8 + $0x25]]
    %s701 = sld [smem:[#allocation8 + $0x26]]
    %s702 = sld [smem:[#allocation8 + $0x27]]
    %s703 = sld [smem:[#allocation8 + $0x28]]
    %s704 = sld [smem:[#allocation8 + $0x29]]
    %s705 = sld [smem:[#allocation8 + $0x2a]]
    %s706 = sld [smem:[#allocation8 + $0x2b]]
    %s707 = sld [smem:[#allocation8 + $0x2c]]
    %s708 = sld [smem:[#allocation8 + $0x2d]]
    %s709 = sld [smem:[#allocation8 + $0x2e]]
    %s710 = sld [smem:[#allocation8 + $0x2f]]
    %s711 = sld [smem:[#allocation8 + $0x30]]
    %s712 = sld [smem:[#allocation8 + $0x31]]
    %s713 = sld [smem:[#allocation8 + $0x32]]
    %s714 = sld [smem:[#allocation8 + $0x33]]
    %s715 = sld [smem:[#allocation8 + $0x34]]
    %s716 = sld [smem:[#allocation8 + $0x35]]
    %s717 = sld [smem:[#allocation8 + $0x36]]
    %s718 = sld [smem:[#allocation8 + $0x37]]
    %s719 = sld [smem:[#allocation8 + $0x38]]
    %s720 = sld [smem:[#allocation8 + $0x39]]
    %s721 = sld [smem:[#allocation8 + $0x3a]]
    %s722 = sld [smem:[#allocation8 + $0x3b]]
    %s723 = sld [smem:[#allocation8 + $0x3c]]
    %s724 = sld [smem:[#allocation8 + $0x3d]]
    %s725 = sld [smem:[#allocation8 + $0x3e]]
    %s726 = sld [smem:[#allocation8 + $0x3f]]
    %s727 = sld [smem:[#allocation8 + $0x40]]
    %s728 = sld [smem:[#allocation8 + $0x41]]
    %s729 = sld [smem:[#allocation8 + $0x42]]
    %s730 = sld [smem:[#allocation8 + $0x43]]
    %s731 = sld [smem:[#allocation8 + $0x44]]
    %s732 = sld [smem:[#allocation8 + $0x45]]
    %s733 = sld [smem:[#allocation8 + $0x46]]
    %s734 = sld [smem:[#allocation8 + $0x47]]
    %s735 = sld [smem:[#allocation8 + $0x48]]
    %s736 = sld [smem:[#allocation8 + $0x49]]
    %s737 = sld [smem:[#allocation8 + $0x4a]]
    %s738 = sld [smem:[#allocation8 + $0x4b]]
    %s739 = sld [smem:[#allocation8 + $0x4c]]
    %s740 = sld [smem:[#allocation8 + $0x4d]]
    %s741 = sld [smem:[#allocation8 + $0x4e]]
    %s742 = sld [smem:[#allocation8 + $0x4f]]
    %s743 = sld [smem:[#allocation8 + $0x50]]
    %s744 = sld [smem:[#allocation8 + $0x51]]
    %s745 = sld [smem:[#allocation8 + $0x52]]
    %s746 = sld [smem:[#allocation8 + $0x53]]
    %s747 = sld [smem:[#allocation8 + $0x54]]
    %s748 = sld [smem:[#allocation8 + $0x55]]
    %s749 = sld [smem:[#allocation8 + $0x56]]
    %s750 = sld [smem:[#allocation8 + $0x57]]
    %s751 = sld [smem:[#allocation8 + $0x58]]
    %s752 = sld [smem:[#allocation8 + $0x59]]
    %s753 = sld [smem:[#allocation8 + $0x5a]]
    %s754 = sld [smem:[#allocation8 + $0x5b]]
    %s755 = sld [smem:[#allocation8 + $0x5c]]
    %s756 = sld [smem:[#allocation8 + $0x5d]]
    %s757 = sld [smem:[#allocation8 + $0x5e]]
    %s758 = sld [smem:[#allocation8 + $0x5f]]
    %s759 = sld [smem:[#allocation8 + $0x60]]
    %s760 = sld [smem:[#allocation8 + $0x61]]
    %s761 = sld [smem:[#allocation8 + $0x62]]
    %s762 = sld [smem:[#allocation8 + $0x63]]
    %s763 = sld [smem:[#allocation8 + $0x64]]
    %s764 = sld [smem:[#allocation8 + $0x65]]
    %s765 = sld [smem:[#allocation8 + $0x66]]
    %s766 = sld [smem:[#allocation8 + $0x67]]
    %s767 = sld [smem:[#allocation8 + $0x68]]
    %s768 = sld [smem:[#allocation8 + $0x69]]
    %s769 = sld [smem:[#allocation8 + $0x6a]]
    %s770 = sld [smem:[#allocation8 + $0x6b]]
    %s771 = sld [smem:[#allocation8 + $0x6c]]
    %s772 = sld [smem:[#allocation8 + $0x6d]]
    %s773 = sld [smem:[#allocation8 + $0x6e]]
    %s774 = sld [smem:[#allocation8 + $0x6f]]
    %s775 = sld [smem:[#allocation8 + $0x70]]
    %s776 = sld [smem:[#allocation8 + $0x71]]
    %s777 = sld [smem:[#allocation8 + $0x72]]
    %s778 = sld [smem:[#allocation8 + $0x73]]
    %s779 = sld [smem:[#allocation8 + $0x74]]
    %s780 = sld [smem:[#allocation8 + $0x75]]
    %s781 = sld [smem:[#allocation8 + $0x76]]
    %s782 = sld [smem:[#allocation8 + $0x77]]
    %v783 = vld [vmem:[#allocation2] sm:$0xff]
    %v784 = vstv %s663
    %v785 = vsub.f32 %v783, %v784
    %v786 = vmul.f32 %v785, %v785
    %v787 = vadd.f32 %v786, 0.0
    %v788 = vstv %s668
    %v789 = vsub.f32 %v783, %v788
    %v790 = vmul.f32 %v789, %v789
    %v791 = vadd.f32 %v790, 0.0
    %v792 = vstv %s673
    %v793 = vsub.f32 %v783, %v792
    %v794 = vmul.f32 %v793, %v793
    %v795 = vadd.f32 %v794, 0.0
    %v796 = vstv %s678
    %v797 = vsub.f32 %v783, %v796
    %v798 = vmul.f32 %v797, %v797
    %v799 = vadd.f32 %v798, 0.0
    %v800 = vstv %s683
    %v801 = vsub.f32 %v783, %v800
    %v802 = vmul.f32 %v801, %v801
    %v803 = vadd.f32 %v802, 0.0
    %v804 = vstv %s688
    %v805 = vsub.f32 %v783, %v804
    %v806 = vmul.f32 %v805, %v805
    %v807 = vadd.f32 %v806, 0.0
    %v808 = vstv %s664
    %v809 = vsub.f32 %v783, %v808
    %v810 = vmul.f32 %v809, %v809
    %812 = vrot.lane.b32.xlu0 %v810, 127
    %v813 = vpop.permute.xlu0 %812
    %v815 = vadd.f32 %v787, %v813
    %v816 = vstv %s669
    %v817 = vsub.f32 %v783, %v816
    %v818 = vmul.f32 %v817, %v817
    %820 = vrot.lane.b32.xlu0 %v818, 127
    %v821 = vpop.permute.xlu0 %820
    %v823 = vadd.f32 %v791, %v821
    %v824 = vstv %s674
    %v825 = vsub.f32 %v783, %v824
    %v826 = vmul.f32 %v825, %v825
    %828 = vrot.lane.b32.xlu0 %v826, 127
    %v829 = vpop.permute.xlu0 %828
    %v831 = vadd.f32 %v795, %v829
    %v832 = vstv %s679
    %v833 = vsub.f32 %v783, %v832
    %v834 = vmul.f32 %v833, %v833
    %836 = vrot.lane.b32.xlu0 %v834, 127
    %v837 = vpop.permute.xlu0 %836
    %v839 = vadd.f32 %v799, %v837
    %v840 = vstv %s684
    %v841 = vsub.f32 %v783, %v840
    %v842 = vmul.f32 %v841, %v841
    %844 = vrot.lane.b32.xlu0 %v842, 127
    %v845 = vpop.permute.xlu0 %844
    %v847 = vadd.f32 %v803, %v845
    %v848 = vstv %s689
    %v849 = vsub.f32 %v783, %v848
    %v850 = vmul.f32 %v849, %v849
    %852 = vrot.lane.b32.xlu0 %v850, 127
    %v853 = vpop.permute.xlu0 %852
    %v855 = vadd.f32 %v807, %v853
    %v856 = vstv %s665
    %v857 = vsub.f32 %v783, %v856
    %v858 = vmul.f32 %v857, %v857
    %860 = vrot.lane.b32.xlu0 %v858, 126
    %v861 = vpop.permute.xlu0 %860
    %v863 = vadd.f32 %v815, %v861
    %v864 = vstv %s670
    %v865 = vsub.f32 %v783, %v864
    %v866 = vmul.f32 %v865, %v865
    %868 = vrot.lane.b32.xlu0 %v866, 126
    %v869 = vpop.permute.xlu0 %868
    %v871 = vadd.f32 %v823, %v869
    %v872 = vstv %s675
    %v873 = vsub.f32 %v783, %v872
    %v874 = vmul.f32 %v873, %v873
    %876 = vrot.lane.b32.xlu0 %v874, 126
    %v877 = vpop.permute.xlu0 %876
    %v879 = vadd.f32 %v831, %v877
    %v880 = vstv %s680
    %v881 = vsub.f32 %v783, %v880
    %v882 = vmul.f32 %v881, %v881
    %884 = vrot.lane.b32.xlu0 %v882, 126
    %v885 = vpop.permute.xlu0 %884
    %v887 = vadd.f32 %v839, %v885
    %v888 = vstv %s685
    %v889 = vsub.f32 %v783, %v888
    %v890 = vmul.f32 %v889, %v889
    %892 = vrot.lane.b32.xlu0 %v890, 126
    %v893 = vpop.permute.xlu0 %892
    %v895 = vadd.f32 %v847, %v893
    %v896 = vstv %s690
    %v897 = vsub.f32 %v783, %v896
    %v898 = vmul.f32 %v897, %v897
    %900 = vrot.lane.b32.xlu0 %v898, 126
    %v901 = vpop.permute.xlu0 %900
    %v903 = vadd.f32 %v855, %v901
    %v904 = vstv %s666
    %v905 = vsub.f32 %v783, %v904
    %v906 = vmul.f32 %v905, %v905
    %908 = vrot.lane.b32.xlu0 %v906, 125
    %v909 = vpop.permute.xlu0 %908
    %v911 = vadd.f32 %v863, %v909
    %v912 = vstv %s671
    %v913 = vsub.f32 %v783, %v912
    %v914 = vmul.f32 %v913, %v913
    %916 = vrot.lane.b32.xlu0 %v914, 125
    %v917 = vpop.permute.xlu0 %916
    %v919 = vadd.f32 %v871, %v917
    %v920 = vstv %s676
    %v921 = vsub.f32 %v783, %v920
    %v922 = vmul.f32 %v921, %v921
    %924 = vrot.lane.b32.xlu0 %v922, 125
    %v925 = vpop.permute.xlu0 %924
    %v927 = vadd.f32 %v879, %v925
    %v928 = vstv %s681
    %v929 = vsub.f32 %v783, %v928
    %v930 = vmul.f32 %v929, %v929
    %932 = vrot.lane.b32.xlu0 %v930, 125
    %v933 = vpop.permute.xlu0 %932
    %v935 = vadd.f32 %v887, %v933
    %v936 = vstv %s686
    %v937 = vsub.f32 %v783, %v936
    %v938 = vmul.f32 %v937, %v937
    %940 = vrot.lane.b32.xlu0 %v938, 125
    %v941 = vpop.permute.xlu0 %940
    %v943 = vadd.f32 %v895, %v941
    %v944 = vstv %s691
    %v945 = vsub.f32 %v783, %v944
    %v946 = vmul.f32 %v945, %v945
    %948 = vrot.lane.b32.xlu0 %v946, 125
    %v949 = vpop.permute.xlu0 %948
    %v951 = vadd.f32 %v903, %v949
    %v952 = vstv %s667
    %v953 = vsub.f32 %v783, %v952
    %v954 = vmul.f32 %v953, %v953
    %956 = vrot.lane.b32.xlu0 %v954, 124
    %v957 = vpop.permute.xlu0 %956
    %v959 = vadd.f32 %v911, %v957
    %v960 = vstv %s672
    %v961 = vsub.f32 %v783, %v960
    %v962 = vmul.f32 %v961, %v961
    %964 = vrot.lane.b32.xlu0 %v962, 124
    %v965 = vpop.permute.xlu0 %964
    %v967 = vadd.f32 %v919, %v965
    %v968 = vstv %s677
    %v969 = vsub.f32 %v783, %v968
    %v970 = vmul.f32 %v969, %v969
    %972 = vrot.lane.b32.xlu0 %v970, 124
    %v973 = vpop.permute.xlu0 %972
    %v975 = vadd.f32 %v927, %v973
    %v976 = vstv %s682
    %v977 = vsub.f32 %v783, %v976
    %v978 = vmul.f32 %v977, %v977
    %980 = vrot.lane.b32.xlu0 %v978, 124
    %v981 = vpop.permute.xlu0 %980
    %v983 = vadd.f32 %v935, %v981
    %v984 = vstv %s687
    %v985 = vsub.f32 %v783, %v984
    %v986 = vmul.f32 %v985, %v985
    %988 = vrot.lane.b32.xlu0 %v986, 124
    %v989 = vpop.permute.xlu0 %988
    %v991 = vadd.f32 %v943, %v989
    %v992 = vstv %s692
    %v993 = vsub.f32 %v783, %v992
    %v994 = vmul.f32 %v993, %v993
    %996 = vrot.lane.b32.xlu0 %v994, 124
    %v997 = vpop.permute.xlu0 %996
    %v999 = vadd.f32 %v951, %v997
    %v1000 = vrsqrt.pop %v959
    %v1001 = vmul.f32 %v1000, %v959
    %v1002 = vmul.f32 %v1001, %v1000
    %v1003 = vmul.f32 0.5, %v1002
    %v1004 = vsub.f32 1.5, %v1003
    %v1005 = vmul.f32 %v1000, %v1004
    %v1006 = vmul.f32 %v959, %v1005
    %vm1007 = vcmp.eq.f32.partialorder %v959, inf
    %v1008 = vsel %vm1007, %v959, %v1006
    %vm1009 = vcmp.eq.f32.partialorder %v959, 0.0
    %v1010 = vand.u32 %v959, 2147483648
    %v1011 = vsel %vm1009, %v1010, %v1008
    %v1012 = vadd.f32 %v1011, 0.0
    %v1013 = vrsqrt.pop %v967
    %v1014 = vmul.f32 %v1013, %v967
    %v1015 = vmul.f32 %v1014, %v1013
    %v1016 = vmul.f32 0.5, %v1015
    %v1017 = vsub.f32 1.5, %v1016
    %v1018 = vmul.f32 %v1013, %v1017
    %v1019 = vmul.f32 %v967, %v1018
    %vm1020 = vcmp.eq.f32.partialorder %v967, inf
    %v1021 = vsel %vm1020, %v967, %v1019
    %vm1022 = vcmp.eq.f32.partialorder %v967, 0.0
    %v1023 = vand.u32 %v967, 2147483648
    %v1024 = vsel %vm1022, %v1023, %v1021
    %v1025 = vadd.f32 %v1024, 0.0
    %v1026 = vrsqrt.pop %v975
    %v1027 = vmul.f32 %v1026, %v975
    %v1028 = vmul.f32 %v1027, %v1026
    %v1029 = vmul.f32 0.5, %v1028
    %v1030 = vsub.f32 1.5, %v1029
    %v1031 = vmul.f32 %v1026, %v1030
    %v1032 = vmul.f32 %v975, %v1031
    %vm1033 = vcmp.eq.f32.partialorder %v975, inf
    %v1034 = vsel %vm1033, %v975, %v1032
    %vm1035 = vcmp.eq.f32.partialorder %v975, 0.0
    %v1036 = vand.u32 %v975, 2147483648
    %v1037 = vsel %vm1035, %v1036, %v1034
    %v1038 = vadd.f32 %v1037, 0.0
    %v1039 = vrsqrt.pop %v983
    %v1040 = vmul.f32 %v1039, %v983
    %v1041 = vmul.f32 %v1040, %v1039
    %v1042 = vmul.f32 0.5, %v1041
    %v1043 = vsub.f32 1.5, %v1042
    %v1044 = vmul.f32 %v1039, %v1043
    %v1045 = vmul.f32 %v983, %v1044
    %vm1046 = vcmp.eq.f32.partialorder %v983, inf
    %v1047 = vsel %vm1046, %v983, %v1045
    %vm1048 = vcmp.eq.f32.partialorder %v983, 0.0
    %v1049 = vand.u32 %v983, 2147483648
    %v1050 = vsel %vm1048, %v1049, %v1047
    %v1051 = vadd.f32 %v1050, 0.0
    %v1052 = vrsqrt.pop %v991
    %v1053 = vmul.f32 %v1052, %v991
    %v1054 = vmul.f32 %v1053, %v1052
    %v1055 = vmul.f32 0.5, %v1054
    %v1056 = vsub.f32 1.5, %v1055
    %v1057 = vmul.f32 %v1052, %v1056
    %v1058 = vmul.f32 %v991, %v1057
    %vm1059 = vcmp.eq.f32.partialorder %v991, inf
    %v1060 = vsel %vm1059, %v991, %v1058
    %vm1061 = vcmp.eq.f32.partialorder %v991, 0.0
    %v1062 = vand.u32 %v991, 2147483648
    %v1063 = vsel %vm1061, %v1062, %v1060
    %v1064 = vadd.f32 %v1063, 0.0
    %v1065 = vrsqrt.pop %v999
    %v1066 = vmul.f32 %v1065, %v999
    %v1067 = vmul.f32 %v1066, %v1065
    %v1068 = vmul.f32 0.5, %v1067
    %v1069 = vsub.f32 1.5, %v1068
    %v1070 = vmul.f32 %v1065, %v1069
    %v1071 = vmul.f32 %v999, %v1070
    %vm1072 = vcmp.eq.f32.partialorder %v999, inf
    %v1073 = vsel %vm1072, %v999, %v1071
    %vm1074 = vcmp.eq.f32.partialorder %v999, 0.0
    %v1075 = vand.u32 %v999, 2147483648
    %v1076 = vsel %vm1074, %v1075, %v1073
    %v1077 = vadd.f32 %v1076, 0.0
    %v1078 = vld [vmem:[%s238] sm:$0xff]
    %v1079 = vstv %s693
    %v1080 = vsub.f32 %v1078, %v1079
    %v1081 = vmul.f32 %v1080, %v1080
    %v1082 = vadd.f32 %v1081, 0.0
    %v1083 = vstv %s698
    %v1084 = vsub.f32 %v1078, %v1083
    %v1085 = vmul.f32 %v1084, %v1084
    %v1086 = vadd.f32 %v1085, 0.0
    %v1087 = vstv %s703
    %v1088 = vsub.f32 %v1078, %v1087
    %v1089 = vmul.f32 %v1088, %v1088
    %v1090 = vadd.f32 %v1089, 0.0
    %v1091 = vstv %s708
    %v1092 = vsub.f32 %v1078, %v1091
    %v1093 = vmul.f32 %v1092, %v1092
    %v1094 = vadd.f32 %v1093, 0.0
    %v1095 = vstv %s713
    %v1096 = vsub.f32 %v1078, %v1095
    %v1097 = vmul.f32 %v1096, %v1096
    %v1098 = vadd.f32 %v1097, 0.0
    %v1099 = vstv %s718
    %v1100 = vsub.f32 %v1078, %v1099
    %v1101 = vmul.f32 %v1100, %v1100
    %v1102 = vadd.f32 %v1101, 0.0
    %v1103 = vstv %s694
    %v1104 = vsub.f32 %v1078, %v1103
    %v1105 = vmul.f32 %v1104, %v1104
    %1107 = vrot.lane.b32.xlu0 %v1105, 127
    %v1108 = vpop.permute.xlu0 %1107
    %v1110 = vadd.f32 %v1082, %v1108
    %v1111 = vstv %s699
    %v1112 = vsub.f32 %v1078, %v1111
    %v1113 = vmul.f32 %v1112, %v1112
    %1115 = vrot.lane.b32.xlu0 %v1113, 127
    %v1116 = vpop.permute.xlu0 %1115
    %v1118 = vadd.f32 %v1086, %v1116
    %v1119 = vstv %s704
    %v1120 = vsub.f32 %v1078, %v1119
    %v1121 = vmul.f32 %v1120, %v1120
    %1123 = vrot.lane.b32.xlu0 %v1121, 127
    %v1124 = vpop.permute.xlu0 %1123
    %v1126 = vadd.f32 %v1090, %v1124
    %v1127 = vstv %s709
    %v1128 = vsub.f32 %v1078, %v1127
    %v1129 = vmul.f32 %v1128, %v1128
    %1131 = vrot.lane.b32.xlu0 %v1129, 127
    %v1132 = vpop.permute.xlu0 %1131
    %v1134 = vadd.f32 %v1094, %v1132
    %v1135 = vstv %s714
    %v1136 = vsub.f32 %v1078, %v1135
    %v1137 = vmul.f32 %v1136, %v1136
    %1139 = vrot.lane.b32.xlu0 %v1137, 127
    %v1140 = vpop.permute.xlu0 %1139
    %v1142 = vadd.f32 %v1098, %v1140
    %v1143 = vstv %s719
    %v1144 = vsub.f32 %v1078, %v1143
    %v1145 = vmul.f32 %v1144, %v1144
    %1147 = vrot.lane.b32.xlu0 %v1145, 127
    %v1148 = vpop.permute.xlu0 %1147
    %v1150 = vadd.f32 %v1102, %v1148
    %v1151 = vstv %s695
    %v1152 = vsub.f32 %v1078, %v1151
    %v1153 = vmul.f32 %v1152, %v1152
    %1155 = vrot.lane.b32.xlu0 %v1153, 126
    %v1156 = vpop.permute.xlu0 %1155
    %v1158 = vadd.f32 %v1110, %v1156
    %v1159 = vstv %s700
    %v1160 = vsub.f32 %v1078, %v1159
    %v1161 = vmul.f32 %v1160, %v1160
    %1163 = vrot.lane.b32.xlu0 %v1161, 126
    %v1164 = vpop.permute.xlu0 %1163
    %v1166 = vadd.f32 %v1118, %v1164
    %v1167 = vstv %s705
    %v1168 = vsub.f32 %v1078, %v1167
    %v1169 = vmul.f32 %v1168, %v1168
    %1171 = vrot.lane.b32.xlu0 %v1169, 126
    %v1172 = vpop.permute.xlu0 %1171
    %v1174 = vadd.f32 %v1126, %v1172
    %v1175 = vstv %s710
    %v1176 = vsub.f32 %v1078, %v1175
    %v1177 = vmul.f32 %v1176, %v1176
    %1179 = vrot.lane.b32.xlu0 %v1177, 126
    %v1180 = vpop.permute.xlu0 %1179
    %v1182 = vadd.f32 %v1134, %v1180
    %v1183 = vstv %s715
    %v1184 = vsub.f32 %v1078, %v1183
    %v1185 = vmul.f32 %v1184, %v1184
    %1187 = vrot.lane.b32.xlu0 %v1185, 126
    %v1188 = vpop.permute.xlu0 %1187
    %v1190 = vadd.f32 %v1142, %v1188
    %v1191 = vstv %s720
    %v1192 = vsub.f32 %v1078, %v1191
    %v1193 = vmul.f32 %v1192, %v1192
    %1195 = vrot.lane.b32.xlu0 %v1193, 126
    %v1196 = vpop.permute.xlu0 %1195
    %v1198 = vadd.f32 %v1150, %v1196
    %v1199 = vstv %s696
    %v1200 = vsub.f32 %v1078, %v1199
    %v1201 = vmul.f32 %v1200, %v1200
    %1203 = vrot.lane.b32.xlu0 %v1201, 125
    %v1204 = vpop.permute.xlu0 %1203
    %v1206 = vadd.f32 %v1158, %v1204
    %v1207 = vstv %s701
    %v1208 = vsub.f32 %v1078, %v1207
    %v1209 = vmul.f32 %v1208, %v1208
    %1211 = vrot.lane.b32.xlu0 %v1209, 125
    %v1212 = vpop.permute.xlu0 %1211
    %v1214 = vadd.f32 %v1166, %v1212
    %v1215 = vstv %s706
    %v1216 = vsub.f32 %v1078, %v1215
    %v1217 = vmul.f32 %v1216, %v1216
    %1219 = vrot.lane.b32.xlu0 %v1217, 125
    %v1220 = vpop.permute.xlu0 %1219
    %v1222 = vadd.f32 %v1174, %v1220
    %v1223 = vstv %s711
    %v1224 = vsub.f32 %v1078, %v1223
    %v1225 = vmul.f32 %v1224, %v1224
    %1227 = vrot.lane.b32.xlu0 %v1225, 125
    %v1228 = vpop.permute.xlu0 %1227
    %v1230 = vadd.f32 %v1182, %v1228
    %v1231 = vstv %s716
    %v1232 = vsub.f32 %v1078, %v1231
    %v1233 = vmul.f32 %v1232, %v1232
    %1235 = vrot.lane.b32.xlu0 %v1233, 125
    %v1236 = vpop.permute.xlu0 %1235
    %v1238 = vadd.f32 %v1190, %v1236
    %v1239 = vstv %s721
    %v1240 = vsub.f32 %v1078, %v1239
    %v1241 = vmul.f32 %v1240, %v1240
    %1243 = vrot.lane.b32.xlu0 %v1241, 125
    %v1244 = vpop.permute.xlu0 %1243
    %v1246 = vadd.f32 %v1198, %v1244
    %v1247 = vstv %s697
    %v1248 = vsub.f32 %v1078, %v1247
    %v1249 = vmul.f32 %v1248, %v1248
    %1251 = vrot.lane.b32.xlu0 %v1249, 124
    %v1252 = vpop.permute.xlu0 %1251
    %v1254 = vadd.f32 %v1206, %v1252
    %v1255 = vstv %s702
    %v1256 = vsub.f32 %v1078, %v1255
    %v1257 = vmul.f32 %v1256, %v1256
    %1259 = vrot.lane.b32.xlu0 %v1257, 124
    %v1260 = vpop.permute.xlu0 %1259
    %v1262 = vadd.f32 %v1214, %v1260
    %v1263 = vstv %s707
    %v1264 = vsub.f32 %v1078, %v1263
    %v1265 = vmul.f32 %v1264, %v1264
    %1267 = vrot.lane.b32.xlu0 %v1265, 124
    %v1268 = vpop.permute.xlu0 %1267
    %v1270 = vadd.f32 %v1222, %v1268
    %v1271 = vstv %s712
    %v1272 = vsub.f32 %v1078, %v1271
    %v1273 = vmul.f32 %v1272, %v1272
    %1275 = vrot.lane.b32.xlu0 %v1273, 124
    %v1276 = vpop.permute.xlu0 %1275
    %v1278 = vadd.f32 %v1230, %v1276
    %v1279 = vstv %s717
    %v1280 = vsub.f32 %v1078, %v1279
    %v1281 = vmul.f32 %v1280, %v1280
    %1283 = vrot.lane.b32.xlu0 %v1281, 124
    %v1284 = vpop.permute.xlu0 %1283
    %v1286 = vadd.f32 %v1238, %v1284
    %v1287 = vstv %s722
    %v1288 = vsub.f32 %v1078, %v1287
    %v1289 = vmul.f32 %v1288, %v1288
    %1291 = vrot.lane.b32.xlu0 %v1289, 124
    %v1292 = vpop.permute.xlu0 %1291
    %v1294 = vadd.f32 %v1246, %v1292
    %v1295 = vrsqrt.pop %v1254
    %v1296 = vmul.f32 %v1295, %v1254
    %v1297 = vmul.f32 %v1296, %v1295
    %v1298 = vmul.f32 0.5, %v1297
    %v1299 = vsub.f32 1.5, %v1298
    %v1300 = vmul.f32 %v1295, %v1299
    %v1301 = vmul.f32 %v1254, %v1300
    %vm1302 = vcmp.eq.f32.partialorder %v1254, inf
    %v1303 = vsel %vm1302, %v1254, %v1301
    %vm1304 = vcmp.eq.f32.partialorder %v1254, 0.0
    %v1305 = vand.u32 %v1254, 2147483648
    %v1306 = vsel %vm1304, %v1305, %v1303
    %v1307 = vadd.f32 %v1012, %v1306
    %v1308 = vrsqrt.pop %v1262
    %v1309 = vmul.f32 %v1308, %v1262
    %v1310 = vmul.f32 %v1309, %v1308
    %v1311 = vmul.f32 0.5, %v1310
    %v1312 = vsub.f32 1.5, %v1311
    %v1313 = vmul.f32 %v1308, %v1312
    %v1314 = vmul.f32 %v1262, %v1313
    %vm1315 = vcmp.eq.f32.partialorder %v1262, inf
    %v1316 = vsel %vm1315, %v1262, %v1314
    %vm1317 = vcmp.eq.f32.partialorder %v1262, 0.0
    %v1318 = vand.u32 %v1262, 2147483648
    %v1319 = vsel %vm1317, %v1318, %v1316
    %v1320 = vadd.f32 %v1025, %v1319
    %v1321 = vrsqrt.pop %v1270
    %v1322 = vmul.f32 %v1321, %v1270
    %v1323 = vmul.f32 %v1322, %v1321
    %v1324 = vmul.f32 0.5, %v1323
    %v1325 = vsub.f32 1.5, %v1324
    %v1326 = vmul.f32 %v1321, %v1325
    %v1327 = vmul.f32 %v1270, %v1326
    %vm1328 = vcmp.eq.f32.partialorder %v1270, inf
    %v1329 = vsel %vm1328, %v1270, %v1327
    %vm1330 = vcmp.eq.f32.partialorder %v1270, 0.0
    %v1331 = vand.u32 %v1270, 2147483648
    %v1332 = vsel %vm1330, %v1331, %v1329
    %v1333 = vadd.f32 %v1038, %v1332
    %v1334 = vrsqrt.pop %v1278
    %v1335 = vmul.f32 %v1334, %v1278
    %v1336 = vmul.f32 %v1335, %v1334
    %v1337 = vmul.f32 0.5, %v1336
    %v1338 = vsub.f32 1.5, %v1337
    %v1339 = vmul.f32 %v1334, %v1338
    %v1340 = vmul.f32 %v1278, %v1339
    %vm1341 = vcmp.eq.f32.partialorder %v1278, inf
    %v1342 = vsel %vm1341, %v1278, %v1340
    %vm1343 = vcmp.eq.f32.partialorder %v1278, 0.0
    %v1344 = vand.u32 %v1278, 2147483648
    %v1345 = vsel %vm1343, %v1344, %v1342
    %v1346 = vadd.f32 %v1051, %v1345
    %v1347 = vrsqrt.pop %v1286
    %v1348 = vmul.f32 %v1347, %v1286
    %v1349 = vmul.f32 %v1348, %v1347
    %v1350 = vmul.f32 0.5, %v1349
    %v1351 = vsub.f32 1.5, %v1350
    %v1352 = vmul.f32 %v1347, %v1351
    %v1353 = vmul.f32 %v1286, %v1352
    %vm1354 = vcmp.eq.f32.partialorder %v1286, inf
    %v1355 = vsel %vm1354, %v1286, %v1353
    %vm1356 = vcmp.eq.f32.partialorder %v1286, 0.0
    %v1357 = vand.u32 %v1286, 2147483648
    %v1358 = vsel %vm1356, %v1357, %v1355
    %v1359 = vadd.f32 %v1064, %v1358
    %v1360 = vrsqrt.pop %v1294
    %v1361 = vmul.f32 %v1360, %v1294
    %v1362 = vmul.f32 %v1361, %v1360
    %v1363 = vmul.f32 0.5, %v1362
    %v1364 = vsub.f32 1.5, %v1363
    %v1365 = vmul.f32 %v1360, %v1364
    %v1366 = vmul.f32 %v1294, %v1365
    %vm1367 = vcmp.eq.f32.partialorder %v1294, inf
    %v1368 = vsel %vm1367, %v1294, %v1366
    %vm1369 = vcmp.eq.f32.partialorder %v1294, 0.0
    %v1370 = vand.u32 %v1294, 2147483648
    %v1371 = vsel %vm1369, %v1370, %v1368
    %v1372 = vadd.f32 %v1077, %v1371
    %v1373 = vld [vmem:[%s373] sm:$0xff]
    %v1374 = vstv %s723
    %v1375 = vsub.f32 %v1373, %v1374
    %v1376 = vmul.f32 %v1375, %v1375
    %v1377 = vadd.f32 %v1376, 0.0
    %v1378 = vstv %s728
    %v1379 = vsub.f32 %v1373, %v1378
    %v1380 = vmul.f32 %v1379, %v1379
    %v1381 = vadd.f32 %v1380, 0.0
    %v1382 = vstv %s733
    %v1383 = vsub.f32 %v1373, %v1382
    %v1384 = vmul.f32 %v1383, %v1383
    %v1385 = vadd.f32 %v1384, 0.0
    %v1386 = vstv %s738
    %v1387 = vsub.f32 %v1373, %v1386
    %v1388 = vmul.f32 %v1387, %v1387
    %v1389 = vadd.f32 %v1388, 0.0
    %v1390 = vstv %s743
    %v1391 = vsub.f32 %v1373, %v1390
    %v1392 = vmul.f32 %v1391, %v1391
    %v1393 = vadd.f32 %v1392, 0.0
    %v1394 = vstv %s748
    %v1395 = vsub.f32 %v1373, %v1394
    %v1396 = vmul.f32 %v1395, %v1395
    %v1397 = vadd.f32 %v1396, 0.0
    %v1398 = vstv %s724
    %v1399 = vsub.f32 %v1373, %v1398
    %v1400 = vmul.f32 %v1399, %v1399
    %1402 = vrot.lane.b32.xlu0 %v1400, 127
    %v1403 = vpop.permute.xlu0 %1402
    %v1405 = vadd.f32 %v1377, %v1403
    %v1406 = vstv %s729
    %v1407 = vsub.f32 %v1373, %v1406
    %v1408 = vmul.f32 %v1407, %v1407
    %1410 = vrot.lane.b32.xlu0 %v1408, 127
    %v1411 = vpop.permute.xlu0 %1410
    %v1413 = vadd.f32 %v1381, %v1411
    %v1414 = vstv %s734
    %v1415 = vsub.f32 %v1373, %v1414
    %v1416 = vmul.f32 %v1415, %v1415
    %1418 = vrot.lane.b32.xlu0 %v1416, 127
    %v1419 = vpop.permute.xlu0 %1418
    %v1421 = vadd.f32 %v1385, %v1419
    %v1422 = vstv %s739
    %v1423 = vsub.f32 %v1373, %v1422
    %v1424 = vmul.f32 %v1423, %v1423
    %1426 = vrot.lane.b32.xlu0 %v1424, 127
    %v1427 = vpop.permute.xlu0 %1426
    %v1429 = vadd.f32 %v1389, %v1427
    %v1430 = vstv %s744
    %v1431 = vsub.f32 %v1373, %v1430
    %v1432 = vmul.f32 %v1431, %v1431
    %1434 = vrot.lane.b32.xlu0 %v1432, 127
    %v1435 = vpop.permute.xlu0 %1434
    %v1437 = vadd.f32 %v1393, %v1435
    %v1438 = vstv %s749
    %v1439 = vsub.f32 %v1373, %v1438
    %v1440 = vmul.f32 %v1439, %v1439
    %1442 = vrot.lane.b32.xlu0 %v1440, 127
    %v1443 = vpop.permute.xlu0 %1442
    %v1445 = vadd.f32 %v1397, %v1443
    %v1446 = vstv %s725
    %v1447 = vsub.f32 %v1373, %v1446
    %v1448 = vmul.f32 %v1447, %v1447
    %1450 = vrot.lane.b32.xlu0 %v1448, 126
    %v1451 = vpop.permute.xlu0 %1450
    %v1453 = vadd.f32 %v1405, %v1451
    %v1454 = vstv %s730
    %v1455 = vsub.f32 %v1373, %v1454
    %v1456 = vmul.f32 %v1455, %v1455
    %1458 = vrot.lane.b32.xlu0 %v1456, 126
    %v1459 = vpop.permute.xlu0 %1458
    %v1461 = vadd.f32 %v1413, %v1459
    %v1462 = vstv %s735
    %v1463 = vsub.f32 %v1373, %v1462
    %v1464 = vmul.f32 %v1463, %v1463
    %1466 = vrot.lane.b32.xlu0 %v1464, 126
    %v1467 = vpop.permute.xlu0 %1466
    %v1469 = vadd.f32 %v1421, %v1467
    %v1470 = vstv %s740
    %v1471 = vsub.f32 %v1373, %v1470
    %v1472 = vmul.f32 %v1471, %v1471
    %1474 = vrot.lane.b32.xlu0 %v1472, 126
    %v1475 = vpop.permute.xlu0 %1474
    %v1477 = vadd.f32 %v1429, %v1475
    %v1478 = vstv %s745
    %v1479 = vsub.f32 %v1373, %v1478
    %v1480 = vmul.f32 %v1479, %v1479
    %1482 = vrot.lane.b32.xlu0 %v1480, 126
    %v1483 = vpop.permute.xlu0 %1482
    %v1485 = vadd.f32 %v1437, %v1483
    %v1486 = vstv %s750
    %v1487 = vsub.f32 %v1373, %v1486
    %v1488 = vmul.f32 %v1487, %v1487
    %1490 = vrot.lane.b32.xlu0 %v1488, 126
    %v1491 = vpop.permute.xlu0 %1490
    %v1493 = vadd.f32 %v1445, %v1491
    %v1494 = vstv %s726
    %v1495 = vsub.f32 %v1373, %v1494
    %v1496 = vmul.f32 %v1495, %v1495
    %1498 = vrot.lane.b32.xlu0 %v1496, 125
    %v1499 = vpop.permute.xlu0 %1498
    %v1501 = vadd.f32 %v1453, %v1499
    %v1502 = vstv %s731
    %v1503 = vsub.f32 %v1373, %v1502
    %v1504 = vmul.f32 %v1503, %v1503
    %1506 = vrot.lane.b32.xlu0 %v1504, 125
    %v1507 = vpop.permute.xlu0 %1506
    %v1509 = vadd.f32 %v1461, %v1507
    %v1510 = vstv %s736
    %v1511 = vsub.f32 %v1373, %v1510
    %v1512 = vmul.f32 %v1511, %v1511
    %1514 = vrot.lane.b32.xlu0 %v1512, 125
    %v1515 = vpop.permute.xlu0 %1514
    %v1517 = vadd.f32 %v1469, %v1515
    %v1518 = vstv %s741
    %v1519 = vsub.f32 %v1373, %v1518
    %v1520 = vmul.f32 %v1519, %v1519
    %1522 = vrot.lane.b32.xlu0 %v1520, 125
    %v1523 = vpop.permute.xlu0 %1522
    %v1525 = vadd.f32 %v1477, %v1523
    %v1526 = vstv %s746
    %v1527 = vsub.f32 %v1373, %v1526
    %v1528 = vmul.f32 %v1527, %v1527
    %1530 = vrot.lane.b32.xlu0 %v1528, 125
    %v1531 = vpop.permute.xlu0 %1530
    %v1533 = vadd.f32 %v1485, %v1531
    %v1534 = vstv %s751
    %v1535 = vsub.f32 %v1373, %v1534
    %v1536 = vmul.f32 %v1535, %v1535
    %1538 = vrot.lane.b32.xlu0 %v1536, 125
    %v1539 = vpop.permute.xlu0 %1538
    %v1541 = vadd.f32 %v1493, %v1539
    %v1542 = vstv %s727
    %v1543 = vsub.f32 %v1373, %v1542
    %v1544 = vmul.f32 %v1543, %v1543
    %1546 = vrot.lane.b32.xlu0 %v1544, 124
    %v1547 = vpop.permute.xlu0 %1546
    %v1549 = vadd.f32 %v1501, %v1547
    %v1550 = vstv %s732
    %v1551 = vsub.f32 %v1373, %v1550
    %v1552 = vmul.f32 %v1551, %v1551
    %1554 = vrot.lane.b32.xlu0 %v1552, 124
    %v1555 = vpop.permute.xlu0 %1554
    %v1557 = vadd.f32 %v1509, %v1555
    %v1558 = vstv %s737
    %v1559 = vsub.f32 %v1373, %v1558
    %v1560 = vmul.f32 %v1559, %v1559
    %1562 = vrot.lane.b32.xlu0 %v1560, 124
    %v1563 = vpop.permute.xlu0 %1562
    %v1565 = vadd.f32 %v1517, %v1563
    %v1566 = vstv %s742
    %v1567 = vsub.f32 %v1373, %v1566
    %v1568 = vmul.f32 %v1567, %v1567
    %1570 = vrot.lane.b32.xlu0 %v1568, 124
    %v1571 = vpop.permute.xlu0 %1570
    %v1573 = vadd.f32 %v1525, %v1571
    %v1574 = vstv %s747
    %v1575 = vsub.f32 %v1373, %v1574
    %v1576 = vmul.f32 %v1575, %v1575
    %1578 = vrot.lane.b32.xlu0 %v1576, 124
    %v1579 = vpop.permute.xlu0 %1578
    %v1581 = vadd.f32 %v1533, %v1579
    %v1582 = vstv %s752
    %v1583 = vsub.f32 %v1373, %v1582
    %v1584 = vmul.f32 %v1583, %v1583
    %1586 = vrot.lane.b32.xlu0 %v1584, 124
    %v1587 = vpop.permute.xlu0 %1586
    %v1589 = vadd.f32 %v1541, %v1587
    %v1590 = vrsqrt.pop %v1549
    %v1591 = vmul.f32 %v1590, %v1549
    %v1592 = vmul.f32 %v1591, %v1590
    %v1593 = vmul.f32 0.5, %v1592
    %v1594 = vsub.f32 1.5, %v1593
    %v1595 = vmul.f32 %v1590, %v1594
    %v1596 = vmul.f32 %v1549, %v1595
    %vm1597 = vcmp.eq.f32.partialorder %v1549, inf
    %v1598 = vsel %vm1597, %v1549, %v1596
    %vm1599 = vcmp.eq.f32.partialorder %v1549, 0.0
    %v1600 = vand.u32 %v1549, 2147483648
    %v1601 = vsel %vm1599, %v1600, %v1598
    %v1602 = vadd.f32 %v1307, %v1601
    %v1603 = vrsqrt.pop %v1557
    %v1604 = vmul.f32 %v1603, %v1557
    %v1605 = vmul.f32 %v1604, %v1603
    %v1606 = vmul.f32 0.5, %v1605
    %v1607 = vsub.f32 1.5, %v1606
    %v1608 = vmul.f32 %v1603, %v1607
    %v1609 = vmul.f32 %v1557, %v1608
    %vm1610 = vcmp.eq.f32.partialorder %v1557, inf
    %v1611 = vsel %vm1610, %v1557, %v1609
    %vm1612 = vcmp.eq.f32.partialorder %v1557, 0.0
    %v1613 = vand.u32 %v1557, 2147483648
    %v1614 = vsel %vm1612, %v1613, %v1611
    %v1615 = vadd.f32 %v1320, %v1614
    %v1616 = vrsqrt.pop %v1565
    %v1617 = vmul.f32 %v1616, %v1565
    %v1618 = vmul.f32 %v1617, %v1616
    %v1619 = vmul.f32 0.5, %v1618
    %v1620 = vsub.f32 1.5, %v1619
    %v1621 = vmul.f32 %v1616, %v1620
    %v1622 = vmul.f32 %v1565, %v1621
    %vm1623 = vcmp.eq.f32.partialorder %v1565, inf
    %v1624 = vsel %vm1623, %v1565, %v1622
    %vm1625 = vcmp.eq.f32.partialorder %v1565, 0.0
    %v1626 = vand.u32 %v1565, 2147483648
    %v1627 = vsel %vm1625, %v1626, %v1624
    %v1628 = vadd.f32 %v1333, %v1627
    %v1629 = vrsqrt.pop %v1573
    %v1630 = vmul.f32 %v1629, %v1573
    %v1631 = vmul.f32 %v1630, %v1629
    %v1632 = vmul.f32 0.5, %v1631
    %v1633 = vsub.f32 1.5, %v1632
    %v1634 = vmul.f32 %v1629, %v1633
    %v1635 = vmul.f32 %v1573, %v1634
    %vm1636 = vcmp.eq.f32.partialorder %v1573, inf
    %v1637 = vsel %vm1636, %v1573, %v1635
    %vm1638 = vcmp.eq.f32.partialorder %v1573, 0.0
    %v1639 = vand.u32 %v1573, 2147483648
    %v1640 = vsel %vm1638, %v1639, %v1637
    %v1641 = vadd.f32 %v1346, %v1640
    %v1642 = vrsqrt.pop %v1581
    %v1643 = vmul.f32 %v1642, %v1581
    %v1644 = vmul.f32 %v1643, %v1642
    %v1645 = vmul.f32 0.5, %v1644
    %v1646 = vsub.f32 1.5, %v1645
    %v1647 = vmul.f32 %v1642, %v1646
    %v1648 = vmul.f32 %v1581, %v1647
    %vm1649 = vcmp.eq.f32.partialorder %v1581, inf
    %v1650 = vsel %vm1649, %v1581, %v1648
    %vm1651 = vcmp.eq.f32.partialorder %v1581, 0.0
    %v1652 = vand.u32 %v1581, 2147483648
    %v1653 = vsel %vm1651, %v1652, %v1650
    %v1654 = vadd.f32 %v1359, %v1653
    %v1655 = vrsqrt.pop %v1589
    %v1656 = vmul.f32 %v1655, %v1589
    %v1657 = vmul.f32 %v1656, %v1655
    %v1658 = vmul.f32 0.5, %v1657
    %v1659 = vsub.f32 1.5, %v1658
    %v1660 = vmul.f32 %v1655, %v1659
    %v1661 = vmul.f32 %v1589, %v1660
    %vm1662 = vcmp.eq.f32.partialorder %v1589, inf
    %v1663 = vsel %vm1662, %v1589, %v1661
    %vm1664 = vcmp.eq.f32.partialorder %v1589, 0.0
    %v1665 = vand.u32 %v1589, 2147483648
    %v1666 = vsel %vm1664, %v1665, %v1663
    %v1667 = vadd.f32 %v1372, %v1666
    %v1668 = vld [vmem:[%s508] sm:$0xff]
    %v1669 = vstv %s753
    %v1670 = vsub.f32 %v1668, %v1669
    %v1671 = vmul.f32 %v1670, %v1670
    %v1672 = vadd.f32 %v1671, 0.0
    %v1673 = vstv %s758
    %v1674 = vsub.f32 %v1668, %v1673
    %v1675 = vmul.f32 %v1674, %v1674
    %v1676 = vadd.f32 %v1675, 0.0
    %v1677 = vstv %s763
    %v1678 = vsub.f32 %v1668, %v1677
    %v1679 = vmul.f32 %v1678, %v1678
    %v1680 = vadd.f32 %v1679, 0.0
    %v1681 = vstv %s768
    %v1682 = vsub.f32 %v1668, %v1681
    %v1683 = vmul.f32 %v1682, %v1682
    %v1684 = vadd.f32 %v1683, 0.0
    %v1685 = vstv %s773
    %v1686 = vsub.f32 %v1668, %v1685
    %v1687 = vmul.f32 %v1686, %v1686
    %v1688 = vadd.f32 %v1687, 0.0
    %v1689 = vstv %s778
    %v1690 = vsub.f32 %v1668, %v1689
    %v1691 = vmul.f32 %v1690, %v1690
    %v1692 = vadd.f32 %v1691, 0.0
    %v1693 = vstv %s754
    %v1694 = vsub.f32 %v1668, %v1693
    %v1695 = vmul.f32 %v1694, %v1694
    %1697 = vrot.lane.b32.xlu0 %v1695, 127
    %v1698 = vpop.permute.xlu0 %1697
    %v1700 = vadd.f32 %v1672, %v1698
    %v1701 = vstv %s759
    %v1702 = vsub.f32 %v1668, %v1701
    %v1703 = vmul.f32 %v1702, %v1702
    %1705 = vrot.lane.b32.xlu0 %v1703, 127
    %v1706 = vpop.permute.xlu0 %1705
    %v1708 = vadd.f32 %v1676, %v1706
    %v1709 = vstv %s764
    %v1710 = vsub.f32 %v1668, %v1709
    %v1711 = vmul.f32 %v1710, %v1710
    %1713 = vrot.lane.b32.xlu0 %v1711, 127
    %v1714 = vpop.permute.xlu0 %1713
    %v1716 = vadd.f32 %v1680, %v1714
    %v1717 = vstv %s769
    %v1718 = vsub.f32 %v1668, %v1717
    %v1719 = vmul.f32 %v1718, %v1718
    %1721 = vrot.lane.b32.xlu0 %v1719, 127
    %v1722 = vpop.permute.xlu0 %1721
    %v1724 = vadd.f32 %v1684, %v1722
    %v1725 = vstv %s774
    %v1726 = vsub.f32 %v1668, %v1725
    %v1727 = vmul.f32 %v1726, %v1726
    %1729 = vrot.lane.b32.xlu0 %v1727, 127
    %v1730 = vpop.permute.xlu0 %1729
    %v1732 = vadd.f32 %v1688, %v1730
    %v1733 = vstv %s779
    %v1734 = vsub.f32 %v1668, %v1733
    %v1735 = vmul.f32 %v1734, %v1734
    %1737 = vrot.lane.b32.xlu0 %v1735, 127
    %v1738 = vpop.permute.xlu0 %1737
    %v1740 = vadd.f32 %v1692, %v1738
    %v1741 = vstv %s755
    %v1742 = vsub.f32 %v1668, %v1741
    %v1743 = vmul.f32 %v1742, %v1742
    %1745 = vrot.lane.b32.xlu0 %v1743, 126
    %v1746 = vpop.permute.xlu0 %1745
    %v1748 = vadd.f32 %v1700, %v1746
    %v1749 = vstv %s760
    %v1750 = vsub.f32 %v1668, %v1749
    %v1751 = vmul.f32 %v1750, %v1750
    %1753 = vrot.lane.b32.xlu0 %v1751, 126
    %v1754 = vpop.permute.xlu0 %1753
    %v1756 = vadd.f32 %v1708, %v1754
    %v1757 = vstv %s765
    %v1758 = vsub.f32 %v1668, %v1757
    %v1759 = vmul.f32 %v1758, %v1758
    %1761 = vrot.lane.b32.xlu0 %v1759, 126
    %v1762 = vpop.permute.xlu0 %1761
    %v1764 = vadd.f32 %v1716, %v1762
    %v1765 = vstv %s770
    %v1766 = vsub.f32 %v1668, %v1765
    %v1767 = vmul.f32 %v1766, %v1766
    %1769 = vrot.lane.b32.xlu0 %v1767, 126
    %v1770 = vpop.permute.xlu0 %1769
    %v1772 = vadd.f32 %v1724, %v1770
    %v1773 = vstv %s775
    %v1774 = vsub.f32 %v1668, %v1773
    %v1775 = vmul.f32 %v1774, %v1774
    %1777 = vrot.lane.b32.xlu0 %v1775, 126
    %v1778 = vpop.permute.xlu0 %1777
    %v1780 = vadd.f32 %v1732, %v1778
    %v1781 = vstv %s780
    %v1782 = vsub.f32 %v1668, %v1781
    %v1783 = vmul.f32 %v1782, %v1782
    %1785 = vrot.lane.b32.xlu0 %v1783, 126
    %v1786 = vpop.permute.xlu0 %1785
    %v1788 = vadd.f32 %v1740, %v1786
    %v1789 = vstv %s756
    %v1790 = vsub.f32 %v1668, %v1789
    %v1791 = vmul.f32 %v1790, %v1790
    %1793 = vrot.lane.b32.xlu0 %v1791, 125
    %v1794 = vpop.permute.xlu0 %1793
    %v1796 = vadd.f32 %v1748, %v1794
    %v1797 = vstv %s761
    %v1798 = vsub.f32 %v1668, %v1797
    %v1799 = vmul.f32 %v1798, %v1798
    %1801 = vrot.lane.b32.xlu0 %v1799, 125
    %v1802 = vpop.permute.xlu0 %1801
    %v1804 = vadd.f32 %v1756, %v1802
    %v1805 = vstv %s766
    %v1806 = vsub.f32 %v1668, %v1805
    %v1807 = vmul.f32 %v1806, %v1806
    %1809 = vrot.lane.b32.xlu0 %v1807, 125
    %v1810 = vpop.permute.xlu0 %1809
    %v1812 = vadd.f32 %v1764, %v1810
    %v1813 = vstv %s771
    %v1814 = vsub.f32 %v1668, %v1813
    %v1815 = vmul.f32 %v1814, %v1814
    %1817 = vrot.lane.b32.xlu0 %v1815, 125
    %v1818 = vpop.permute.xlu0 %1817
    %v1820 = vadd.f32 %v1772, %v1818
    %v1821 = vstv %s776
    %v1822 = vsub.f32 %v1668, %v1821
    %v1823 = vmul.f32 %v1822, %v1822
    %1825 = vrot.lane.b32.xlu0 %v1823, 125
    %v1826 = vpop.permute.xlu0 %1825
    %v1828 = vadd.f32 %v1780, %v1826
    %v1829 = vstv %s781
    %v1830 = vsub.f32 %v1668, %v1829
    %v1831 = vmul.f32 %v1830, %v1830
    %1833 = vrot.lane.b32.xlu0 %v1831, 125
    %v1834 = vpop.permute.xlu0 %1833
    %v1836 = vadd.f32 %v1788, %v1834
    %v1837 = vstv %s757
    %v1838 = vsub.f32 %v1668, %v1837
    %v1839 = vmul.f32 %v1838, %v1838
    %1841 = vrot.lane.b32.xlu0 %v1839, 124
    %v1842 = vpop.permute.xlu0 %1841
    %v1844 = vadd.f32 %v1796, %v1842
    %v1845 = vstv %s762
    %v1846 = vsub.f32 %v1668, %v1845
    %v1847 = vmul.f32 %v1846, %v1846
    %1849 = vrot.lane.b32.xlu0 %v1847, 124
    %v1850 = vpop.permute.xlu0 %1849
    %v1852 = vadd.f32 %v1804, %v1850
    %v1853 = vstv %s767
    %v1854 = vsub.f32 %v1668, %v1853
    %v1855 = vmul.f32 %v1854, %v1854
    %1857 = vrot.lane.b32.xlu0 %v1855, 124
    %v1858 = vpop.permute.xlu0 %1857
    %v1860 = vadd.f32 %v1812, %v1858
    %v1861 = vstv %s772
    %v1862 = vsub.f32 %v1668, %v1861
    %v1863 = vmul.f32 %v1862, %v1862
    %1865 = vrot.lane.b32.xlu0 %v1863, 124
    %v1866 = vpop.permute.xlu0 %1865
    %v1868 = vadd.f32 %v1820, %v1866
    %v1869 = vstv %s777
    %v1870 = vsub.f32 %v1668, %v1869
    %v1871 = vmul.f32 %v1870, %v1870
    %1873 = vrot.lane.b32.xlu0 %v1871, 124
    %v1874 = vpop.permute.xlu0 %1873
    %v1876 = vadd.f32 %v1828, %v1874
    %v1877 = vstv %s782
    %v1878 = vsub.f32 %v1668, %v1877
    %v1879 = vmul.f32 %v1878, %v1878
    %1881 = vrot.lane.b32.xlu0 %v1879, 124
    %v1882 = vpop.permute.xlu0 %1881
    %v1884 = vadd.f32 %v1836, %v1882
    %v1885 = vrsqrt.pop %v1844
    %v1886 = vmul.f32 %v1885, %v1844
    %v1887 = vmul.f32 %v1886, %v1885
    %v1888 = vmul.f32 0.5, %v1887
    %v1889 = vsub.f32 1.5, %v1888
    %v1890 = vmul.f32 %v1885, %v1889
    %v1891 = vmul.f32 %v1844, %v1890
    %vm1892 = vcmp.eq.f32.partialorder %v1844, inf
    %v1893 = vsel %vm1892, %v1844, %v1891
    %vm1894 = vcmp.eq.f32.partialorder %v1844, 0.0
    %v1895 = vand.u32 %v1844, 2147483648
    %v1896 = vsel %vm1894, %v1895, %v1893
    %v1897 = vadd.f32 %v1602, %v1896
    %v1898 = vrsqrt.pop %v1852
    %v1899 = vmul.f32 %v1898, %v1852
    %v1900 = vmul.f32 %v1899, %v1898
    %v1901 = vmul.f32 0.5, %v1900
    %v1902 = vsub.f32 1.5, %v1901
    %v1903 = vmul.f32 %v1898, %v1902
    %v1904 = vmul.f32 %v1852, %v1903
    %vm1905 = vcmp.eq.f32.partialorder %v1852, inf
    %v1906 = vsel %vm1905, %v1852, %v1904
    %vm1907 = vcmp.eq.f32.partialorder %v1852, 0.0
    %v1908 = vand.u32 %v1852, 2147483648
    %v1909 = vsel %vm1907, %v1908, %v1906
    %v1910 = vadd.f32 %v1615, %v1909
    %v1911 = vrsqrt.pop %v1860
    %v1912 = vmul.f32 %v1911, %v1860
    %v1913 = vmul.f32 %v1912, %v1911
    %v1914 = vmul.f32 0.5, %v1913
    %v1915 = vsub.f32 1.5, %v1914
    %v1916 = vmul.f32 %v1911, %v1915
    %v1917 = vmul.f32 %v1860, %v1916
    %vm1918 = vcmp.eq.f32.partialorder %v1860, inf
    %v1919 = vsel %vm1918, %v1860, %v1917
    %vm1920 = vcmp.eq.f32.partialorder %v1860, 0.0
    %v1921 = vand.u32 %v1860, 2147483648
    %v1922 = vsel %vm1920, %v1921, %v1919
    %v1923 = vadd.f32 %v1628, %v1922
    %v1924 = vrsqrt.pop %v1868
    %v1925 = vmul.f32 %v1924, %v1868
    %v1926 = vmul.f32 %v1925, %v1924
    %v1927 = vmul.f32 0.5, %v1926
    %v1928 = vsub.f32 1.5, %v1927
    %v1929 = vmul.f32 %v1924, %v1928
    %v1930 = vmul.f32 %v1868, %v1929
    %vm1931 = vcmp.eq.f32.partialorder %v1868, inf
    %v1932 = vsel %vm1931, %v1868, %v1930
    %vm1933 = vcmp.eq.f32.partialorder %v1868, 0.0
    %v1934 = vand.u32 %v1868, 2147483648
    %v1935 = vsel %vm1933, %v1934, %v1932
    %v1936 = vadd.f32 %v1641, %v1935
    %v1937 = vrsqrt.pop %v1876
    %v1938 = vmul.f32 %v1937, %v1876
    %v1939 = vmul.f32 %v1938, %v1937
    %v1940 = vmul.f32 0.5, %v1939
    %v1941 = vsub.f32 1.5, %v1940
    %v1942 = vmul.f32 %v1937, %v1941
    %v1943 = vmul.f32 %v1876, %v1942
    %vm1944 = vcmp.eq.f32.partialorder %v1876, inf
    %v1945 = vsel %vm1944, %v1876, %v1943
    %vm1946 = vcmp.eq.f32.partialorder %v1876, 0.0
    %v1947 = vand.u32 %v1876, 2147483648
    %v1948 = vsel %vm1946, %v1947, %v1945
    %v1949 = vadd.f32 %v1654, %v1948
    %v1950 = vrsqrt.pop %v1884
    %v1951 = vmul.f32 %v1950, %v1884
    %v1952 = vmul.f32 %v1951, %v1950
    %v1953 = vmul.f32 0.5, %v1952
    %v1954 = vsub.f32 1.5, %v1953
    %v1955 = vmul.f32 %v1950, %v1954
    %v1956 = vmul.f32 %v1884, %v1955
    %vm1957 = vcmp.eq.f32.partialorder %v1884, inf
    %v1958 = vsel %vm1957, %v1884, %v1956
    %vm1959 = vcmp.eq.f32.partialorder %v1884, 0.0
    %v1960 = vand.u32 %v1884, 2147483648
    %v1961 = vsel %vm1959, %v1960, %v1958
    %v1962 = vadd.f32 %v1667, %v1961
    %vm1963 = vcmask 97280
    %v1964 = vsel %vm1963, %v1897, inf
    %1965 = vmin.xlane.f32.xlu0 %v1964
    %v1966 = vpop.xlane.xlu0 %1965
    %v1967 = vsel %vm1963, %v1910, inf
    %1968 = vmin.xlane.f32.xlu0 %v1967
    %v1969 = vpop.xlane.xlu0 %1968
    %v1970 = vsel %vm1963, %v1923, inf
    %1971 = vmin.xlane.f32.xlu0 %v1970
    %v1972 = vpop.xlane.xlu0 %1971
    %v1973 = vsel %vm1963, %v1936, inf
    %1974 = vmin.xlane.f32.xlu0 %v1973
    %v1975 = vpop.xlane.xlu0 %1974
    %v1976 = vsel %vm1963, %v1949, inf
    %1977 = vmin.xlane.f32.xlu0 %v1976
    %v1978 = vpop.xlane.xlu0 %1977
    %v1979 = vsel %vm1963, %v1962, inf
    %1980 = vmin.xlane.f32.xlu0 %v1979
    %v1981 = vpop.xlane.xlu0 %1980
    %vm1982 = vcmask 39968
    %1983 = vst.msk [vmem:[#allocation9] sm:$0xff] %vm1982, %v1966
    %vm1984 = vcmask 48168
    %1985 = vst.msk [vmem:[#allocation9] sm:$0xff] %vm1984, %v1969
    %vm1986 = vcmask 56368
    %1987 = vst.msk [vmem:[#allocation9] sm:$0xff] %vm1986, %v1972
    %vm1988 = vcmask 64568
    %1989 = vst.msk [vmem:[#allocation9] sm:$0xff] %vm1988, %v1975
    %vm1990 = vcmask 72768
    %1991 = vst.msk [vmem:[#allocation9] sm:$0xff] %vm1990, %v1978
    %vm1992 = vcmask 80968
    %1993 = vst.msk [vmem:[#allocation9] sm:$0xff] %vm1992, %v1981
    // Predicated region
    $region26: #{tpu_custom_call.1} parent=1 // pred_check
      _
    $region27: #{tpu_custom_call.1} parent=1 // pred_check_branch
      %1995 = sbr.rel (0) target = $region29
    $region28: #{tpu_custom_call.1} parent=1 // pred_region
      %1997 = vsyncadd [#allocation4], 0
      %s1999 = sshll.u32 [#allocation9], 4
      %s2000 = int_to_ptr.vmem [resolvable:$true] %s1999
      %s2001 = sshll.u32 %s3, 4
      %s2002 = int_to_ptr.hbm [resolvable:$true] %s2001
      %2004 = dma.vmem_to_hbm [thread:$0]  %s2000, 128, %s2002, [#allocation4]
    $region29: #{tpu_custom_call.1} parent=1 // pred_fallthru
      _
    // Predicated region
    $region30: #{tpu_custom_call.1} parent=1 // pred_check
      _
    $region31: #{tpu_custom_call.1} parent=1 // pred_check_branch
      %2006 = sbr.rel (0) target = $region33
    $region32: #{tpu_custom_call.1} parent=1 // pred_region
      %2008 = dma.done [#allocation4], 128
    $region33: #{tpu_custom_call.1} parent=1 // pred_fallthru
      _
    %2009 = vsyncpa [#allocation3], 1
    %2010 = vsyncpa [#allocation4], 1
    %2011 = vsyncpa [#allocation5], 1
    %2012 = vsyncpa [#allocation6], 1

</llo_original>
